<compile_context>
chip_gen: v7x
topology: tpu7x:2x2x1
jax: 0.10.0
libtpu: 0.0.40
codegen_flags: <defaults>
</compile_context>

<pallas_src>
import functools

import jax
import jax.numpy as jnp
from jax.experimental import pallas as pl
from jax.experimental.pallas import tpu as pltpu


def _unet_fused_kernel(x_ref, w1_ref, b1_ref, w2_ref, b2_ref, w3_ref, b3_ref,
                       o_ref, xpad, h1pad, h2pad, *, H, W, final_act):
    """Fused UNet forward, one image per grid step.

    x_ref : (1, H, W, Cin)        f32 input tile
    wK_ref: (9*C_in_k, C_out_k)   bf16 im2col-packed weights
    bK_ref: (1, C_out_k)          f32 bias
    o_ref : (1, H*W, Cout)        f32 output tile
    xpad  : VMEM (H+2, W+2, Cin)  f32 zero-padded input scratch
    h1pad : VMEM (H+2, W+2, Ch)   f32 zero-padded hidden-1 scratch
    h2pad : VMEM (H+2, W+2, Ch)   f32 zero-padded hidden-2 scratch
    """
    cin = x_ref.shape[-1]
    ch = h1pad.shape[-1]
    cout = w3_ref.shape[-1]

    # Zero the padded scratches every step (megacore-safe; interior is
    # overwritten right below, so only the halo ring actually matters).
    xpad[...] = jnp.zeros_like(xpad)
    h1pad[...] = jnp.zeros_like(h1pad)
    h2pad[...] = jnp.zeros_like(h2pad)

    # Stage the input interior into the padded scratch (in-kernel padding).
    xpad[1:H + 1, 1:W + 1, :] = x_ref[0]

    def im2col(pad_ref, c):
        # (H*W, 9*c): all nine 3x3 taps concatenated along the contraction
        # axis -> one lane/K-dense matmul per layer instead of nine K=c dots.
        taps = []
        for ky in range(3):
            for kx in range(3):
                taps.append(
                    pad_ref[ky:ky + H, kx:kx + W, :].reshape(H * W, c))
        return jnp.concatenate(taps, axis=-1)

    def conv(pad_ref, c, w_ref, b_ref):
        patches = im2col(pad_ref, c).astype(jnp.bfloat16)      # bf16 MXU lhs
        acc = jnp.dot(patches, w_ref[...],
                      preferred_element_type=jnp.float32)       # f32 accum
        return acc + b_ref[...]                                 # (H*W, cout_k)

    # encoder: conv -> relu -> conv -> relu  (hidden stays resident in VMEM)
    h1 = jnp.maximum(conv(xpad, cin, w1_ref, b1_ref), 0.0)
    h1pad[1:H + 1, 1:W + 1, :] = h1.reshape(H, W, ch)

    h2 = jnp.maximum(conv(h1pad, ch, w2_ref, b2_ref), 0.0)
    h2pad[1:H + 1, 1:W + 1, :] = h2.reshape(H, W, ch)

    # decoder: conv -> sigmoid / softmax over channels
    y = conv(h2pad, ch, w3_ref, b3_ref)
    if final_act == "sigmoid":
        y = jax.nn.sigmoid(y)
    else:
        # PyTorch Softmax(dim=1) over channels == softmax over last axis here
        m = jnp.max(y, axis=-1, keepdims=True)
        e = jnp.exp(y - m)
        y = e * pl.reciprocal(jnp.sum(e, axis=-1, keepdims=True), approx=False)

    o_ref[...] = y.reshape(1, H * W, cout)


def unet_forward(x_nchw, params, out_channels, hidden=64):
    """Matches UNet.forward (encoder conv-relu-conv-relu -> decoder conv-act)."""
    N, Cin, H, W = x_nchw.shape
    Ch = hidden
    Cout = out_channels

    x = jnp.transpose(x_nchw, (0, 2, 3, 1))  # NCHW -> NHWC (channels on lanes)

    # im2col-packed bf16 weights: (3,3,Ci,Co) -> (9*Ci, Co); row = tap*Ci + c,
    # which matches the concat order built inside the kernel.
    w1 = params["w1"].reshape(9 * Cin, Ch).astype(jnp.bfloat16)
    w2 = params["w2"].reshape(9 * Ch, Ch).astype(jnp.bfloat16)
    w3 = params["w3"].reshape(9 * Ch, Cout).astype(jnp.bfloat16)
    b1 = params["b1"].reshape(1, Ch).astype(jnp.float32)
    b2 = params["b2"].reshape(1, Ch).astype(jnp.float32)
    b3 = params["b3"].reshape(1, Cout).astype(jnp.float32)

    final_act = "sigmoid" if out_channels == 1 else "softmax"
    kernel = functools.partial(_unet_fused_kernel, H=H, W=W,
                               final_act=final_act)

    out = pl.pallas_call(
        kernel,
        out_shape=jax.ShapeDtypeStruct((N, H * W, Cout), jnp.float32),
        grid=(N,),
        in_specs=[
            pl.BlockSpec((1, H, W, Cin), lambda n: (n, 0, 0, 0)),
            pl.BlockSpec((9 * Cin, Ch), lambda n: (0, 0)),
            pl.BlockSpec((1, Ch), lambda n: (0, 0)),
            pl.BlockSpec((9 * Ch, Ch), lambda n: (0, 0)),
            pl.BlockSpec((1, Ch), lambda n: (0, 0)),
            pl.BlockSpec((9 * Ch, Cout), lambda n: (0, 0)),
            pl.BlockSpec((1, Cout), lambda n: (0, 0)),
        ],
        out_specs=pl.BlockSpec((1, H * W, Cout), lambda n: (n, 0, 0)),
        scratch_shapes=[
            pltpu.VMEM((H + 2, W + 2, Cin), jnp.float32),
            pltpu.VMEM((H + 2, W + 2, Ch), jnp.float32),
            pltpu.VMEM((H + 2, W + 2, Ch), jnp.float32),
        ],
        compiler_params=pltpu.CompilerParams(
            dimension_semantics=("parallel",)),
    )(x, w1, b1, w2, b2, w3, b3)

    out = out.reshape(N, H, W, Cout)
    return jnp.transpose(out, (0, 3, 1, 2))  # NHWC -> NCHW


def init_unet_params(key, in_channels, out_channels, hidden=64):
    """Deterministic synthetic parameters (shapes match the PyTorch module)."""
    ks = jax.random.split(key, 6)

    def conv_init(kw, kb, cin, cout):
        fan_in = cin * 3 * 3
        scale = 1.0 / jnp.sqrt(jnp.float32(fan_in))
        w = jax.random.uniform(kw, (3, 3, cin, cout), jnp.float32, -scale, scale)
        b = jax.random.uniform(kb, (cout,), jnp.float32, -scale, scale)
        return w, b

    w1, b1 = conv_init(ks[0], ks[1], in_channels, hidden)
    w2, b2 = conv_init(ks[2], ks[3], hidden, hidden)
    w3, b3 = conv_init(ks[4], ks[5], hidden, out_channels)
    return {"w1": w1, "b1": b1, "w2": w2, "b2": b2, "w3": w3, "b3": b3}


# ---------------- pure-JAX f32 reference (verification only) ----------------
def _ref_conv3x3(x_nchw, w_hwio, b):
    w_oihw = jnp.transpose(w_hwio, (3, 2, 0, 1))
    y = jax.lax.conv_general_dilated(
        x_nchw, w_oihw, window_strides=(1, 1), padding="SAME",
        dimension_numbers=("NCHW", "OIHW", "NCHW"),
        precision=jax.lax.Precision.HIGHEST,
    )
    return y + b[None, :, None, None]


def unet_reference(x_nchw, params, out_channels):
    x = jax.nn.relu(_ref_conv3x3(x_nchw, params["w1"], params["b1"]))
    x = jax.nn.relu(_ref_conv3x3(x, params["w2"], params["b2"]))
    x = _ref_conv3x3(x, params["w3"], params["b3"])
    if out_channels == 1:
        return jax.nn.sigmoid(x)
    return jax.nn.softmax(x, axis=1)


if __name__ == "__main__":
    key = jax.random.PRNGKey(0)
    k_x, k_p = jax.random.split(key)

    N, C_IN, H, W = 2, 4, 16, 16
    C_OUT = 3  # != 1  ->  Softmax(dim=1) branch

    x = jax.random.normal(k_x, (N, C_IN, H, W), jnp.float32)
    params = init_unet_params(k_p, C_IN, C_OUT)

    out = jax.block_until_ready(unet_forward(x, params, C_OUT))
    ref = jax.block_until_ready(unet_reference(x, params, C_OUT))

    assert out.shape == (N, C_OUT, H, W), out.shape
    # Tolerance relaxed vs. f32 reference because the MXU matmuls use bf16
    # inputs (f32 accumulation); post-softmax error is ~1e-3 level.
    err = float(jnp.max(jnp.abs(out - ref)))
    assert jnp.allclose(out, ref, atol=2e-2, rtol=0.0), err
    print("KERNEL_OK")
</pallas_src>

<mosaic_0001>
module attributes {stable_mosaic.version = 11 : i64} {
  func.func @_unet_fused_kernel(%arg0: i32, %arg1: memref<1x16x16x4xf32, #tpu.memory_space<vmem>>, %arg2: memref<36x64xbf16, #tpu.memory_space<vmem>>, %arg3: memref<1x64xf32, #tpu.memory_space<vmem>>, %arg4: memref<576x64xbf16, #tpu.memory_space<vmem>>, %arg5: memref<1x64xf32, #tpu.memory_space<vmem>>, %arg6: memref<576x3xbf16, #tpu.memory_space<vmem>>, %arg7: memref<1x3xf32, #tpu.memory_space<vmem>>, %arg8: memref<1x256x3xf32, #tpu.memory_space<vmem>>, %arg9: memref<18x18x4xf32, #tpu.memory_space<vmem>>, %arg10: memref<18x18x64xf32, #tpu.memory_space<vmem>>, %arg11: memref<18x18x64xf32, #tpu.memory_space<vmem>>) attributes {dimension_semantics = [#tpu.dimension_semantics<parallel>], iteration_bounds = array<i64: 2>, scalar_prefetch = 0 : i64, scratch_operands = 3 : i64, tpu.core_type = #tpu.core_type<tc>, window_params = [{transform_indices = @transform_0, window_bounds = array<i64: 1, 16, 16, 4>}, {pipeline_mode = #tpu.pipeline_mode<synchronous>, transform_indices = @transform_1, window_bounds = array<i64: 36, 64>}, {pipeline_mode = #tpu.pipeline_mode<synchronous>, transform_indices = @transform_2, window_bounds = array<i64: 1, 64>}, {pipeline_mode = #tpu.pipeline_mode<synchronous>, transform_indices = @transform_3, window_bounds = array<i64: 576, 64>}, {pipeline_mode = #tpu.pipeline_mode<synchronous>, transform_indices = @transform_4, window_bounds = array<i64: 1, 64>}, {pipeline_mode = #tpu.pipeline_mode<synchronous>, transform_indices = @transform_5, window_bounds = array<i64: 576, 3>}, {pipeline_mode = #tpu.pipeline_mode<synchronous>, transform_indices = @transform_6, window_bounds = array<i64: 1, 3>}, {transform_indices = @transform_7, window_bounds = array<i64: 1, 256, 3>}]} {
    %cst = arith.constant 0.000000e+00 : f32
    %0 = vector.broadcast %cst : f32 to vector<18x18x4xf32>
    %c0 = arith.constant 0 : index
    %c0_0 = arith.constant 0 : index
    %c0_1 = arith.constant 0 : index
    %1 = vector.load %arg9[%c0, %c0_0, %c0_1] : memref<18x18x4xf32, #tpu.memory_space<vmem>>, vector<18x18x4xf32>
    tpu.vector_store %arg9[%c0, %c0_0, %c0_1], %0 {strides = array<i32>} : memref<18x18x4xf32, #tpu.memory_space<vmem>>, vector<18x18x4xf32>,
    %cst_2 = arith.constant 0.000000e+00 : f32
    %2 = vector.broadcast %cst_2 : f32 to vector<18x18x64xf32>
    %c0_3 = arith.constant 0 : index
    %c0_4 = arith.constant 0 : index
    %c0_5 = arith.constant 0 : index
    %3 = vector.load %arg10[%c0_3, %c0_4, %c0_5] : memref<18x18x64xf32, #tpu.memory_space<vmem>>, vector<18x18x64xf32>
    tpu.vector_store %arg10[%c0_3, %c0_4, %c0_5], %2 {strides = array<i32>} : memref<18x18x64xf32, #tpu.memory_space<vmem>>, vector<18x18x64xf32>,
    %cst_6 = arith.constant 0.000000e+00 : f32
    %4 = vector.broadcast %cst_6 : f32 to vector<18x18x64xf32>
    %c0_7 = arith.constant 0 : index
    %c0_8 = arith.constant 0 : index
    %c0_9 = arith.constant 0 : index
    %5 = vector.load %arg11[%c0_7, %c0_8, %c0_9] : memref<18x18x64xf32, #tpu.memory_space<vmem>>, vector<18x18x64xf32>
    tpu.vector_store %arg11[%c0_7, %c0_8, %c0_9], %4 {strides = array<i32>} : memref<18x18x64xf32, #tpu.memory_space<vmem>>, vector<18x18x64xf32>,
    %c0_10 = arith.constant 0 : index
    %c0_11 = arith.constant 0 : index
    %c0_12 = arith.constant 0 : index
    %c0_13 = arith.constant 0 : index
    %6 = vector.load %arg1[%c0_10, %c0_11, %c0_12, %c0_13] : memref<1x16x16x4xf32, #tpu.memory_space<vmem>>, vector<1x16x16x4xf32>
    %7 = vector.shape_cast %6 : vector<1x16x16x4xf32> to vector<16x16x4xf32>
    %c1 = arith.constant 1 : index
    %c1_14 = arith.constant 1 : index
    %c0_15 = arith.constant 0 : index
    %8 = vector.load %arg9[%c1, %c1_14, %c0_15] : memref<18x18x4xf32, #tpu.memory_space<vmem>>, vector<16x16x4xf32>
    tpu.vector_store %arg9[%c1, %c1_14, %c0_15], %7 {strides = array<i32>} : memref<18x18x4xf32, #tpu.memory_space<vmem>>, vector<16x16x4xf32>,
    %c0_16 = arith.constant 0 : index
    %c0_17 = arith.constant 0 : index
    %c0_18 = arith.constant 0 : index
    %9 = vector.load %arg9[%c0_16, %c0_17, %c0_18] : memref<18x18x4xf32, #tpu.memory_space<vmem>>, vector<16x16x4xf32>
    %10 = vector.shape_cast %9 : vector<16x16x4xf32> to vector<256x4xf32>
    %c0_19 = arith.constant 0 : index
    %c1_20 = arith.constant 1 : index
    %c0_21 = arith.constant 0 : index
    %11 = vector.load %arg9[%c0_19, %c1_20, %c0_21] : memref<18x18x4xf32, #tpu.memory_space<vmem>>, vector<16x16x4xf32>
    %12 = vector.shape_cast %11 : vector<16x16x4xf32> to vector<256x4xf32>
    %c0_22 = arith.constant 0 : index
    %c2 = arith.constant 2 : index
    %c0_23 = arith.constant 0 : index
    %13 = vector.load %arg9[%c0_22, %c2, %c0_23] : memref<18x18x4xf32, #tpu.memory_space<vmem>>, vector<16x16x4xf32>
    %14 = vector.shape_cast %13 : vector<16x16x4xf32> to vector<256x4xf32>
    %c1_24 = arith.constant 1 : index
    %c0_25 = arith.constant 0 : index
    %c0_26 = arith.constant 0 : index
    %15 = vector.load %arg9[%c1_24, %c0_25, %c0_26] : memref<18x18x4xf32, #tpu.memory_space<vmem>>, vector<16x16x4xf32>
    %16 = vector.shape_cast %15 : vector<16x16x4xf32> to vector<256x4xf32>
    %c1_27 = arith.constant 1 : index
    %c1_28 = arith.constant 1 : index
    %c0_29 = arith.constant 0 : index
    %17 = vector.load %arg9[%c1_27, %c1_28, %c0_29] : memref<18x18x4xf32, #tpu.memory_space<vmem>>, vector<16x16x4xf32>
    %18 = vector.shape_cast %17 : vector<16x16x4xf32> to vector<256x4xf32>
    %c1_30 = arith.constant 1 : index
    %c2_31 = arith.constant 2 : index
    %c0_32 = arith.constant 0 : index
    %19 = vector.load %arg9[%c1_30, %c2_31, %c0_32] : memref<18x18x4xf32, #tpu.memory_space<vmem>>, vector<16x16x4xf32>
    %20 = vector.shape_cast %19 : vector<16x16x4xf32> to vector<256x4xf32>
    %c2_33 = arith.constant 2 : index
    %c0_34 = arith.constant 0 : index
    %c0_35 = arith.constant 0 : index
    %21 = vector.load %arg9[%c2_33, %c0_34, %c0_35] : memref<18x18x4xf32, #tpu.memory_space<vmem>>, vector<16x16x4xf32>
    %22 = vector.shape_cast %21 : vector<16x16x4xf32> to vector<256x4xf32>
    %c2_36 = arith.constant 2 : index
    %c1_37 = arith.constant 1 : index
    %c0_38 = arith.constant 0 : index
    %23 = vector.load %arg9[%c2_36, %c1_37, %c0_38] : memref<18x18x4xf32, #tpu.memory_space<vmem>>, vector<16x16x4xf32>
    %24 = vector.shape_cast %23 : vector<16x16x4xf32> to vector<256x4xf32>
    %c2_39 = arith.constant 2 : index
    %c2_40 = arith.constant 2 : index
    %c0_41 = arith.constant 0 : index
    %25 = vector.load %arg9[%c2_39, %c2_40, %c0_41] : memref<18x18x4xf32, #tpu.memory_space<vmem>>, vector<16x16x4xf32>
    %26 = vector.shape_cast %25 : vector<16x16x4xf32> to vector<256x4xf32>
    %27 = tpu.concatenate %10, %12, %14, %16, %18, %20, %22, %24, %26 in 1 : vector<256x4xf32>, vector<256x4xf32>, vector<256x4xf32>, vector<256x4xf32>, vector<256x4xf32>, vector<256x4xf32>, vector<256x4xf32>, vector<256x4xf32>, vector<256x4xf32> -> vector<256x36xf32>
    %28 = arith.truncf %27 : vector<256x36xf32> to vector<256x36xbf16>
    %c0_42 = arith.constant 0 : index
    %c0_43 = arith.constant 0 : index
    %29 = vector.load %arg2[%c0_42, %c0_43] : memref<36x64xbf16, #tpu.memory_space<vmem>>, vector<36x64xbf16>
    %cst_44 = arith.constant dense<0.000000e+00> : vector<256x64xf32>
    %30 = tpu.matmul %28, %29, %cst_44 {dimension_numbers = #tpu.dot_dimension_numbers<[1], [0], [0], [1], [0, 0, 1, 1], [], []>} : vector<256x36xbf16>, vector<36x64xbf16>, vector<256x64xf32> -> vector<256x64xf32>
    %c0_45 = arith.constant 0 : index
    %c0_46 = arith.constant 0 : index
    %31 = vector.load %arg3[%c0_45, %c0_46] : memref<1x64xf32, #tpu.memory_space<vmem>>, vector<1x64xf32>
    %32 = vector.broadcast %31 : vector<1x64xf32> to vector<256x64xf32>
    %33 = arith.addf %30, %32 : vector<256x64xf32>
    %cst_47 = arith.constant 0.000000e+00 : f32
    %34 = vector.broadcast %cst_47 : f32 to vector<256x64xf32>
    %35 = arith.maximumf %33, %34 : vector<256x64xf32>
    %36 = vector.shape_cast %35 : vector<256x64xf32> to vector<16x16x64xf32>
    %c1_48 = arith.constant 1 : index
    %c1_49 = arith.constant 1 : index
    %c0_50 = arith.constant 0 : index
    %37 = vector.load %arg10[%c1_48, %c1_49, %c0_50] : memref<18x18x64xf32, #tpu.memory_space<vmem>>, vector<16x16x64xf32>
    tpu.vector_store %arg10[%c1_48, %c1_49, %c0_50], %36 {strides = array<i32>} : memref<18x18x64xf32, #tpu.memory_space<vmem>>, vector<16x16x64xf32>,
    %c0_51 = arith.constant 0 : index
    %c0_52 = arith.constant 0 : index
    %c0_53 = arith.constant 0 : index
    %38 = vector.load %arg10[%c0_51, %c0_52, %c0_53] : memref<18x18x64xf32, #tpu.memory_space<vmem>>, vector<16x16x64xf32>
    %39 = vector.shape_cast %38 : vector<16x16x64xf32> to vector<256x64xf32>
    %c0_54 = arith.constant 0 : index
    %c1_55 = arith.constant 1 : index
    %c0_56 = arith.constant 0 : index
    %40 = vector.load %arg10[%c0_54, %c1_55, %c0_56] : memref<18x18x64xf32, #tpu.memory_space<vmem>>, vector<16x16x64xf32>
    %41 = vector.shape_cast %40 : vector<16x16x64xf32> to vector<256x64xf32>
    %c0_57 = arith.constant 0 : index
    %c2_58 = arith.constant 2 : index
    %c0_59 = arith.constant 0 : index
    %42 = vector.load %arg10[%c0_57, %c2_58, %c0_59] : memref<18x18x64xf32, #tpu.memory_space<vmem>>, vector<16x16x64xf32>
    %43 = vector.shape_cast %42 : vector<16x16x64xf32> to vector<256x64xf32>
    %c1_60 = arith.constant 1 : index
    %c0_61 = arith.constant 0 : index
    %c0_62 = arith.constant 0 : index
    %44 = vector.load %arg10[%c1_60, %c0_61, %c0_62] : memref<18x18x64xf32, #tpu.memory_space<vmem>>, vector<16x16x64xf32>
    %45 = vector.shape_cast %44 : vector<16x16x64xf32> to vector<256x64xf32>
    %c1_63 = arith.constant 1 : index
    %c1_64 = arith.constant 1 : index
    %c0_65 = arith.constant 0 : index
    %46 = vector.load %arg10[%c1_63, %c1_64, %c0_65] : memref<18x18x64xf32, #tpu.memory_space<vmem>>, vector<16x16x64xf32>
    %47 = vector.shape_cast %46 : vector<16x16x64xf32> to vector<256x64xf32>
    %c1_66 = arith.constant 1 : index
    %c2_67 = arith.constant 2 : index
    %c0_68 = arith.constant 0 : index
    %48 = vector.load %arg10[%c1_66, %c2_67, %c0_68] : memref<18x18x64xf32, #tpu.memory_space<vmem>>, vector<16x16x64xf32>
    %49 = vector.shape_cast %48 : vector<16x16x64xf32> to vector<256x64xf32>
    %c2_69 = arith.constant 2 : index
    %c0_70 = arith.constant 0 : index
    %c0_71 = arith.constant 0 : index
    %50 = vector.load %arg10[%c2_69, %c0_70, %c0_71] : memref<18x18x64xf32, #tpu.memory_space<vmem>>, vector<16x16x64xf32>
    %51 = vector.shape_cast %50 : vector<16x16x64xf32> to vector<256x64xf32>
    %c2_72 = arith.constant 2 : index
    %c1_73 = arith.constant 1 : index
    %c0_74 = arith.constant 0 : index
    %52 = vector.load %arg10[%c2_72, %c1_73, %c0_74] : memref<18x18x64xf32, #tpu.memory_space<vmem>>, vector<16x16x64xf32>
    %53 = vector.shape_cast %52 : vector<16x16x64xf32> to vector<256x64xf32>
    %c2_75 = arith.constant 2 : index
    %c2_76 = arith.constant 2 : index
    %c0_77 = arith.constant 0 : index
    %54 = vector.load %arg10[%c2_75, %c2_76, %c0_77] : memref<18x18x64xf32, #tpu.memory_space<vmem>>, vector<16x16x64xf32>
    %55 = vector.shape_cast %54 : vector<16x16x64xf32> to vector<256x64xf32>
    %56 = tpu.concatenate %39, %41, %43, %45, %47, %49, %51, %53, %55 in 1 : vector<256x64xf32>, vector<256x64xf32>, vector<256x64xf32>, vector<256x64xf32>, vector<256x64xf32>, vector<256x64xf32>, vector<256x64xf32>, vector<256x64xf32>, vector<256x64xf32> -> vector<256x576xf32>
    %57 = arith.truncf %56 : vector<256x576xf32> to vector<256x576xbf16>
    %c0_78 = arith.constant 0 : index
    %c0_79 = arith.constant 0 : index
    %58 = vector.load %arg4[%c0_78, %c0_79] : memref<576x64xbf16, #tpu.memory_space<vmem>>, vector<576x64xbf16>
    %cst_80 = arith.constant dense<0.000000e+00> : vector<256x64xf32>
    %59 = tpu.matmul %57, %58, %cst_80 {dimension_numbers = #tpu.dot_dimension_numbers<[1], [0], [0], [1], [0, 0, 1, 1], [], []>} : vector<256x576xbf16>, vector<576x64xbf16>, vector<256x64xf32> -> vector<256x64xf32>
    %c0_81 = arith.constant 0 : index
    %c0_82 = arith.constant 0 : index
    %60 = vector.load %arg5[%c0_81, %c0_82] : memref<1x64xf32, #tpu.memory_space<vmem>>, vector<1x64xf32>
    %61 = vector.broadcast %60 : vector<1x64xf32> to vector<256x64xf32>
    %62 = arith.addf %59, %61 : vector<256x64xf32>
    %cst_83 = arith.constant 0.000000e+00 : f32
    %63 = vector.broadcast %cst_83 : f32 to vector<256x64xf32>
    %64 = arith.maximumf %62, %63 : vector<256x64xf32>
    %65 = vector.shape_cast %64 : vector<256x64xf32> to vector<16x16x64xf32>
    %c1_84 = arith.constant 1 : index
    %c1_85 = arith.constant 1 : index
    %c0_86 = arith.constant 0 : index
    %66 = vector.load %arg11[%c1_84, %c1_85, %c0_86] : memref<18x18x64xf32, #tpu.memory_space<vmem>>, vector<16x16x64xf32>
    tpu.vector_store %arg11[%c1_84, %c1_85, %c0_86], %65 {strides = array<i32>} : memref<18x18x64xf32, #tpu.memory_space<vmem>>, vector<16x16x64xf32>,
    %c0_87 = arith.constant 0 : index
    %c0_88 = arith.constant 0 : index
    %c0_89 = arith.constant 0 : index
    %67 = vector.load %arg11[%c0_87, %c0_88, %c0_89] : memref<18x18x64xf32, #tpu.memory_space<vmem>>, vector<16x16x64xf32>
    %68 = vector.shape_cast %67 : vector<16x16x64xf32> to vector<256x64xf32>
    %c0_90 = arith.constant 0 : index
    %c1_91 = arith.constant 1 : index
    %c0_92 = arith.constant 0 : index
    %69 = vector.load %arg11[%c0_90, %c1_91, %c0_92] : memref<18x18x64xf32, #tpu.memory_space<vmem>>, vector<16x16x64xf32>
    %70 = vector.shape_cast %69 : vector<16x16x64xf32> to vector<256x64xf32>
    %c0_93 = arith.constant 0 : index
    %c2_94 = arith.constant 2 : index
    %c0_95 = arith.constant 0 : index
    %71 = vector.load %arg11[%c0_93, %c2_94, %c0_95] : memref<18x18x64xf32, #tpu.memory_space<vmem>>, vector<16x16x64xf32>
    %72 = vector.shape_cast %71 : vector<16x16x64xf32> to vector<256x64xf32>
    %c1_96 = arith.constant 1 : index
    %c0_97 = arith.constant 0 : index
    %c0_98 = arith.constant 0 : index
    %73 = vector.load %arg11[%c1_96, %c0_97, %c0_98] : memref<18x18x64xf32, #tpu.memory_space<vmem>>, vector<16x16x64xf32>
    %74 = vector.shape_cast %73 : vector<16x16x64xf32> to vector<256x64xf32>
    %c1_99 = arith.constant 1 : index
    %c1_100 = arith.constant 1 : index
    %c0_101 = arith.constant 0 : index
    %75 = vector.load %arg11[%c1_99, %c1_100, %c0_101] : memref<18x18x64xf32, #tpu.memory_space<vmem>>, vector<16x16x64xf32>
    %76 = vector.shape_cast %75 : vector<16x16x64xf32> to vector<256x64xf32>
    %c1_102 = arith.constant 1 : index
    %c2_103 = arith.constant 2 : index
    %c0_104 = arith.constant 0 : index
    %77 = vector.load %arg11[%c1_102, %c2_103, %c0_104] : memref<18x18x64xf32, #tpu.memory_space<vmem>>, vector<16x16x64xf32>
    %78 = vector.shape_cast %77 : vector<16x16x64xf32> to vector<256x64xf32>
    %c2_105 = arith.constant 2 : index
    %c0_106 = arith.constant 0 : index
    %c0_107 = arith.constant 0 : index
    %79 = vector.load %arg11[%c2_105, %c0_106, %c0_107] : memref<18x18x64xf32, #tpu.memory_space<vmem>>, vector<16x16x64xf32>
    %80 = vector.shape_cast %79 : vector<16x16x64xf32> to vector<256x64xf32>
    %c2_108 = arith.constant 2 : index
    %c1_109 = arith.constant 1 : index
    %c0_110 = arith.constant 0 : index
    %81 = vector.load %arg11[%c2_108, %c1_109, %c0_110] : memref<18x18x64xf32, #tpu.memory_space<vmem>>, vector<16x16x64xf32>
    %82 = vector.shape_cast %81 : vector<16x16x64xf32> to vector<256x64xf32>
    %c2_111 = arith.constant 2 : index
    %c2_112 = arith.constant 2 : index
    %c0_113 = arith.constant 0 : index
    %83 = vector.load %arg11[%c2_111, %c2_112, %c0_113] : memref<18x18x64xf32, #tpu.memory_space<vmem>>, vector<16x16x64xf32>
    %84 = vector.shape_cast %83 : vector<16x16x64xf32> to vector<256x64xf32>
    %85 = tpu.concatenate %68, %70, %72, %74, %76, %78, %80, %82, %84 in 1 : vector<256x64xf32>, vector<256x64xf32>, vector<256x64xf32>, vector<256x64xf32>, vector<256x64xf32>, vector<256x64xf32>, vector<256x64xf32>, vector<256x64xf32>, vector<256x64xf32> -> vector<256x576xf32>
    %86 = arith.truncf %85 : vector<256x576xf32> to vector<256x576xbf16>
    %c0_114 = arith.constant 0 : index
    %c0_115 = arith.constant 0 : index
    %87 = vector.load %arg6[%c0_114, %c0_115] : memref<576x3xbf16, #tpu.memory_space<vmem>>, vector<576x3xbf16>
    %cst_116 = arith.constant dense<0.000000e+00> : vector<256x3xf32>
    %88 = tpu.matmul %86, %87, %cst_116 {dimension_numbers = #tpu.dot_dimension_numbers<[1], [0], [0], [1], [0, 0, 1, 1], [], []>} : vector<256x576xbf16>, vector<576x3xbf16>, vector<256x3xf32> -> vector<256x3xf32>
    %c0_117 = arith.constant 0 : index
    %c0_118 = arith.constant 0 : index
    %89 = vector.load %arg7[%c0_117, %c0_118] : memref<1x3xf32, #tpu.memory_space<vmem>>, vector<1x3xf32>
    %90 = vector.broadcast %89 : vector<1x3xf32> to vector<256x3xf32>
    %91 = arith.addf %88, %90 : vector<256x3xf32>
    %cst_119 = arith.constant dense<0xFF800000> : vector<256xf32>
    %92 = vector.multi_reduction <maximumf>, %91, %cst_119 [1] : vector<256x3xf32> to vector<256xf32>
    %93 = vector.shape_cast %92 : vector<256xf32> to vector<256x1xf32>
    %94 = vector.broadcast %93 : vector<256x1xf32> to vector<256x3xf32>
    %95 = arith.subf %91, %94 : vector<256x3xf32>
    %96 = math.exp %95 : vector<256x3xf32>
    %cst_120 = arith.constant dense<0.000000e+00> : vector<256xf32>
    %97 = vector.multi_reduction <add>, %96, %cst_120 [1] : vector<256x3xf32> to vector<256xf32>
    %98 = vector.shape_cast %97 : vector<256xf32> to vector<256x1xf32>
    %99 = tpu.reciprocal %98 : vector<256x1xf32> -> vector<256x1xf32>
    %100 = vector.broadcast %99 : vector<256x1xf32> to vector<256x3xf32>
    %101 = arith.mulf %96, %100 : vector<256x3xf32>
    %102 = vector.shape_cast %101 : vector<256x3xf32> to vector<1x256x3xf32>
    %c0_121 = arith.constant 0 : index
    %c0_122 = arith.constant 0 : index
    %c0_123 = arith.constant 0 : index
    %103 = vector.load %arg8[%c0_121, %c0_122, %c0_123] : memref<1x256x3xf32, #tpu.memory_space<vmem>>, vector<1x256x3xf32>
    tpu.vector_store %arg8[%c0_121, %c0_122, %c0_123], %102 {strides = array<i32>} : memref<1x256x3xf32, #tpu.memory_space<vmem>>, vector<1x256x3xf32>,
    return
  }
  func.func @transform_0(%arg0: i32) -> (i32, i32, i32, i32) {
    %c0_i32 = arith.constant 0 : i32
    %c0_i32_0 = arith.constant 0 : i32
    %c0_i32_1 = arith.constant 0 : i32
    %c0_i32_2 = arith.constant 0 : i32
    return %arg0, %c0_i32, %c0_i32_0, %c0_i32_1 : i32, i32, i32, i32
  }
  func.func @transform_1(%arg0: i32) -> (i32, i32) {
    %c0_i32 = arith.constant 0 : i32
    %c0_i32_0 = arith.constant 0 : i32
    %c0_i32_1 = arith.constant 0 : i32
    return %c0_i32, %c0_i32_0 : i32, i32
  }
  func.func @transform_2(%arg0: i32) -> (i32, i32) {
    %c0_i32 = arith.constant 0 : i32
    %c0_i32_0 = arith.constant 0 : i32
    %c0_i32_1 = arith.constant 0 : i32
    return %c0_i32, %c0_i32_0 : i32, i32
  }
  func.func @transform_3(%arg0: i32) -> (i32, i32) {
    %c0_i32 = arith.constant 0 : i32
    %c0_i32_0 = arith.constant 0 : i32
    %c0_i32_1 = arith.constant 0 : i32
    return %c0_i32, %c0_i32_0 : i32, i32
  }
  func.func @transform_4(%arg0: i32) -> (i32, i32) {
    %c0_i32 = arith.constant 0 : i32
    %c0_i32_0 = arith.constant 0 : i32
    %c0_i32_1 = arith.constant 0 : i32
    return %c0_i32, %c0_i32_0 : i32, i32
  }
  func.func @transform_5(%arg0: i32) -> (i32, i32) {
    %c0_i32 = arith.constant 0 : i32
    %c0_i32_0 = arith.constant 0 : i32
    %c0_i32_1 = arith.constant 0 : i32
    return %c0_i32, %c0_i32_0 : i32, i32
  }
  func.func @transform_6(%arg0: i32) -> (i32, i32) {
    %c0_i32 = arith.constant 0 : i32
    %c0_i32_0 = arith.constant 0 : i32
    %c0_i32_1 = arith.constant 0 : i32
    return %c0_i32, %c0_i32_0 : i32, i32
  }
  func.func @transform_7(%arg0: i32) -> (i32, i32, i32) {
    %c0_i32 = arith.constant 0 : i32
    %c0_i32_0 = arith.constant 0 : i32
    %c0_i32_1 = arith.constant 0 : i32
    return %arg0, %c0_i32, %c0_i32_0 : i32, i32, i32
  }
}

</mosaic_0001>

<llo_original>
// kernel: tpu_custom_call.1
$region0: #{tpu_custom_call.1}
  #allocation0 [shape = 'u32[]', space=smem, size = 0x4, offset = 0x4, fixed_abs, tag = 'smem constant byte address 0x4 - core index']
  #allocation1 [shape = 'u32[144,128]{1,0:T(1,128)}', space=vmem, size = 0x12000, scoped, tag = 'internal scratch']
  #allocation2 [shape = 'f32[18,18,4]{2,1,0:T(8,128)}', space=vmem, size = 0x36000, scoped, tag = 'scratch operand']
  #allocation3 [shape = 'f32[18,18,64]{2,1,0:T(8,128)}', space=vmem, size = 0x36000, scoped, tag = 'scratch operand']
  #allocation4 [shape = 'f32[18,18,64]{2,1,0:T(8,128)}', space=vmem, size = 0x36000, scoped, tag = 'scratch operand']
  %s0 = inlined_call_operand.vmem [shape: f32[2,16,16,4], index: 0, kind: input, shape index: {}]
  %s1 = inlined_call_operand.vmem [shape: bf16[36,64], index: 1, kind: input, shape index: {}]
  %s2 = inlined_call_operand.vmem [shape: f32[1,64], index: 2, kind: input, shape index: {}]
  %s3 = inlined_call_operand.vmem [shape: bf16[576,64], index: 3, kind: input, shape index: {}]
  %s4 = inlined_call_operand.vmem [shape: f32[1,64], index: 4, kind: input, shape index: {}]
  %s5 = inlined_call_operand.vmem [shape: bf16[576,3], index: 5, kind: input, shape index: {}]
  %s6 = inlined_call_operand.vmem [shape: f32[1,3], index: 6, kind: input, shape index: {}]
  %s7 = inlined_call_operand.vmem [shape: f32[2,256,3], index: 7, kind: output, shape index: {}]
  %s8 = sld [smem:[#allocation0]]
  $region61: #{tpu_custom_call.1} parent=0
    _
  %s10 = ssub.s32 1, %s8
  %s11 = scalar_select 0, %s10, %s8
  loop: start=0, step=1, limit=4
  $region2: #{tpu_custom_call.1} parent=0 // loop_pre_header
    _
  $region3: #{tpu_custom_call.1} parent=0 // loop_header
    %s13 = sphi 0, %s17
    %p14 = scmp.ge.s32.totalorder %s13, 4
    %s23 = sphi 0, %s25
    %s26 = sphi 0, %s23
    %s27 = sphi 0, %s26
    %s43 = sphi 0, %s27
    %s47 = sphi 0, %s47
    %s49 = sphi 0, %s47
    %s50 = sphi 0, %s49
    %s64 = sphi 0, %s50
    %s68 = sphi 0, %s68
    %s70 = sphi 0, %s68
    %s71 = sphi 0, %s70
    %s85 = sphi 0, %s71
    %s89 = sphi 0, %s89
    %s91 = sphi 0, %s89
    %s92 = sphi 0, %s91
    %s106 = sphi 0, %s92
    %s110 = sphi 0, %s110
    %s112 = sphi 0, %s110
    %s113 = sphi 0, %s112
    %s127 = sphi 0, %s113
    %s131 = sphi 0, %s131
    %s133 = sphi 0, %s131
    %s134 = sphi 0, %s133
    %s148 = sphi 0, %s134
    %s152 = sphi 0, %s152
    %s154 = sphi 0, %s152
    %s155 = sphi 0, %s154
    %s169 = sphi 0, %s155
    %s175 = sphi 0, %s177
    %s178 = sphi 0, %s175
    %s179 = sphi 0, %s178
    %s195 = sphi 0, %s179
  $region4: #{tpu_custom_call.1} parent=0 // loop_header_branch
    %16 = sbr.rel (%p14) target = $region8
  $region5: #{tpu_custom_call.1} parent=0 // loop_body
    %s18 = ssub.s32 %s13, 1
    %s19 = ssub.s32 %s13, 2
    %s20 = sadd.s32 %s13, 1
    %s21 = ssub.s32 %s13, %s20
    %p22 = scmp.eq.s32.totalorder %s21, 0
    %s24 = sadd.s32 %s23, 1
    %s25 = scalar_select %p22, %s23, %s24
    %p28 = pneg %p22
    %p29 = scmp.eq.s32.totalorder %s13, 1
    %p30 = por %p28, %p29
    %p31 = scmp.ne.s32.totalorder %s23, %s26
    %p32 = scmp.eq.s32.totalorder %s13, 0
    %p33 = por %p31, %p32
    %p34 = scmp.ne.s32.totalorder %s23, %s26
    %p35 = scmp.eq.s32.totalorder %s18, 1
    %p36 = por %p34, %p35
    %p37 = scmp.ne.s32.totalorder %s26, %s27
    %p38 = scmp.eq.s32.totalorder %s18, 0
    %p39 = por %p37, %p38
    %p40 = scmp.ne.s32.totalorder %s26, %s27
    %p41 = scmp.eq.s32.totalorder %s19, 1
    %p42 = por %p40, %p41
    %p44 = scmp.ne.s32.totalorder %s27, %s43
    %p45 = scmp.eq.s32.totalorder %s19, 0
    %p46 = por %p44, %p45
    %s48 = sadd.s32 %s47, 1
    %p51 = scmp.eq.s32.totalorder %s13, 1
    %p52 = scmp.ne.s32.totalorder %s47, %s49
    %p53 = scmp.eq.s32.totalorder %s13, 0
    %p54 = por %p52, %p53
    %p55 = scmp.ne.s32.totalorder %s47, %s49
    %p56 = scmp.eq.s32.totalorder %s18, 1
    %p57 = por %p55, %p56
    %p58 = scmp.ne.s32.totalorder %s49, %s50
    %p59 = scmp.eq.s32.totalorder %s18, 0
    %p60 = por %p58, %p59
    %p61 = scmp.ne.s32.totalorder %s49, %s50
    %p62 = scmp.eq.s32.totalorder %s19, 1
    %p63 = por %p61, %p62
    %p65 = scmp.ne.s32.totalorder %s50, %s64
    %p66 = scmp.eq.s32.totalorder %s19, 0
    %p67 = por %p65, %p66
    %s69 = sadd.s32 %s68, 1
    %p72 = scmp.eq.s32.totalorder %s13, 1
    %p73 = scmp.ne.s32.totalorder %s68, %s70
    %p74 = scmp.eq.s32.totalorder %s13, 0
    %p75 = por %p73, %p74
    %p76 = scmp.ne.s32.totalorder %s68, %s70
    %p77 = scmp.eq.s32.totalorder %s18, 1
    %p78 = por %p76, %p77
    %p79 = scmp.ne.s32.totalorder %s70, %s71
    %p80 = scmp.eq.s32.totalorder %s18, 0
    %p81 = por %p79, %p80
    %p82 = scmp.ne.s32.totalorder %s70, %s71
    %p83 = scmp.eq.s32.totalorder %s19, 1
    %p84 = por %p82, %p83
    %p86 = scmp.ne.s32.totalorder %s71, %s85
    %p87 = scmp.eq.s32.totalorder %s19, 0
    %p88 = por %p86, %p87
    %s90 = sadd.s32 %s89, 1
    %p93 = scmp.eq.s32.totalorder %s13, 1
    %p94 = scmp.ne.s32.totalorder %s89, %s91
    %p95 = scmp.eq.s32.totalorder %s13, 0
    %p96 = por %p94, %p95
    %p97 = scmp.ne.s32.totalorder %s89, %s91
    %p98 = scmp.eq.s32.totalorder %s18, 1
    %p99 = por %p97, %p98
    %p100 = scmp.ne.s32.totalorder %s91, %s92
    %p101 = scmp.eq.s32.totalorder %s18, 0
    %p102 = por %p100, %p101
    %p103 = scmp.ne.s32.totalorder %s91, %s92
    %p104 = scmp.eq.s32.totalorder %s19, 1
    %p105 = por %p103, %p104
    %p107 = scmp.ne.s32.totalorder %s92, %s106
    %p108 = scmp.eq.s32.totalorder %s19, 0
    %p109 = por %p107, %p108
    %s111 = sadd.s32 %s110, 1
    %p114 = scmp.eq.s32.totalorder %s13, 1
    %p115 = scmp.ne.s32.totalorder %s110, %s112
    %p116 = scmp.eq.s32.totalorder %s13, 0
    %p117 = por %p115, %p116
    %p118 = scmp.ne.s32.totalorder %s110, %s112
    %p119 = scmp.eq.s32.totalorder %s18, 1
    %p120 = por %p118, %p119
    %p121 = scmp.ne.s32.totalorder %s112, %s113
    %p122 = scmp.eq.s32.totalorder %s18, 0
    %p123 = por %p121, %p122
    %p124 = scmp.ne.s32.totalorder %s112, %s113
    %p125 = scmp.eq.s32.totalorder %s19, 1
    %p126 = por %p124, %p125
    %p128 = scmp.ne.s32.totalorder %s113, %s127
    %p129 = scmp.eq.s32.totalorder %s19, 0
    %p130 = por %p128, %p129
    %s132 = sadd.s32 %s131, 1
    %p135 = scmp.eq.s32.totalorder %s13, 1
    %p136 = scmp.ne.s32.totalorder %s131, %s133
    %p137 = scmp.eq.s32.totalorder %s13, 0
    %p138 = por %p136, %p137
    %p139 = scmp.ne.s32.totalorder %s131, %s133
    %p140 = scmp.eq.s32.totalorder %s18, 1
    %p141 = por %p139, %p140
    %p142 = scmp.ne.s32.totalorder %s133, %s134
    %p143 = scmp.eq.s32.totalorder %s18, 0
    %p144 = por %p142, %p143
    %p145 = scmp.ne.s32.totalorder %s133, %s134
    %p146 = scmp.eq.s32.totalorder %s19, 1
    %p147 = por %p145, %p146
    %p149 = scmp.ne.s32.totalorder %s134, %s148
    %p150 = scmp.eq.s32.totalorder %s19, 0
    %p151 = por %p149, %p150
    %s153 = sadd.s32 %s152, 1
    %p156 = scmp.eq.s32.totalorder %s13, 1
    %p157 = scmp.ne.s32.totalorder %s152, %s154
    %p158 = scmp.eq.s32.totalorder %s13, 0
    %p159 = por %p157, %p158
    %p160 = scmp.ne.s32.totalorder %s152, %s154
    %p161 = scmp.eq.s32.totalorder %s18, 1
    %p162 = por %p160, %p161
    %p163 = scmp.ne.s32.totalorder %s154, %s155
    %p164 = scmp.eq.s32.totalorder %s18, 0
    %p165 = por %p163, %p164
    %p166 = scmp.ne.s32.totalorder %s154, %s155
    %p167 = scmp.eq.s32.totalorder %s19, 1
    %p168 = por %p166, %p167
    %p170 = scmp.ne.s32.totalorder %s155, %s169
    %p171 = scmp.eq.s32.totalorder %s19, 0
    %p172 = por %p170, %p171
    %s173 = ssub.s32 %s13, %s20
    %p174 = scmp.eq.s32.totalorder %s173, 0
    %s176 = sadd.s32 %s175, 1
    %s177 = scalar_select %p174, %s175, %s176
    %p180 = pneg %p174
    %p181 = scmp.eq.s32.totalorder %s13, 1
    %p182 = por %p180, %p181
    %p183 = scmp.ne.s32.totalorder %s175, %s178
    %p184 = scmp.eq.s32.totalorder %s13, 0
    %p185 = por %p183, %p184
    %p186 = scmp.ne.s32.totalorder %s175, %s178
    %p187 = scmp.eq.s32.totalorder %s18, 1
    %p188 = por %p186, %p187
    %p189 = scmp.ne.s32.totalorder %s178, %s179
    %p190 = scmp.eq.s32.totalorder %s18, 0
    %p191 = por %p189, %p190
    %p192 = scmp.ne.s32.totalorder %s178, %s179
    %p193 = scmp.eq.s32.totalorder %s19, 1
    %p194 = por %p192, %p193
    %p196 = scmp.ne.s32.totalorder %s179, %s195
    %p197 = scmp.eq.s32.totalorder %s19, 0
    %p198 = por %p196, %p197
    %p199 = scmp.le.s32.totalorder 1, %s13
    %p200 = scmp.lt.s32.totalorder %s13, 3
    %p201 = pnand %p199, %p200
    %p202 = pneg %p201
    // Predicated region
    $region9: #{tpu_custom_call.1} parent=5 // pred_check
      _
    $region10: #{tpu_custom_call.1} parent=5 // pred_check_branch
      %204 = sbr.rel (%p201) target = $region12
    $region11: #{tpu_custom_call.1} parent=5 // pred_region
      %s205 = ssub.s32 %s13, 1
      // Predicated region
      $region13: #{tpu_custom_call.1} parent=11 // pred_check
        %p206 = pneg %p60
      $region14: #{tpu_custom_call.1} parent=11 // pred_check_branch
        %208 = sbr.rel (%p206) target = $region16
      $region15: #{tpu_custom_call.1} parent=11 // pred_region
        _
      $region16: #{tpu_custom_call.1} parent=11 // pred_fallthru
        _
      // Predicated region
      $region17: #{tpu_custom_call.1} parent=11 // pred_check
        %p209 = pneg %p81
      $region18: #{tpu_custom_call.1} parent=11 // pred_check_branch
        %211 = sbr.rel (%p209) target = $region20
      $region19: #{tpu_custom_call.1} parent=11 // pred_region
        _
      $region20: #{tpu_custom_call.1} parent=11 // pred_fallthru
        _
      // Predicated region
      $region21: #{tpu_custom_call.1} parent=11 // pred_check
        %p212 = pneg %p102
      $region22: #{tpu_custom_call.1} parent=11 // pred_check_branch
        %214 = sbr.rel (%p212) target = $region24
      $region23: #{tpu_custom_call.1} parent=11 // pred_region
        _
      $region24: #{tpu_custom_call.1} parent=11 // pred_fallthru
        _
      // Predicated region
      $region25: #{tpu_custom_call.1} parent=11 // pred_check
        %p215 = pneg %p123
      $region26: #{tpu_custom_call.1} parent=11 // pred_check_branch
        %217 = sbr.rel (%p215) target = $region28
      $region27: #{tpu_custom_call.1} parent=11 // pred_region
        _
      $region28: #{tpu_custom_call.1} parent=11 // pred_fallthru
        _
      // Predicated region
      $region29: #{tpu_custom_call.1} parent=11 // pred_check
        %p218 = pneg %p144
      $region30: #{tpu_custom_call.1} parent=11 // pred_check_branch
        %220 = sbr.rel (%p218) target = $region32
      $region31: #{tpu_custom_call.1} parent=11 // pred_region
        _
      $region32: #{tpu_custom_call.1} parent=11 // pred_fallthru
        _
      // Predicated region
      $region33: #{tpu_custom_call.1} parent=11 // pred_check
        %p221 = pneg %p165
      $region34: #{tpu_custom_call.1} parent=11 // pred_check_branch
        %223 = sbr.rel (%p221) target = $region36
      $region35: #{tpu_custom_call.1} parent=11 // pred_region
        _
      $region36: #{tpu_custom_call.1} parent=11 // pred_fallthru
        _
    $region12: #{tpu_custom_call.1} parent=5 // pred_fallthru
      _
    %p224 = scmp.lt.s32.totalorder %s13, 2
    // Predicated region
    $region37: #{tpu_custom_call.1} parent=5 // pred_check
      %p225 = pneg %p224
    $region38: #{tpu_custom_call.1} parent=5 // pred_check_branch
      %227 = sbr.rel (%p225) target = $region40
    $region39: #{tpu_custom_call.1} parent=5 // pred_region
      // Predicated region
      $region41: #{tpu_custom_call.1} parent=39 // pred_check
        %p228 = pneg %p33
      $region42: #{tpu_custom_call.1} parent=39 // pred_check_branch
        %230 = sbr.rel (%p228) target = $region44
      $region43: #{tpu_custom_call.1} parent=39 // pred_region
        %p231 = scmp.lt.s32.totalorder %s13, 1
        %s232 = scalar_select %p231, %s13, 1
        %s233 = smul.addr %s232, 32
        %s234 = smul.addr %s233, 8
        %s235 = scalar_lea.vmem %s0, %s234
      $region44: #{tpu_custom_call.1} parent=39 // pred_fallthru
        _
    $region40: #{tpu_custom_call.1} parent=5 // pred_fallthru
      _
    %p236 = scmp.le.s32.totalorder 1, %s13
    %p237 = scmp.lt.s32.totalorder %s13, 3
    %p238 = pnand %p236, %p237
    %p239 = pneg %p238
    // Predicated region
    $region45: #{tpu_custom_call.1} parent=5 // pred_check
      _
    $region46: #{tpu_custom_call.1} parent=5 // pred_check_branch
      %241 = sbr.rel (%p238) target = $region48
    $region47: #{tpu_custom_call.1} parent=5 // pred_region
      %s242 = ssub.s32 %s13, 1
      %p243 = scmp.lt.s32.totalorder %s18, 1
      %s244 = scalar_select %p243, %s18, 1
      %s245 = smul.addr %s244, 32
      %s246 = smul.addr %s245, 8
      %s247 = scalar_lea.vmem %s0, %s246
      %p248 = pneg %p39
      %p249 = pneg %p36
      %p250 = pneg %p60
      %p251 = pneg %p57
      %p252 = pneg %p81
      %p253 = pneg %p78
      %p254 = pneg %p102
      %p255 = pneg %p99
      %p256 = pneg %p123
      %p257 = pneg %p120
      %p258 = pneg %p144
      %p259 = pneg %p141
      %p260 = pneg %p165
      %p261 = pneg %p162
      %p262 = pneg %p191
      %p263 = pneg %p188
      %p264 = scmp.lt.s32.totalorder %s18, 1
      %s265 = scalar_select %p264, %s18, 1
      %s266 = smul.addr %s265, 32
      %s267 = smul.addr %s266, 8
      %s268 = scalar_lea.vmem %s7, %s267
      %p269 = scmp.lt.s32.totalorder %s18, 1
      %s270 = scalar_select %p269, %s18, 1
      %s271 = smul.addr %s270, 32
      %s272 = smul.addr %s271, 8
      %s273 = scalar_lea.vmem %s0, %s272
      %p274 = scmp.lt.s32.totalorder %s18, 1
      %s275 = scalar_select %p274, %s18, 1
      %s276 = smul.addr %s275, 32
      %s277 = smul.addr %s276, 8
      %s278 = scalar_lea.vmem %s7, %s277
      %vm280 = vcmask 31744
      %281 = vst.msk [vmem:[#allocation2] sm:$0xff] %vm280, 0.0
      %282 = vst.msk [vmem:[#allocation2 + $0x8] sm:$0xff] %vm280, 0.0
      %vm283 = vcmask 25600
      %284 = vst.msk [vmem:[#allocation2 + $0x10] sm:$0x3] %vm283, 0.0
      %285 = vst.msk [vmem:[#allocation2 + $0x18] sm:$0xff] %vm280, 0.0
      %286 = vst.msk [vmem:[#allocation2 + $0x20] sm:$0xff] %vm280, 0.0
      %287 = vst.msk [vmem:[#allocation2 + $0x28] sm:$0x3] %vm283, 0.0
      %288 = vst.msk [vmem:[#allocation2 + $0x30] sm:$0xff] %vm280, 0.0
      %289 = vst.msk [vmem:[#allocation2 + $0x38] sm:$0xff] %vm280, 0.0
      %290 = vst.msk [vmem:[#allocation2 + $0x40] sm:$0x3] %vm283, 0.0
      %291 = vst.msk [vmem:[#allocation2 + $0x48] sm:$0xff] %vm280, 0.0
      %292 = vst.msk [vmem:[#allocation2 + $0x50] sm:$0xff] %vm280, 0.0
      %293 = vst.msk [vmem:[#allocation2 + $0x58] sm:$0x3] %vm283, 0.0
      %294 = vst.msk [vmem:[#allocation2 + $0x60] sm:$0xff] %vm280, 0.0
      %295 = vst.msk [vmem:[#allocation2 + $0x68] sm:$0xff] %vm280, 0.0
      %296 = vst.msk [vmem:[#allocation2 + $0x70] sm:$0x3] %vm283, 0.0
      %297 = vst.msk [vmem:[#allocation2 + $0x78] sm:$0xff] %vm280, 0.0
      %298 = vst.msk [vmem:[#allocation2 + $0x80] sm:$0xff] %vm280, 0.0
      %299 = vst.msk [vmem:[#allocation2 + $0x88] sm:$0x3] %vm283, 0.0
      %300 = vst.msk [vmem:[#allocation2 + $0x90] sm:$0xff] %vm280, 0.0
      %301 = vst.msk [vmem:[#allocation2 + $0x98] sm:$0xff] %vm280, 0.0
      %302 = vst.msk [vmem:[#allocation2 + $0xa0] sm:$0x3] %vm283, 0.0
      %303 = vst.msk [vmem:[#allocation2 + $0xa8] sm:$0xff] %vm280, 0.0
      %304 = vst.msk [vmem:[#allocation2 + $0xb0] sm:$0xff] %vm280, 0.0
      %305 = vst.msk [vmem:[#allocation2 + $0xb8] sm:$0x3] %vm283, 0.0
      %306 = vst.msk [vmem:[#allocation2 + $0xc0] sm:$0xff] %vm280, 0.0
      %307 = vst.msk [vmem:[#allocation2 + $0xc8] sm:$0xff] %vm280, 0.0
      %308 = vst.msk [vmem:[#allocation2 + $0xd0] sm:$0x3] %vm283, 0.0
      %309 = vst.msk [vmem:[#allocation2 + $0xd8] sm:$0xff] %vm280, 0.0
      %310 = vst.msk [vmem:[#allocation2 + $0xe0] sm:$0xff] %vm280, 0.0
      %311 = vst.msk [vmem:[#allocation2 + $0xe8] sm:$0x3] %vm283, 0.0
      %312 = vst.msk [vmem:[#allocation2 + $0xf0] sm:$0xff] %vm280, 0.0
      %313 = vst.msk [vmem:[#allocation2 + $0xf8] sm:$0xff] %vm280, 0.0
      %314 = vst.msk [vmem:[#allocation2 + $0x100] sm:$0x3] %vm283, 0.0
      %315 = vst.msk [vmem:[#allocation2 + $0x108] sm:$0xff] %vm280, 0.0
      %316 = vst.msk [vmem:[#allocation2 + $0x110] sm:$0xff] %vm280, 0.0
      %317 = vst.msk [vmem:[#allocation2 + $0x118] sm:$0x3] %vm283, 0.0
      %318 = vst.msk [vmem:[#allocation2 + $0x120] sm:$0xff] %vm280, 0.0
      %319 = vst.msk [vmem:[#allocation2 + $0x128] sm:$0xff] %vm280, 0.0
      %320 = vst.msk [vmem:[#allocation2 + $0x130] sm:$0x3] %vm283, 0.0
      %321 = vst.msk [vmem:[#allocation2 + $0x138] sm:$0xff] %vm280, 0.0
      %322 = vst.msk [vmem:[#allocation2 + $0x140] sm:$0xff] %vm280, 0.0
      %323 = vst.msk [vmem:[#allocation2 + $0x148] sm:$0x3] %vm283, 0.0
      %324 = vst.msk [vmem:[#allocation2 + $0x150] sm:$0xff] %vm280, 0.0
      %325 = vst.msk [vmem:[#allocation2 + $0x158] sm:$0xff] %vm280, 0.0
      %326 = vst.msk [vmem:[#allocation2 + $0x160] sm:$0x3] %vm283, 0.0
      %327 = vst.msk [vmem:[#allocation2 + $0x168] sm:$0xff] %vm280, 0.0
      %328 = vst.msk [vmem:[#allocation2 + $0x170] sm:$0xff] %vm280, 0.0
      %329 = vst.msk [vmem:[#allocation2 + $0x178] sm:$0x3] %vm283, 0.0
      %330 = vst.msk [vmem:[#allocation2 + $0x180] sm:$0xff] %vm280, 0.0
      %331 = vst.msk [vmem:[#allocation2 + $0x188] sm:$0xff] %vm280, 0.0
      %332 = vst.msk [vmem:[#allocation2 + $0x190] sm:$0x3] %vm283, 0.0
      %333 = vst.msk [vmem:[#allocation2 + $0x198] sm:$0xff] %vm280, 0.0
      %334 = vst.msk [vmem:[#allocation2 + $0x1a0] sm:$0xff] %vm280, 0.0
      %335 = vst.msk [vmem:[#allocation2 + $0x1a8] sm:$0x3] %vm283, 0.0
      %vm336 = vcmask 523264
      %337 = vst.msk [vmem:[#allocation3] sm:$0xff] %vm336, 0.0
      %338 = vst.msk [vmem:[#allocation3 + $0x8] sm:$0xff] %vm336, 0.0
      %vm339 = vcmask 517120
      %340 = vst.msk [vmem:[#allocation3 + $0x10] sm:$0x3] %vm339, 0.0
      %341 = vst.msk [vmem:[#allocation3 + $0x18] sm:$0xff] %vm336, 0.0
      %342 = vst.msk [vmem:[#allocation3 + $0x20] sm:$0xff] %vm336, 0.0
      %343 = vst.msk [vmem:[#allocation3 + $0x28] sm:$0x3] %vm339, 0.0
      %344 = vst.msk [vmem:[#allocation3 + $0x30] sm:$0xff] %vm336, 0.0
      %345 = vst.msk [vmem:[#allocation3 + $0x38] sm:$0xff] %vm336, 0.0
      %346 = vst.msk [vmem:[#allocation3 + $0x40] sm:$0x3] %vm339, 0.0
      %347 = vst.msk [vmem:[#allocation3 + $0x48] sm:$0xff] %vm336, 0.0
      %348 = vst.msk [vmem:[#allocation3 + $0x50] sm:$0xff] %vm336, 0.0
      %349 = vst.msk [vmem:[#allocation3 + $0x58] sm:$0x3] %vm339, 0.0
      %350 = vst.msk [vmem:[#allocation3 + $0x60] sm:$0xff] %vm336, 0.0
      %351 = vst.msk [vmem:[#allocation3 + $0x68] sm:$0xff] %vm336, 0.0
      %352 = vst.msk [vmem:[#allocation3 + $0x70] sm:$0x3] %vm339, 0.0
      %353 = vst.msk [vmem:[#allocation3 + $0x78] sm:$0xff] %vm336, 0.0
      %354 = vst.msk [vmem:[#allocation3 + $0x80] sm:$0xff] %vm336, 0.0
      %355 = vst.msk [vmem:[#allocation3 + $0x88] sm:$0x3] %vm339, 0.0
      %356 = vst.msk [vmem:[#allocation3 + $0x90] sm:$0xff] %vm336, 0.0
      %357 = vst.msk [vmem:[#allocation3 + $0x98] sm:$0xff] %vm336, 0.0
      %358 = vst.msk [vmem:[#allocation3 + $0xa0] sm:$0x3] %vm339, 0.0
      %359 = vst.msk [vmem:[#allocation3 + $0xa8] sm:$0xff] %vm336, 0.0
      %360 = vst.msk [vmem:[#allocation3 + $0xb0] sm:$0xff] %vm336, 0.0
      %361 = vst.msk [vmem:[#allocation3 + $0xb8] sm:$0x3] %vm339, 0.0
      %362 = vst.msk [vmem:[#allocation3 + $0xc0] sm:$0xff] %vm336, 0.0
      %363 = vst.msk [vmem:[#allocation3 + $0xc8] sm:$0xff] %vm336, 0.0
      %364 = vst.msk [vmem:[#allocation3 + $0xd0] sm:$0x3] %vm339, 0.0
      %365 = vst.msk [vmem:[#allocation3 + $0xd8] sm:$0xff] %vm336, 0.0
      %366 = vst.msk [vmem:[#allocation3 + $0xe0] sm:$0xff] %vm336, 0.0
      %367 = vst.msk [vmem:[#allocation3 + $0xe8] sm:$0x3] %vm339, 0.0
      %368 = vst.msk [vmem:[#allocation3 + $0xf0] sm:$0xff] %vm336, 0.0
      %369 = vst.msk [vmem:[#allocation3 + $0xf8] sm:$0xff] %vm336, 0.0
      %370 = vst.msk [vmem:[#allocation3 + $0x100] sm:$0x3] %vm339, 0.0
      %371 = vst.msk [vmem:[#allocation3 + $0x108] sm:$0xff] %vm336, 0.0
      %372 = vst.msk [vmem:[#allocation3 + $0x110] sm:$0xff] %vm336, 0.0
      %373 = vst.msk [vmem:[#allocation3 + $0x118] sm:$0x3] %vm339, 0.0
      %374 = vst.msk [vmem:[#allocation3 + $0x120] sm:$0xff] %vm336, 0.0
      %375 = vst.msk [vmem:[#allocation3 + $0x128] sm:$0xff] %vm336, 0.0
      %376 = vst.msk [vmem:[#allocation3 + $0x130] sm:$0x3] %vm339, 0.0
      %377 = vst.msk [vmem:[#allocation3 + $0x138] sm:$0xff] %vm336, 0.0
      %378 = vst.msk [vmem:[#allocation3 + $0x140] sm:$0xff] %vm336, 0.0
      %379 = vst.msk [vmem:[#allocation3 + $0x148] sm:$0x3] %vm339, 0.0
      %380 = vst.msk [vmem:[#allocation3 + $0x150] sm:$0xff] %vm336, 0.0
      %381 = vst.msk [vmem:[#allocation3 + $0x158] sm:$0xff] %vm336, 0.0
      %382 = vst.msk [vmem:[#allocation3 + $0x160] sm:$0x3] %vm339, 0.0
      %383 = vst.msk [vmem:[#allocation3 + $0x168] sm:$0xff] %vm336, 0.0
      %384 = vst.msk [vmem:[#allocation3 + $0x170] sm:$0xff] %vm336, 0.0
      %385 = vst.msk [vmem:[#allocation3 + $0x178] sm:$0x3] %vm339, 0.0
      %386 = vst.msk [vmem:[#allocation3 + $0x180] sm:$0xff] %vm336, 0.0
      %387 = vst.msk [vmem:[#allocation3 + $0x188] sm:$0xff] %vm336, 0.0
      %388 = vst.msk [vmem:[#allocation3 + $0x190] sm:$0x3] %vm339, 0.0
      %389 = vst.msk [vmem:[#allocation3 + $0x198] sm:$0xff] %vm336, 0.0
      %390 = vst.msk [vmem:[#allocation3 + $0x1a0] sm:$0xff] %vm336, 0.0
      %391 = vst.msk [vmem:[#allocation3 + $0x1a8] sm:$0x3] %vm339, 0.0
      %392 = vst.msk [vmem:[#allocation4] sm:$0xff] %vm336, 0.0
      %393 = vst.msk [vmem:[#allocation4 + $0x8] sm:$0xff] %vm336, 0.0
      %394 = vst.msk [vmem:[#allocation4 + $0x10] sm:$0x3] %vm339, 0.0
      %395 = vst.msk [vmem:[#allocation4 + $0x18] sm:$0xff] %vm336, 0.0
      %396 = vst.msk [vmem:[#allocation4 + $0x20] sm:$0xff] %vm336, 0.0
      %397 = vst.msk [vmem:[#allocation4 + $0x28] sm:$0x3] %vm339, 0.0
      %398 = vst.msk [vmem:[#allocation4 + $0x30] sm:$0xff] %vm336, 0.0
      %399 = vst.msk [vmem:[#allocation4 + $0x38] sm:$0xff] %vm336, 0.0
      %400 = vst.msk [vmem:[#allocation4 + $0x40] sm:$0x3] %vm339, 0.0
      %401 = vst.msk [vmem:[#allocation4 + $0x48] sm:$0xff] %vm336, 0.0
      %402 = vst.msk [vmem:[#allocation4 + $0x50] sm:$0xff] %vm336, 0.0
      %403 = vst.msk [vmem:[#allocation4 + $0x58] sm:$0x3] %vm339, 0.0
      %404 = vst.msk [vmem:[#allocation4 + $0x60] sm:$0xff] %vm336, 0.0
      %405 = vst.msk [vmem:[#allocation4 + $0x68] sm:$0xff] %vm336, 0.0
      %406 = vst.msk [vmem:[#allocation4 + $0x70] sm:$0x3] %vm339, 0.0
      %407 = vst.msk [vmem:[#allocation4 + $0x78] sm:$0xff] %vm336, 0.0
      %408 = vst.msk [vmem:[#allocation4 + $0x80] sm:$0xff] %vm336, 0.0
      %409 = vst.msk [vmem:[#allocation4 + $0x88] sm:$0x3] %vm339, 0.0
      %410 = vst.msk [vmem:[#allocation4 + $0x90] sm:$0xff] %vm336, 0.0
      %411 = vst.msk [vmem:[#allocation4 + $0x98] sm:$0xff] %vm336, 0.0
      %412 = vst.msk [vmem:[#allocation4 + $0xa0] sm:$0x3] %vm339, 0.0
      %413 = vst.msk [vmem:[#allocation4 + $0xa8] sm:$0xff] %vm336, 0.0
      %414 = vst.msk [vmem:[#allocation4 + $0xb0] sm:$0xff] %vm336, 0.0
      %415 = vst.msk [vmem:[#allocation4 + $0xb8] sm:$0x3] %vm339, 0.0
      %416 = vst.msk [vmem:[#allocation4 + $0xc0] sm:$0xff] %vm336, 0.0
      %417 = vst.msk [vmem:[#allocation4 + $0xc8] sm:$0xff] %vm336, 0.0
      %418 = vst.msk [vmem:[#allocation4 + $0xd0] sm:$0x3] %vm339, 0.0
      %419 = vst.msk [vmem:[#allocation4 + $0xd8] sm:$0xff] %vm336, 0.0
      %420 = vst.msk [vmem:[#allocation4 + $0xe0] sm:$0xff] %vm336, 0.0
      %421 = vst.msk [vmem:[#allocation4 + $0xe8] sm:$0x3] %vm339, 0.0
      %422 = vst.msk [vmem:[#allocation4 + $0xf0] sm:$0xff] %vm336, 0.0
      %423 = vst.msk [vmem:[#allocation4 + $0xf8] sm:$0xff] %vm336, 0.0
      %424 = vst.msk [vmem:[#allocation4 + $0x100] sm:$0x3] %vm339, 0.0
      %425 = vst.msk [vmem:[#allocation4 + $0x108] sm:$0xff] %vm336, 0.0
      %426 = vst.msk [vmem:[#allocation4 + $0x110] sm:$0xff] %vm336, 0.0
      %427 = vst.msk [vmem:[#allocation4 + $0x118] sm:$0x3] %vm339, 0.0
      %428 = vst.msk [vmem:[#allocation4 + $0x120] sm:$0xff] %vm336, 0.0
      %429 = vst.msk [vmem:[#allocation4 + $0x128] sm:$0xff] %vm336, 0.0
      %430 = vst.msk [vmem:[#allocation4 + $0x130] sm:$0x3] %vm339, 0.0
      %431 = vst.msk [vmem:[#allocation4 + $0x138] sm:$0xff] %vm336, 0.0
      %432 = vst.msk [vmem:[#allocation4 + $0x140] sm:$0xff] %vm336, 0.0
      %433 = vst.msk [vmem:[#allocation4 + $0x148] sm:$0x3] %vm339, 0.0
      %434 = vst.msk [vmem:[#allocation4 + $0x150] sm:$0xff] %vm336, 0.0
      %435 = vst.msk [vmem:[#allocation4 + $0x158] sm:$0xff] %vm336, 0.0
      %436 = vst.msk [vmem:[#allocation4 + $0x160] sm:$0x3] %vm339, 0.0
      %437 = vst.msk [vmem:[#allocation4 + $0x168] sm:$0xff] %vm336, 0.0
      %438 = vst.msk [vmem:[#allocation4 + $0x170] sm:$0xff] %vm336, 0.0
      %439 = vst.msk [vmem:[#allocation4 + $0x178] sm:$0x3] %vm339, 0.0
      %440 = vst.msk [vmem:[#allocation4 + $0x180] sm:$0xff] %vm336, 0.0
      %441 = vst.msk [vmem:[#allocation4 + $0x188] sm:$0xff] %vm336, 0.0
      %442 = vst.msk [vmem:[#allocation4 + $0x190] sm:$0x3] %vm339, 0.0
      %443 = vst.msk [vmem:[#allocation4 + $0x198] sm:$0xff] %vm336, 0.0
      %444 = vst.msk [vmem:[#allocation4 + $0x1a0] sm:$0xff] %vm336, 0.0
      %445 = vst.msk [vmem:[#allocation4 + $0x1a8] sm:$0x3] %vm339, 0.0
      %v446 = vld [vmem:[%s273] sm:$0xff]
      %v447 = vld [vmem:[%s273 + $0x8] sm:$0xff]
      %v448 = vld [vmem:[%s273 + $0x10] sm:$0xff]
      %v449 = vld [vmem:[%s273 + $0x18] sm:$0xff]
      %v450 = vld [vmem:[%s273 + $0x20] sm:$0xff]
      %v451 = vld [vmem:[%s273 + $0x28] sm:$0xff]
      %v452 = vld [vmem:[%s273 + $0x30] sm:$0xff]
      %v453 = vld [vmem:[%s273 + $0x38] sm:$0xff]
      %v454 = vld [vmem:[%s273 + $0x40] sm:$0xff]
      %v455 = vld [vmem:[%s273 + $0x48] sm:$0xff]
      %v456 = vld [vmem:[%s273 + $0x50] sm:$0xff]
      %v457 = vld [vmem:[%s273 + $0x58] sm:$0xff]
      %v458 = vld [vmem:[%s273 + $0x60] sm:$0xff]
      %v459 = vld [vmem:[%s273 + $0x68] sm:$0xff]
      %v460 = vld [vmem:[%s273 + $0x70] sm:$0xff]
      %v461 = vld [vmem:[%s273 + $0x78] sm:$0xff]
      %v462 = vld [vmem:[%s273 + $0x80] sm:$0xff]
      %v463 = vld [vmem:[%s273 + $0x88] sm:$0xff]
      %v464 = vld [vmem:[%s273 + $0x90] sm:$0xff]
      %v465 = vld [vmem:[%s273 + $0x98] sm:$0xff]
      %v466 = vld [vmem:[%s273 + $0xa0] sm:$0xff]
      %v467 = vld [vmem:[%s273 + $0xa8] sm:$0xff]
      %v468 = vld [vmem:[%s273 + $0xb0] sm:$0xff]
      %v469 = vld [vmem:[%s273 + $0xb8] sm:$0xff]
      %v470 = vld [vmem:[%s273 + $0xc0] sm:$0xff]
      %v471 = vld [vmem:[%s273 + $0xc8] sm:$0xff]
      %v472 = vld [vmem:[%s273 + $0xd0] sm:$0xff]
      %v473 = vld [vmem:[%s273 + $0xd8] sm:$0xff]
      %v474 = vld [vmem:[%s273 + $0xe0] sm:$0xff]
      %v475 = vld [vmem:[%s273 + $0xe8] sm:$0xff]
      %v476 = vld [vmem:[%s273 + $0xf0] sm:$0xff]
      %v477 = vld [vmem:[%s273 + $0xf8] sm:$0xff]
      %s478 = scalar_lea.vmem [#allocation2], 24
      %479 = vst.msk [vmem:[%s478 + $0x1] sm:$0xff] %vm280, %v446
      %480 = vst.msk [vmem:[%s478 + $0x9] sm:$0xff] %vm280, %v447
      %481 = vst.msk [vmem:[%s478 + $0x19] sm:$0xff] %vm280, %v448
      %482 = vst.msk [vmem:[%s478 + $0x21] sm:$0xff] %vm280, %v449
      %483 = vst.msk [vmem:[%s478 + $0x31] sm:$0xff] %vm280, %v450
      %484 = vst.msk [vmem:[%s478 + $0x39] sm:$0xff] %vm280, %v451
      %485 = vst.msk [vmem:[%s478 + $0x49] sm:$0xff] %vm280, %v452
      %486 = vst.msk [vmem:[%s478 + $0x51] sm:$0xff] %vm280, %v453
      %487 = vst.msk [vmem:[%s478 + $0x61] sm:$0xff] %vm280, %v454
      %488 = vst.msk [vmem:[%s478 + $0x69] sm:$0xff] %vm280, %v455
      %489 = vst.msk [vmem:[%s478 + $0x79] sm:$0xff] %vm280, %v456
      %490 = vst.msk [vmem:[%s478 + $0x81] sm:$0xff] %vm280, %v457
      %491 = vst.msk [vmem:[%s478 + $0x91] sm:$0xff] %vm280, %v458
      %492 = vst.msk [vmem:[%s478 + $0x99] sm:$0xff] %vm280, %v459
      %493 = vst.msk [vmem:[%s478 + $0xa9] sm:$0xff] %vm280, %v460
      %494 = vst.msk [vmem:[%s478 + $0xb1] sm:$0xff] %vm280, %v461
      %495 = vst.msk [vmem:[%s478 + $0xc1] sm:$0xff] %vm280, %v462
      %496 = vst.msk [vmem:[%s478 + $0xc9] sm:$0xff] %vm280, %v463
      %497 = vst.msk [vmem:[%s478 + $0xd9] sm:$0xff] %vm280, %v464
      %498 = vst.msk [vmem:[%s478 + $0xe1] sm:$0xff] %vm280, %v465
      %499 = vst.msk [vmem:[%s478 + $0xf1] sm:$0xff] %vm280, %v466
      %500 = vst.msk [vmem:[%s478 + $0xf9] sm:$0xff] %vm280, %v467
      %501 = vst.msk [vmem:[%s478 + $0x109] sm:$0xff] %vm280, %v468
      %502 = vst.msk [vmem:[%s478 + $0x111] sm:$0xff] %vm280, %v469
      %503 = vst.msk [vmem:[%s478 + $0x121] sm:$0xff] %vm280, %v470
      %504 = vst.msk [vmem:[%s478 + $0x129] sm:$0xff] %vm280, %v471
      %505 = vst.msk [vmem:[%s478 + $0x139] sm:$0xff] %vm280, %v472
      %506 = vst.msk [vmem:[%s478 + $0x141] sm:$0xff] %vm280, %v473
      %507 = vst.msk [vmem:[%s478 + $0x151] sm:$0xff] %vm280, %v474
      %508 = vst.msk [vmem:[%s478 + $0x159] sm:$0xff] %vm280, %v475
      %509 = vst.msk [vmem:[%s478 + $0x169] sm:$0xff] %vm280, %v476
      %510 = vst.msk [vmem:[%s478 + $0x171] sm:$0xff] %vm280, %v477
      %v511 = vld [vmem:[#allocation2] sm:$0xff]
      %v512 = vld [vmem:[#allocation2 + $0x8] sm:$0xff]
      %v513 = vld [vmem:[#allocation2 + $0x18] sm:$0xff]
      %v514 = vld [vmem:[#allocation2 + $0x20] sm:$0xff]
      %v515 = vld [vmem:[#allocation2 + $0x30] sm:$0xff]
      %v516 = vld [vmem:[#allocation2 + $0x38] sm:$0xff]
      %v517 = vld [vmem:[#allocation2 + $0x48] sm:$0xff]
      %v518 = vld [vmem:[#allocation2 + $0x50] sm:$0xff]
      %v519 = vld [vmem:[#allocation2 + $0x60] sm:$0xff]
      %v520 = vld [vmem:[#allocation2 + $0x68] sm:$0xff]
      %v521 = vld [vmem:[#allocation2 + $0x78] sm:$0xff]
      %v522 = vld [vmem:[#allocation2 + $0x80] sm:$0xff]
      %v523 = vld [vmem:[#allocation2 + $0x90] sm:$0xff]
      %v524 = vld [vmem:[#allocation2 + $0x98] sm:$0xff]
      %v525 = vld [vmem:[#allocation2 + $0xa8] sm:$0xff]
      %v526 = vld [vmem:[#allocation2 + $0xb0] sm:$0xff]
      %v527 = vld [vmem:[#allocation2 + $0xc0] sm:$0xff]
      %v528 = vld [vmem:[#allocation2 + $0xc8] sm:$0xff]
      %v529 = vld [vmem:[#allocation2 + $0xd8] sm:$0xff]
      %v530 = vld [vmem:[#allocation2 + $0xe0] sm:$0xff]
      %v531 = vld [vmem:[#allocation2 + $0xf0] sm:$0xff]
      %v532 = vld [vmem:[#allocation2 + $0xf8] sm:$0xff]
      %v533 = vld [vmem:[#allocation2 + $0x108] sm:$0xff]
      %v534 = vld [vmem:[#allocation2 + $0x110] sm:$0xff]
      %v535 = vld [vmem:[#allocation2 + $0x120] sm:$0xff]
      %v536 = vld [vmem:[#allocation2 + $0x128] sm:$0xff]
      %v537 = vld [vmem:[#allocation2 + $0x138] sm:$0xff]
      %v538 = vld [vmem:[#allocation2 + $0x140] sm:$0xff]
      %v539 = vld [vmem:[#allocation2 + $0x150] sm:$0xff]
      %v540 = vld [vmem:[#allocation2 + $0x158] sm:$0xff]
      %v541 = vld [vmem:[#allocation2 + $0x168] sm:$0xff]
      %v542 = vld [vmem:[#allocation2 + $0x170] sm:$0xff]
      %v543 = vld [vmem:[#allocation2 + $0x1] sm:$0xff]
      %v544 = vld [vmem:[#allocation2 + $0x9] sm:$0xff]
      %v545 = vld [vmem:[#allocation2 + $0x19] sm:$0xff]
      %v546 = vld [vmem:[#allocation2 + $0x21] sm:$0xff]
      %v547 = vld [vmem:[#allocation2 + $0x31] sm:$0xff]
      %v548 = vld [vmem:[#allocation2 + $0x39] sm:$0xff]
      %v549 = vld [vmem:[#allocation2 + $0x49] sm:$0xff]
      %v550 = vld [vmem:[#allocation2 + $0x51] sm:$0xff]
      %v551 = vld [vmem:[#allocation2 + $0x61] sm:$0xff]
      %v552 = vld [vmem:[#allocation2 + $0x69] sm:$0xff]
      %v553 = vld [vmem:[#allocation2 + $0x79] sm:$0xff]
      %v554 = vld [vmem:[#allocation2 + $0x81] sm:$0xff]
      %v555 = vld [vmem:[#allocation2 + $0x91] sm:$0xff]
      %v556 = vld [vmem:[#allocation2 + $0x99] sm:$0xff]
      %v557 = vld [vmem:[#allocation2 + $0xa9] sm:$0xff]
      %v558 = vld [vmem:[#allocation2 + $0xb1] sm:$0xff]
      %v559 = vld [vmem:[#allocation2 + $0xc1] sm:$0xff]
      %v560 = vld [vmem:[#allocation2 + $0xc9] sm:$0xff]
      %v561 = vld [vmem:[#allocation2 + $0xd9] sm:$0xff]
      %v562 = vld [vmem:[#allocation2 + $0xe1] sm:$0xff]
      %v563 = vld [vmem:[#allocation2 + $0xf1] sm:$0xff]
      %v564 = vld [vmem:[#allocation2 + $0xf9] sm:$0xff]
      %v565 = vld [vmem:[#allocation2 + $0x109] sm:$0xff]
      %v566 = vld [vmem:[#allocation2 + $0x111] sm:$0xff]
      %v567 = vld [vmem:[#allocation2 + $0x121] sm:$0xff]
      %v568 = vld [vmem:[#allocation2 + $0x129] sm:$0xff]
      %v569 = vld [vmem:[#allocation2 + $0x139] sm:$0xff]
      %v570 = vld [vmem:[#allocation2 + $0x141] sm:$0xff]
      %v571 = vld [vmem:[#allocation2 + $0x151] sm:$0xff]
      %v572 = vld [vmem:[#allocation2 + $0x159] sm:$0xff]
      %v573 = vld [vmem:[#allocation2 + $0x169] sm:$0xff]
      %v574 = vld [vmem:[#allocation2 + $0x171] sm:$0xff]
      %v575 = vld [vmem:[#allocation2 + $0x2] sm:$0xff]
      %v576 = vld [vmem:[#allocation2 + $0xa] sm:$0xff]
      %v577 = vld [vmem:[#allocation2 + $0x1a] sm:$0xff]
      %v578 = vld [vmem:[#allocation2 + $0x22] sm:$0xff]
      %v579 = vld [vmem:[#allocation2 + $0x32] sm:$0xff]
      %v580 = vld [vmem:[#allocation2 + $0x3a] sm:$0xff]
      %v581 = vld [vmem:[#allocation2 + $0x4a] sm:$0xff]
      %v582 = vld [vmem:[#allocation2 + $0x52] sm:$0xff]
      %v583 = vld [vmem:[#allocation2 + $0x62] sm:$0xff]
      %v584 = vld [vmem:[#allocation2 + $0x6a] sm:$0xff]
      %v585 = vld [vmem:[#allocation2 + $0x7a] sm:$0xff]
      %v586 = vld [vmem:[#allocation2 + $0x82] sm:$0xff]
      %v587 = vld [vmem:[#allocation2 + $0x92] sm:$0xff]
      %v588 = vld [vmem:[#allocation2 + $0x9a] sm:$0xff]
      %v589 = vld [vmem:[#allocation2 + $0xaa] sm:$0xff]
      %v590 = vld [vmem:[#allocation2 + $0xb2] sm:$0xff]
      %v591 = vld [vmem:[#allocation2 + $0xc2] sm:$0xff]
      %v592 = vld [vmem:[#allocation2 + $0xca] sm:$0xff]
      %v593 = vld [vmem:[#allocation2 + $0xda] sm:$0xff]
      %v594 = vld [vmem:[#allocation2 + $0xe2] sm:$0xff]
      %v595 = vld [vmem:[#allocation2 + $0xf2] sm:$0xff]
      %v596 = vld [vmem:[#allocation2 + $0xfa] sm:$0xff]
      %v597 = vld [vmem:[#allocation2 + $0x10a] sm:$0xff]
      %v598 = vld [vmem:[#allocation2 + $0x112] sm:$0xff]
      %v599 = vld [vmem:[#allocation2 + $0x122] sm:$0xff]
      %v600 = vld [vmem:[#allocation2 + $0x12a] sm:$0xff]
      %v601 = vld [vmem:[#allocation2 + $0x13a] sm:$0xff]
      %v602 = vld [vmem:[#allocation2 + $0x142] sm:$0xff]
      %v603 = vld [vmem:[#allocation2 + $0x152] sm:$0xff]
      %v604 = vld [vmem:[#allocation2 + $0x15a] sm:$0xff]
      %v605 = vld [vmem:[#allocation2 + $0x16a] sm:$0xff]
      %v606 = vld [vmem:[#allocation2 + $0x172] sm:$0xff]
      %v607 = vld [vmem:[%s478] sm:$0xff]
      %v608 = vld [vmem:[%s478 + $0x8] sm:$0xff]
      %v609 = vld [vmem:[%s478 + $0x18] sm:$0xff]
      %v610 = vld [vmem:[%s478 + $0x20] sm:$0xff]
      %v611 = vld [vmem:[%s478 + $0x30] sm:$0xff]
      %v612 = vld [vmem:[%s478 + $0x38] sm:$0xff]
      %v613 = vld [vmem:[%s478 + $0x48] sm:$0xff]
      %v614 = vld [vmem:[%s478 + $0x50] sm:$0xff]
      %v615 = vld [vmem:[%s478 + $0x60] sm:$0xff]
      %v616 = vld [vmem:[%s478 + $0x68] sm:$0xff]
      %v617 = vld [vmem:[%s478 + $0x78] sm:$0xff]
      %v618 = vld [vmem:[%s478 + $0x80] sm:$0xff]
      %v619 = vld [vmem:[%s478 + $0x90] sm:$0xff]
      %v620 = vld [vmem:[%s478 + $0x98] sm:$0xff]
      %v621 = vld [vmem:[%s478 + $0xa8] sm:$0xff]
      %v622 = vld [vmem:[%s478 + $0xb0] sm:$0xff]
      %v623 = vld [vmem:[%s478 + $0xc0] sm:$0xff]
      %v624 = vld [vmem:[%s478 + $0xc8] sm:$0xff]
      %v625 = vld [vmem:[%s478 + $0xd8] sm:$0xff]
      %v626 = vld [vmem:[%s478 + $0xe0] sm:$0xff]
      %v627 = vld [vmem:[%s478 + $0xf0] sm:$0xff]
      %v628 = vld [vmem:[%s478 + $0xf8] sm:$0xff]
      %v629 = vld [vmem:[%s478 + $0x108] sm:$0xff]
      %v630 = vld [vmem:[%s478 + $0x110] sm:$0xff]
      %v631 = vld [vmem:[%s478 + $0x120] sm:$0xff]
      %v632 = vld [vmem:[%s478 + $0x128] sm:$0xff]
      %v633 = vld [vmem:[%s478 + $0x138] sm:$0xff]
      %v634 = vld [vmem:[%s478 + $0x140] sm:$0xff]
      %v635 = vld [vmem:[%s478 + $0x150] sm:$0xff]
      %v636 = vld [vmem:[%s478 + $0x158] sm:$0xff]
      %v637 = vld [vmem:[%s478 + $0x168] sm:$0xff]
      %v638 = vld [vmem:[%s478 + $0x170] sm:$0xff]
      %v639 = vld [vmem:[%s478 + $0x1] sm:$0xff]
      %v640 = vld [vmem:[%s478 + $0x9] sm:$0xff]
      %v641 = vld [vmem:[%s478 + $0x19] sm:$0xff]
      %v642 = vld [vmem:[%s478 + $0x21] sm:$0xff]
      %v643 = vld [vmem:[%s478 + $0x31] sm:$0xff]
      %v644 = vld [vmem:[%s478 + $0x39] sm:$0xff]
      %v645 = vld [vmem:[%s478 + $0x49] sm:$0xff]
      %v646 = vld [vmem:[%s478 + $0x51] sm:$0xff]
      %v647 = vld [vmem:[%s478 + $0x61] sm:$0xff]
      %v648 = vld [vmem:[%s478 + $0x69] sm:$0xff]
      %v649 = vld [vmem:[%s478 + $0x79] sm:$0xff]
      %v650 = vld [vmem:[%s478 + $0x81] sm:$0xff]
      %v651 = vld [vmem:[%s478 + $0x91] sm:$0xff]
      %v652 = vld [vmem:[%s478 + $0x99] sm:$0xff]
      %v653 = vld [vmem:[%s478 + $0xa9] sm:$0xff]
      %v654 = vld [vmem:[%s478 + $0xb1] sm:$0xff]
      %v655 = vld [vmem:[%s478 + $0xc1] sm:$0xff]
      %v656 = vld [vmem:[%s478 + $0xc9] sm:$0xff]
      %v657 = vld [vmem:[%s478 + $0xd9] sm:$0xff]
      %v658 = vld [vmem:[%s478 + $0xe1] sm:$0xff]
      %v659 = vld [vmem:[%s478 + $0xf1] sm:$0xff]
      %v660 = vld [vmem:[%s478 + $0xf9] sm:$0xff]
      %v661 = vld [vmem:[%s478 + $0x109] sm:$0xff]
      %v662 = vld [vmem:[%s478 + $0x111] sm:$0xff]
      %v663 = vld [vmem:[%s478 + $0x121] sm:$0xff]
      %v664 = vld [vmem:[%s478 + $0x129] sm:$0xff]
      %v665 = vld [vmem:[%s478 + $0x139] sm:$0xff]
      %v666 = vld [vmem:[%s478 + $0x141] sm:$0xff]
      %v667 = vld [vmem:[%s478 + $0x151] sm:$0xff]
      %v668 = vld [vmem:[%s478 + $0x159] sm:$0xff]
      %v669 = vld [vmem:[%s478 + $0x169] sm:$0xff]
      %v670 = vld [vmem:[%s478 + $0x171] sm:$0xff]
      %v671 = vld [vmem:[%s478 + $0x2] sm:$0xff]
      %v672 = vld [vmem:[%s478 + $0xa] sm:$0xff]
      %v673 = vld [vmem:[%s478 + $0x1a] sm:$0xff]
      %v674 = vld [vmem:[%s478 + $0x22] sm:$0xff]
      %v675 = vld [vmem:[%s478 + $0x32] sm:$0xff]
      %v676 = vld [vmem:[%s478 + $0x3a] sm:$0xff]
      %v677 = vld [vmem:[%s478 + $0x4a] sm:$0xff]
      %v678 = vld [vmem:[%s478 + $0x52] sm:$0xff]
      %v679 = vld [vmem:[%s478 + $0x62] sm:$0xff]
      %v680 = vld [vmem:[%s478 + $0x6a] sm:$0xff]
      %v681 = vld [vmem:[%s478 + $0x7a] sm:$0xff]
      %v682 = vld [vmem:[%s478 + $0x82] sm:$0xff]
      %v683 = vld [vmem:[%s478 + $0x92] sm:$0xff]
      %v684 = vld [vmem:[%s478 + $0x9a] sm:$0xff]
      %v685 = vld [vmem:[%s478 + $0xaa] sm:$0xff]
      %v686 = vld [vmem:[%s478 + $0xb2] sm:$0xff]
      %v687 = vld [vmem:[%s478 + $0xc2] sm:$0xff]
      %v688 = vld [vmem:[%s478 + $0xca] sm:$0xff]
      %v689 = vld [vmem:[%s478 + $0xda] sm:$0xff]
      %v690 = vld [vmem:[%s478 + $0xe2] sm:$0xff]
      %v691 = vld [vmem:[%s478 + $0xf2] sm:$0xff]
      %v692 = vld [vmem:[%s478 + $0xfa] sm:$0xff]
      %v693 = vld [vmem:[%s478 + $0x10a] sm:$0xff]
      %v694 = vld [vmem:[%s478 + $0x112] sm:$0xff]
      %v695 = vld [vmem:[%s478 + $0x122] sm:$0xff]
      %v696 = vld [vmem:[%s478 + $0x12a] sm:$0xff]
      %v697 = vld [vmem:[%s478 + $0x13a] sm:$0xff]
      %v698 = vld [vmem:[%s478 + $0x142] sm:$0xff]
      %v699 = vld [vmem:[%s478 + $0x152] sm:$0xff]
      %v700 = vld [vmem:[%s478 + $0x15a] sm:$0xff]
      %v701 = vld [vmem:[%s478 + $0x16a] sm:$0xff]
      %v702 = vld [vmem:[%s478 + $0x172] sm:$0xff]
      %s703 = scalar_lea.vmem [#allocation2], 48
      %v704 = vld [vmem:[%s703] sm:$0xff]
      %v705 = vld [vmem:[%s703 + $0x8] sm:$0xff]
      %v706 = vld [vmem:[%s703 + $0x18] sm:$0xff]
      %v707 = vld [vmem:[%s703 + $0x20] sm:$0xff]
      %v708 = vld [vmem:[%s703 + $0x30] sm:$0xff]
      %v709 = vld [vmem:[%s703 + $0x38] sm:$0xff]
      %v710 = vld [vmem:[%s703 + $0x48] sm:$0xff]
      %v711 = vld [vmem:[%s703 + $0x50] sm:$0xff]
      %v712 = vld [vmem:[%s703 + $0x60] sm:$0xff]
      %v713 = vld [vmem:[%s703 + $0x68] sm:$0xff]
      %v714 = vld [vmem:[%s703 + $0x78] sm:$0xff]
      %v715 = vld [vmem:[%s703 + $0x80] sm:$0xff]
      %v716 = vld [vmem:[%s703 + $0x90] sm:$0xff]
      %v717 = vld [vmem:[%s703 + $0x98] sm:$0xff]
      %v718 = vld [vmem:[%s703 + $0xa8] sm:$0xff]
      %v719 = vld [vmem:[%s703 + $0xb0] sm:$0xff]
      %v720 = vld [vmem:[%s703 + $0xc0] sm:$0xff]
      %v721 = vld [vmem:[%s703 + $0xc8] sm:$0xff]
      %v722 = vld [vmem:[%s703 + $0xd8] sm:$0xff]
      %v723 = vld [vmem:[%s703 + $0xe0] sm:$0xff]
      %v724 = vld [vmem:[%s703 + $0xf0] sm:$0xff]
      %v725 = vld [vmem:[%s703 + $0xf8] sm:$0xff]
      %v726 = vld [vmem:[%s703 + $0x108] sm:$0xff]
      %v727 = vld [vmem:[%s703 + $0x110] sm:$0xff]
      %v728 = vld [vmem:[%s703 + $0x120] sm:$0xff]
      %v729 = vld [vmem:[%s703 + $0x128] sm:$0xff]
      %v730 = vld [vmem:[%s703 + $0x138] sm:$0xff]
      %v731 = vld [vmem:[%s703 + $0x140] sm:$0xff]
      %v732 = vld [vmem:[%s703 + $0x150] sm:$0xff]
      %v733 = vld [vmem:[%s703 + $0x158] sm:$0xff]
      %v734 = vld [vmem:[%s703 + $0x168] sm:$0xff]
      %v735 = vld [vmem:[%s703 + $0x170] sm:$0xff]
      %v736 = vld [vmem:[%s703 + $0x1] sm:$0xff]
      %v737 = vld [vmem:[%s703 + $0x9] sm:$0xff]
      %v738 = vld [vmem:[%s703 + $0x19] sm:$0xff]
      %v739 = vld [vmem:[%s703 + $0x21] sm:$0xff]
      %v740 = vld [vmem:[%s703 + $0x31] sm:$0xff]
      %v741 = vld [vmem:[%s703 + $0x39] sm:$0xff]
      %v742 = vld [vmem:[%s703 + $0x49] sm:$0xff]
      %v743 = vld [vmem:[%s703 + $0x51] sm:$0xff]
      %v744 = vld [vmem:[%s703 + $0x61] sm:$0xff]
      %v745 = vld [vmem:[%s703 + $0x69] sm:$0xff]
      %v746 = vld [vmem:[%s703 + $0x79] sm:$0xff]
      %v747 = vld [vmem:[%s703 + $0x81] sm:$0xff]
      %v748 = vld [vmem:[%s703 + $0x91] sm:$0xff]
      %v749 = vld [vmem:[%s703 + $0x99] sm:$0xff]
      %v750 = vld [vmem:[%s703 + $0xa9] sm:$0xff]
      %v751 = vld [vmem:[%s703 + $0xb1] sm:$0xff]
      %v752 = vld [vmem:[%s703 + $0xc1] sm:$0xff]
      %v753 = vld [vmem:[%s703 + $0xc9] sm:$0xff]
      %v754 = vld [vmem:[%s703 + $0xd9] sm:$0xff]
      %v755 = vld [vmem:[%s703 + $0xe1] sm:$0xff]
      %v756 = vld [vmem:[%s703 + $0xf1] sm:$0xff]
      %v757 = vld [vmem:[%s703 + $0xf9] sm:$0xff]
      %v758 = vld [vmem:[%s703 + $0x109] sm:$0xff]
      %v759 = vld [vmem:[%s703 + $0x111] sm:$0xff]
      %v760 = vld [vmem:[%s703 + $0x121] sm:$0xff]
      %v761 = vld [vmem:[%s703 + $0x129] sm:$0xff]
      %v762 = vld [vmem:[%s703 + $0x139] sm:$0xff]
      %v763 = vld [vmem:[%s703 + $0x141] sm:$0xff]
      %v764 = vld [vmem:[%s703 + $0x151] sm:$0xff]
      %v765 = vld [vmem:[%s703 + $0x159] sm:$0xff]
      %v766 = vld [vmem:[%s703 + $0x169] sm:$0xff]
      %v767 = vld [vmem:[%s703 + $0x171] sm:$0xff]
      %v768 = vld [vmem:[%s703 + $0x2] sm:$0xff]
      %v769 = vld [vmem:[%s703 + $0xa] sm:$0xff]
      %v770 = vld [vmem:[%s703 + $0x1a] sm:$0xff]
      %v771 = vld [vmem:[%s703 + $0x22] sm:$0xff]
      %v772 = vld [vmem:[%s703 + $0x32] sm:$0xff]
      %v773 = vld [vmem:[%s703 + $0x3a] sm:$0xff]
      %v774 = vld [vmem:[%s703 + $0x4a] sm:$0xff]
      %v775 = vld [vmem:[%s703 + $0x52] sm:$0xff]
      %v776 = vld [vmem:[%s703 + $0x62] sm:$0xff]
      %v777 = vld [vmem:[%s703 + $0x6a] sm:$0xff]
      %v778 = vld [vmem:[%s703 + $0x7a] sm:$0xff]
      %v779 = vld [vmem:[%s703 + $0x82] sm:$0xff]
      %v780 = vld [vmem:[%s703 + $0x92] sm:$0xff]
      %v781 = vld [vmem:[%s703 + $0x9a] sm:$0xff]
      %v782 = vld [vmem:[%s703 + $0xaa] sm:$0xff]
      %v783 = vld [vmem:[%s703 + $0xb2] sm:$0xff]
      %v784 = vld [vmem:[%s703 + $0xc2] sm:$0xff]
      %v785 = vld [vmem:[%s703 + $0xca] sm:$0xff]
      %v786 = vld [vmem:[%s703 + $0xda] sm:$0xff]
      %v787 = vld [vmem:[%s703 + $0xe2] sm:$0xff]
      %v788 = vld [vmem:[%s703 + $0xf2] sm:$0xff]
      %v789 = vld [vmem:[%s703 + $0xfa] sm:$0xff]
      %v790 = vld [vmem:[%s703 + $0x10a] sm:$0xff]
      %v791 = vld [vmem:[%s703 + $0x112] sm:$0xff]
      %v792 = vld [vmem:[%s703 + $0x122] sm:$0xff]
      %v793 = vld [vmem:[%s703 + $0x12a] sm:$0xff]
      %v794 = vld [vmem:[%s703 + $0x13a] sm:$0xff]
      %v795 = vld [vmem:[%s703 + $0x142] sm:$0xff]
      %v796 = vld [vmem:[%s703 + $0x152] sm:$0xff]
      %v797 = vld [vmem:[%s703 + $0x15a] sm:$0xff]
      %v798 = vld [vmem:[%s703 + $0x16a] sm:$0xff]
      %v799 = vld [vmem:[%s703 + $0x172] sm:$0xff]
      %832 = vrot.lane.b32.xlu0 %v543, 4
      %v833 = vpop.permute.xlu0 %832
      %834 = vrot.lane.b32.xlu0 %v544, 4
      %v835 = vpop.permute.xlu0 %834
      %836 = vrot.lane.b32.xlu0 %v545, 4
      %v837 = vpop.permute.xlu0 %836
      %838 = vrot.lane.b32.xlu0 %v546, 4
      %v839 = vpop.permute.xlu0 %838
      %840 = vrot.lane.b32.xlu0 %v547, 4
      %v841 = vpop.permute.xlu0 %840
      %842 = vrot.lane.b32.xlu0 %v548, 4
      %v843 = vpop.permute.xlu0 %842
      %844 = vrot.lane.b32.xlu0 %v549, 4
      %v845 = vpop.permute.xlu0 %844
      %846 = vrot.lane.b32.xlu0 %v550, 4
      %v847 = vpop.permute.xlu0 %846
      %848 = vrot.lane.b32.xlu0 %v551, 4
      %v849 = vpop.permute.xlu0 %848
      %850 = vrot.lane.b32.xlu0 %v552, 4
      %v851 = vpop.permute.xlu0 %850
      %852 = vrot.lane.b32.xlu0 %v553, 4
      %v853 = vpop.permute.xlu0 %852
      %854 = vrot.lane.b32.xlu0 %v554, 4
      %v855 = vpop.permute.xlu0 %854
      %856 = vrot.lane.b32.xlu0 %v555, 4
      %v857 = vpop.permute.xlu0 %856
      %858 = vrot.lane.b32.xlu0 %v556, 4
      %v859 = vpop.permute.xlu0 %858
      %860 = vrot.lane.b32.xlu0 %v557, 4
      %v861 = vpop.permute.xlu0 %860
      %862 = vrot.lane.b32.xlu0 %v558, 4
      %v863 = vpop.permute.xlu0 %862
      %864 = vrot.lane.b32.xlu0 %v559, 4
      %v865 = vpop.permute.xlu0 %864
      %866 = vrot.lane.b32.xlu0 %v560, 4
      %v867 = vpop.permute.xlu0 %866
      %868 = vrot.lane.b32.xlu0 %v561, 4
      %v869 = vpop.permute.xlu0 %868
      %870 = vrot.lane.b32.xlu0 %v562, 4
      %v871 = vpop.permute.xlu0 %870
      %872 = vrot.lane.b32.xlu0 %v563, 4
      %v873 = vpop.permute.xlu0 %872
      %874 = vrot.lane.b32.xlu0 %v564, 4
      %v875 = vpop.permute.xlu0 %874
      %876 = vrot.lane.b32.xlu0 %v565, 4
      %v877 = vpop.permute.xlu0 %876
      %878 = vrot.lane.b32.xlu0 %v566, 4
      %v879 = vpop.permute.xlu0 %878
      %880 = vrot.lane.b32.xlu0 %v567, 4
      %v881 = vpop.permute.xlu0 %880
      %882 = vrot.lane.b32.xlu0 %v568, 4
      %v883 = vpop.permute.xlu0 %882
      %884 = vrot.lane.b32.xlu0 %v569, 4
      %v885 = vpop.permute.xlu0 %884
      %886 = vrot.lane.b32.xlu0 %v570, 4
      %v887 = vpop.permute.xlu0 %886
      %888 = vrot.lane.b32.xlu0 %v571, 4
      %v889 = vpop.permute.xlu0 %888
      %890 = vrot.lane.b32.xlu0 %v572, 4
      %v891 = vpop.permute.xlu0 %890
      %892 = vrot.lane.b32.xlu0 %v573, 4
      %v893 = vpop.permute.xlu0 %892
      %894 = vrot.lane.b32.xlu0 %v574, 4
      %v895 = vpop.permute.xlu0 %894
      %960 = vrot.lane.b32.xlu0 %v575, 8
      %v961 = vpop.permute.xlu0 %960
      %962 = vrot.lane.b32.xlu0 %v576, 8
      %v963 = vpop.permute.xlu0 %962
      %964 = vrot.lane.b32.xlu0 %v577, 8
      %v965 = vpop.permute.xlu0 %964
      %966 = vrot.lane.b32.xlu0 %v578, 8
      %v967 = vpop.permute.xlu0 %966
      %968 = vrot.lane.b32.xlu0 %v579, 8
      %v969 = vpop.permute.xlu0 %968
      %970 = vrot.lane.b32.xlu0 %v580, 8
      %v971 = vpop.permute.xlu0 %970
      %972 = vrot.lane.b32.xlu0 %v581, 8
      %v973 = vpop.permute.xlu0 %972
      %974 = vrot.lane.b32.xlu0 %v582, 8
      %v975 = vpop.permute.xlu0 %974
      %976 = vrot.lane.b32.xlu0 %v583, 8
      %v977 = vpop.permute.xlu0 %976
      %978 = vrot.lane.b32.xlu0 %v584, 8
      %v979 = vpop.permute.xlu0 %978
      %980 = vrot.lane.b32.xlu0 %v585, 8
      %v981 = vpop.permute.xlu0 %980
      %982 = vrot.lane.b32.xlu0 %v586, 8
      %v983 = vpop.permute.xlu0 %982
      %984 = vrot.lane.b32.xlu0 %v587, 8
      %v985 = vpop.permute.xlu0 %984
      %986 = vrot.lane.b32.xlu0 %v588, 8
      %v987 = vpop.permute.xlu0 %986
      %988 = vrot.lane.b32.xlu0 %v589, 8
      %v989 = vpop.permute.xlu0 %988
      %990 = vrot.lane.b32.xlu0 %v590, 8
      %v991 = vpop.permute.xlu0 %990
      %992 = vrot.lane.b32.xlu0 %v591, 8
      %v993 = vpop.permute.xlu0 %992
      %994 = vrot.lane.b32.xlu0 %v592, 8
      %v995 = vpop.permute.xlu0 %994
      %996 = vrot.lane.b32.xlu0 %v593, 8
      %v997 = vpop.permute.xlu0 %996
      %998 = vrot.lane.b32.xlu0 %v594, 8
      %v999 = vpop.permute.xlu0 %998
      %1000 = vrot.lane.b32.xlu0 %v595, 8
      %v1001 = vpop.permute.xlu0 %1000
      %1002 = vrot.lane.b32.xlu0 %v596, 8
      %v1003 = vpop.permute.xlu0 %1002
      %1004 = vrot.lane.b32.xlu0 %v597, 8
      %v1005 = vpop.permute.xlu0 %1004
      %1006 = vrot.lane.b32.xlu0 %v598, 8
      %v1007 = vpop.permute.xlu0 %1006
      %1008 = vrot.lane.b32.xlu0 %v599, 8
      %v1009 = vpop.permute.xlu0 %1008
      %1010 = vrot.lane.b32.xlu0 %v600, 8
      %v1011 = vpop.permute.xlu0 %1010
      %1012 = vrot.lane.b32.xlu0 %v601, 8
      %v1013 = vpop.permute.xlu0 %1012
      %1014 = vrot.lane.b32.xlu0 %v602, 8
      %v1015 = vpop.permute.xlu0 %1014
      %1016 = vrot.lane.b32.xlu0 %v603, 8
      %v1017 = vpop.permute.xlu0 %1016
      %1018 = vrot.lane.b32.xlu0 %v604, 8
      %v1019 = vpop.permute.xlu0 %1018
      %1020 = vrot.lane.b32.xlu0 %v605, 8
      %v1021 = vpop.permute.xlu0 %1020
      %1022 = vrot.lane.b32.xlu0 %v606, 8
      %v1023 = vpop.permute.xlu0 %1022
      %1088 = vrot.lane.b32.xlu0 %v607, 12
      %v1089 = vpop.permute.xlu0 %1088
      %1090 = vrot.lane.b32.xlu0 %v608, 12
      %v1091 = vpop.permute.xlu0 %1090
      %1092 = vrot.lane.b32.xlu0 %v609, 12
      %v1093 = vpop.permute.xlu0 %1092
      %1094 = vrot.lane.b32.xlu0 %v610, 12
      %v1095 = vpop.permute.xlu0 %1094
      %1096 = vrot.lane.b32.xlu0 %v611, 12
      %v1097 = vpop.permute.xlu0 %1096
      %1098 = vrot.lane.b32.xlu0 %v612, 12
      %v1099 = vpop.permute.xlu0 %1098
      %1100 = vrot.lane.b32.xlu0 %v613, 12
      %v1101 = vpop.permute.xlu0 %1100
      %1102 = vrot.lane.b32.xlu0 %v614, 12
      %v1103 = vpop.permute.xlu0 %1102
      %1104 = vrot.lane.b32.xlu0 %v615, 12
      %v1105 = vpop.permute.xlu0 %1104
      %1106 = vrot.lane.b32.xlu0 %v616, 12
      %v1107 = vpop.permute.xlu0 %1106
      %1108 = vrot.lane.b32.xlu0 %v617, 12
      %v1109 = vpop.permute.xlu0 %1108
      %1110 = vrot.lane.b32.xlu0 %v618, 12
      %v1111 = vpop.permute.xlu0 %1110
      %1112 = vrot.lane.b32.xlu0 %v619, 12
      %v1113 = vpop.permute.xlu0 %1112
      %1114 = vrot.lane.b32.xlu0 %v620, 12
      %v1115 = vpop.permute.xlu0 %1114
      %1116 = vrot.lane.b32.xlu0 %v621, 12
      %v1117 = vpop.permute.xlu0 %1116
      %1118 = vrot.lane.b32.xlu0 %v622, 12
      %v1119 = vpop.permute.xlu0 %1118
      %1120 = vrot.lane.b32.xlu0 %v623, 12
      %v1121 = vpop.permute.xlu0 %1120
      %1122 = vrot.lane.b32.xlu0 %v624, 12
      %v1123 = vpop.permute.xlu0 %1122
      %1124 = vrot.lane.b32.xlu0 %v625, 12
      %v1125 = vpop.permute.xlu0 %1124
      %1126 = vrot.lane.b32.xlu0 %v626, 12
      %v1127 = vpop.permute.xlu0 %1126
      %1128 = vrot.lane.b32.xlu0 %v627, 12
      %v1129 = vpop.permute.xlu0 %1128
      %1130 = vrot.lane.b32.xlu0 %v628, 12
      %v1131 = vpop.permute.xlu0 %1130
      %1132 = vrot.lane.b32.xlu0 %v629, 12
      %v1133 = vpop.permute.xlu0 %1132
      %1134 = vrot.lane.b32.xlu0 %v630, 12
      %v1135 = vpop.permute.xlu0 %1134
      %1136 = vrot.lane.b32.xlu0 %v631, 12
      %v1137 = vpop.permute.xlu0 %1136
      %1138 = vrot.lane.b32.xlu0 %v632, 12
      %v1139 = vpop.permute.xlu0 %1138
      %1140 = vrot.lane.b32.xlu0 %v633, 12
      %v1141 = vpop.permute.xlu0 %1140
      %1142 = vrot.lane.b32.xlu0 %v634, 12
      %v1143 = vpop.permute.xlu0 %1142
      %1144 = vrot.lane.b32.xlu0 %v635, 12
      %v1145 = vpop.permute.xlu0 %1144
      %1146 = vrot.lane.b32.xlu0 %v636, 12
      %v1147 = vpop.permute.xlu0 %1146
      %1148 = vrot.lane.b32.xlu0 %v637, 12
      %v1149 = vpop.permute.xlu0 %1148
      %1150 = vrot.lane.b32.xlu0 %v638, 12
      %v1151 = vpop.permute.xlu0 %1150
      %1216 = vrot.lane.b32.xlu0 %v639, 16
      %v1217 = vpop.permute.xlu0 %1216
      %1218 = vrot.lane.b32.xlu0 %v640, 16
      %v1219 = vpop.permute.xlu0 %1218
      %1220 = vrot.lane.b32.xlu0 %v641, 16
      %v1221 = vpop.permute.xlu0 %1220
      %1222 = vrot.lane.b32.xlu0 %v642, 16
      %v1223 = vpop.permute.xlu0 %1222
      %1224 = vrot.lane.b32.xlu0 %v643, 16
      %v1225 = vpop.permute.xlu0 %1224
      %1226 = vrot.lane.b32.xlu0 %v644, 16
      %v1227 = vpop.permute.xlu0 %1226
      %1228 = vrot.lane.b32.xlu0 %v645, 16
      %v1229 = vpop.permute.xlu0 %1228
      %1230 = vrot.lane.b32.xlu0 %v646, 16
      %v1231 = vpop.permute.xlu0 %1230
      %1232 = vrot.lane.b32.xlu0 %v647, 16
      %v1233 = vpop.permute.xlu0 %1232
      %1234 = vrot.lane.b32.xlu0 %v648, 16
      %v1235 = vpop.permute.xlu0 %1234
      %1236 = vrot.lane.b32.xlu0 %v649, 16
      %v1237 = vpop.permute.xlu0 %1236
      %1238 = vrot.lane.b32.xlu0 %v650, 16
      %v1239 = vpop.permute.xlu0 %1238
      %1240 = vrot.lane.b32.xlu0 %v651, 16
      %v1241 = vpop.permute.xlu0 %1240
      %1242 = vrot.lane.b32.xlu0 %v652, 16
      %v1243 = vpop.permute.xlu0 %1242
      %1244 = vrot.lane.b32.xlu0 %v653, 16
      %v1245 = vpop.permute.xlu0 %1244
      %1246 = vrot.lane.b32.xlu0 %v654, 16
      %v1247 = vpop.permute.xlu0 %1246
      %1248 = vrot.lane.b32.xlu0 %v655, 16
      %v1249 = vpop.permute.xlu0 %1248
      %1250 = vrot.lane.b32.xlu0 %v656, 16
      %v1251 = vpop.permute.xlu0 %1250
      %1252 = vrot.lane.b32.xlu0 %v657, 16
      %v1253 = vpop.permute.xlu0 %1252
      %1254 = vrot.lane.b32.xlu0 %v658, 16
      %v1255 = vpop.permute.xlu0 %1254
      %1256 = vrot.lane.b32.xlu0 %v659, 16
      %v1257 = vpop.permute.xlu0 %1256
      %1258 = vrot.lane.b32.xlu0 %v660, 16
      %v1259 = vpop.permute.xlu0 %1258
      %1260 = vrot.lane.b32.xlu0 %v661, 16
      %v1261 = vpop.permute.xlu0 %1260
      %1262 = vrot.lane.b32.xlu0 %v662, 16
      %v1263 = vpop.permute.xlu0 %1262
      %1264 = vrot.lane.b32.xlu0 %v663, 16
      %v1265 = vpop.permute.xlu0 %1264
      %1266 = vrot.lane.b32.xlu0 %v664, 16
      %v1267 = vpop.permute.xlu0 %1266
      %1268 = vrot.lane.b32.xlu0 %v665, 16
      %v1269 = vpop.permute.xlu0 %1268
      %1270 = vrot.lane.b32.xlu0 %v666, 16
      %v1271 = vpop.permute.xlu0 %1270
      %1272 = vrot.lane.b32.xlu0 %v667, 16
      %v1273 = vpop.permute.xlu0 %1272
      %1274 = vrot.lane.b32.xlu0 %v668, 16
      %v1275 = vpop.permute.xlu0 %1274
      %1276 = vrot.lane.b32.xlu0 %v669, 16
      %v1277 = vpop.permute.xlu0 %1276
      %1278 = vrot.lane.b32.xlu0 %v670, 16
      %v1279 = vpop.permute.xlu0 %1278
      %1344 = vrot.lane.b32.xlu0 %v671, 20
      %v1345 = vpop.permute.xlu0 %1344
      %1346 = vrot.lane.b32.xlu0 %v672, 20
      %v1347 = vpop.permute.xlu0 %1346
      %1348 = vrot.lane.b32.xlu0 %v673, 20
      %v1349 = vpop.permute.xlu0 %1348
      %1350 = vrot.lane.b32.xlu0 %v674, 20
      %v1351 = vpop.permute.xlu0 %1350
      %1352 = vrot.lane.b32.xlu0 %v675, 20
      %v1353 = vpop.permute.xlu0 %1352
      %1354 = vrot.lane.b32.xlu0 %v676, 20
      %v1355 = vpop.permute.xlu0 %1354
      %1356 = vrot.lane.b32.xlu0 %v677, 20
      %v1357 = vpop.permute.xlu0 %1356
      %1358 = vrot.lane.b32.xlu0 %v678, 20
      %v1359 = vpop.permute.xlu0 %1358
      %1360 = vrot.lane.b32.xlu0 %v679, 20
      %v1361 = vpop.permute.xlu0 %1360
      %1362 = vrot.lane.b32.xlu0 %v680, 20
      %v1363 = vpop.permute.xlu0 %1362
      %1364 = vrot.lane.b32.xlu0 %v681, 20
      %v1365 = vpop.permute.xlu0 %1364
      %1366 = vrot.lane.b32.xlu0 %v682, 20
      %v1367 = vpop.permute.xlu0 %1366
      %1368 = vrot.lane.b32.xlu0 %v683, 20
      %v1369 = vpop.permute.xlu0 %1368
      %1370 = vrot.lane.b32.xlu0 %v684, 20
      %v1371 = vpop.permute.xlu0 %1370
      %1372 = vrot.lane.b32.xlu0 %v685, 20
      %v1373 = vpop.permute.xlu0 %1372
      %1374 = vrot.lane.b32.xlu0 %v686, 20
      %v1375 = vpop.permute.xlu0 %1374
      %1376 = vrot.lane.b32.xlu0 %v687, 20
      %v1377 = vpop.permute.xlu0 %1376
      %1378 = vrot.lane.b32.xlu0 %v688, 20
      %v1379 = vpop.permute.xlu0 %1378
      %1380 = vrot.lane.b32.xlu0 %v689, 20
      %v1381 = vpop.permute.xlu0 %1380
      %1382 = vrot.lane.b32.xlu0 %v690, 20
      %v1383 = vpop.permute.xlu0 %1382
      %1384 = vrot.lane.b32.xlu0 %v691, 20
      %v1385 = vpop.permute.xlu0 %1384
      %1386 = vrot.lane.b32.xlu0 %v692, 20
      %v1387 = vpop.permute.xlu0 %1386
      %1388 = vrot.lane.b32.xlu0 %v693, 20
      %v1389 = vpop.permute.xlu0 %1388
      %1390 = vrot.lane.b32.xlu0 %v694, 20
      %v1391 = vpop.permute.xlu0 %1390
      %1392 = vrot.lane.b32.xlu0 %v695, 20
      %v1393 = vpop.permute.xlu0 %1392
      %1394 = vrot.lane.b32.xlu0 %v696, 20
      %v1395 = vpop.permute.xlu0 %1394
      %1396 = vrot.lane.b32.xlu0 %v697, 20
      %v1397 = vpop.permute.xlu0 %1396
      %1398 = vrot.lane.b32.xlu0 %v698, 20
      %v1399 = vpop.permute.xlu0 %1398
      %1400 = vrot.lane.b32.xlu0 %v699, 20
      %v1401 = vpop.permute.xlu0 %1400
      %1402 = vrot.lane.b32.xlu0 %v700, 20
      %v1403 = vpop.permute.xlu0 %1402
      %1404 = vrot.lane.b32.xlu0 %v701, 20
      %v1405 = vpop.permute.xlu0 %1404
      %1406 = vrot.lane.b32.xlu0 %v702, 20
      %v1407 = vpop.permute.xlu0 %1406
      %1472 = vrot.lane.b32.xlu0 %v704, 24
      %v1473 = vpop.permute.xlu0 %1472
      %1474 = vrot.lane.b32.xlu0 %v705, 24
      %v1475 = vpop.permute.xlu0 %1474
      %1476 = vrot.lane.b32.xlu0 %v706, 24
      %v1477 = vpop.permute.xlu0 %1476
      %1478 = vrot.lane.b32.xlu0 %v707, 24
      %v1479 = vpop.permute.xlu0 %1478
      %1480 = vrot.lane.b32.xlu0 %v708, 24
      %v1481 = vpop.permute.xlu0 %1480
      %1482 = vrot.lane.b32.xlu0 %v709, 24
      %v1483 = vpop.permute.xlu0 %1482
      %1484 = vrot.lane.b32.xlu0 %v710, 24
      %v1485 = vpop.permute.xlu0 %1484
      %1486 = vrot.lane.b32.xlu0 %v711, 24
      %v1487 = vpop.permute.xlu0 %1486
      %1488 = vrot.lane.b32.xlu0 %v712, 24
      %v1489 = vpop.permute.xlu0 %1488
      %1490 = vrot.lane.b32.xlu0 %v713, 24
      %v1491 = vpop.permute.xlu0 %1490
      %1492 = vrot.lane.b32.xlu0 %v714, 24
      %v1493 = vpop.permute.xlu0 %1492
      %1494 = vrot.lane.b32.xlu0 %v715, 24
      %v1495 = vpop.permute.xlu0 %1494
      %1496 = vrot.lane.b32.xlu0 %v716, 24
      %v1497 = vpop.permute.xlu0 %1496
      %1498 = vrot.lane.b32.xlu0 %v717, 24
      %v1499 = vpop.permute.xlu0 %1498
      %1500 = vrot.lane.b32.xlu0 %v718, 24
      %v1501 = vpop.permute.xlu0 %1500
      %1502 = vrot.lane.b32.xlu0 %v719, 24
      %v1503 = vpop.permute.xlu0 %1502
      %1504 = vrot.lane.b32.xlu0 %v720, 24
      %v1505 = vpop.permute.xlu0 %1504
      %1506 = vrot.lane.b32.xlu0 %v721, 24
      %v1507 = vpop.permute.xlu0 %1506
      %1508 = vrot.lane.b32.xlu0 %v722, 24
      %v1509 = vpop.permute.xlu0 %1508
      %1510 = vrot.lane.b32.xlu0 %v723, 24
      %v1511 = vpop.permute.xlu0 %1510
      %1512 = vrot.lane.b32.xlu0 %v724, 24
      %v1513 = vpop.permute.xlu0 %1512
      %1514 = vrot.lane.b32.xlu0 %v725, 24
      %v1515 = vpop.permute.xlu0 %1514
      %1516 = vrot.lane.b32.xlu0 %v726, 24
      %v1517 = vpop.permute.xlu0 %1516
      %1518 = vrot.lane.b32.xlu0 %v727, 24
      %v1519 = vpop.permute.xlu0 %1518
      %1520 = vrot.lane.b32.xlu0 %v728, 24
      %v1521 = vpop.permute.xlu0 %1520
      %1522 = vrot.lane.b32.xlu0 %v729, 24
      %v1523 = vpop.permute.xlu0 %1522
      %1524 = vrot.lane.b32.xlu0 %v730, 24
      %v1525 = vpop.permute.xlu0 %1524
      %1526 = vrot.lane.b32.xlu0 %v731, 24
      %v1527 = vpop.permute.xlu0 %1526
      %1528 = vrot.lane.b32.xlu0 %v732, 24
      %v1529 = vpop.permute.xlu0 %1528
      %1530 = vrot.lane.b32.xlu0 %v733, 24
      %v1531 = vpop.permute.xlu0 %1530
      %1532 = vrot.lane.b32.xlu0 %v734, 24
      %v1533 = vpop.permute.xlu0 %1532
      %1534 = vrot.lane.b32.xlu0 %v735, 24
      %v1535 = vpop.permute.xlu0 %1534
      %1600 = vrot.lane.b32.xlu0 %v736, 28
      %v1601 = vpop.permute.xlu0 %1600
      %1602 = vrot.lane.b32.xlu0 %v737, 28
      %v1603 = vpop.permute.xlu0 %1602
      %1604 = vrot.lane.b32.xlu0 %v738, 28
      %v1605 = vpop.permute.xlu0 %1604
      %1606 = vrot.lane.b32.xlu0 %v739, 28
      %v1607 = vpop.permute.xlu0 %1606
      %1608 = vrot.lane.b32.xlu0 %v740, 28
      %v1609 = vpop.permute.xlu0 %1608
      %1610 = vrot.lane.b32.xlu0 %v741, 28
      %v1611 = vpop.permute.xlu0 %1610
      %1612 = vrot.lane.b32.xlu0 %v742, 28
      %v1613 = vpop.permute.xlu0 %1612
      %1614 = vrot.lane.b32.xlu0 %v743, 28
      %v1615 = vpop.permute.xlu0 %1614
      %1616 = vrot.lane.b32.xlu0 %v744, 28
      %v1617 = vpop.permute.xlu0 %1616
      %1618 = vrot.lane.b32.xlu0 %v745, 28
      %v1619 = vpop.permute.xlu0 %1618
      %1620 = vrot.lane.b32.xlu0 %v746, 28
      %v1621 = vpop.permute.xlu0 %1620
      %1622 = vrot.lane.b32.xlu0 %v747, 28
      %v1623 = vpop.permute.xlu0 %1622
      %1624 = vrot.lane.b32.xlu0 %v748, 28
      %v1625 = vpop.permute.xlu0 %1624
      %1626 = vrot.lane.b32.xlu0 %v749, 28
      %v1627 = vpop.permute.xlu0 %1626
      %1628 = vrot.lane.b32.xlu0 %v750, 28
      %v1629 = vpop.permute.xlu0 %1628
      %1630 = vrot.lane.b32.xlu0 %v751, 28
      %v1631 = vpop.permute.xlu0 %1630
      %1632 = vrot.lane.b32.xlu0 %v752, 28
      %v1633 = vpop.permute.xlu0 %1632
      %1634 = vrot.lane.b32.xlu0 %v753, 28
      %v1635 = vpop.permute.xlu0 %1634
      %1636 = vrot.lane.b32.xlu0 %v754, 28
      %v1637 = vpop.permute.xlu0 %1636
      %1638 = vrot.lane.b32.xlu0 %v755, 28
      %v1639 = vpop.permute.xlu0 %1638
      %1640 = vrot.lane.b32.xlu0 %v756, 28
      %v1641 = vpop.permute.xlu0 %1640
      %1642 = vrot.lane.b32.xlu0 %v757, 28
      %v1643 = vpop.permute.xlu0 %1642
      %1644 = vrot.lane.b32.xlu0 %v758, 28
      %v1645 = vpop.permute.xlu0 %1644
      %1646 = vrot.lane.b32.xlu0 %v759, 28
      %v1647 = vpop.permute.xlu0 %1646
      %1648 = vrot.lane.b32.xlu0 %v760, 28
      %v1649 = vpop.permute.xlu0 %1648
      %1650 = vrot.lane.b32.xlu0 %v761, 28
      %v1651 = vpop.permute.xlu0 %1650
      %1652 = vrot.lane.b32.xlu0 %v762, 28
      %v1653 = vpop.permute.xlu0 %1652
      %1654 = vrot.lane.b32.xlu0 %v763, 28
      %v1655 = vpop.permute.xlu0 %1654
      %1656 = vrot.lane.b32.xlu0 %v764, 28
      %v1657 = vpop.permute.xlu0 %1656
      %1658 = vrot.lane.b32.xlu0 %v765, 28
      %v1659 = vpop.permute.xlu0 %1658
      %1660 = vrot.lane.b32.xlu0 %v766, 28
      %v1661 = vpop.permute.xlu0 %1660
      %1662 = vrot.lane.b32.xlu0 %v767, 28
      %v1663 = vpop.permute.xlu0 %1662
      %1728 = vrot.lane.b32.xlu0 %v768, 32
      %v1729 = vpop.permute.xlu0 %1728
      %1730 = vrot.lane.b32.xlu0 %v769, 32
      %v1731 = vpop.permute.xlu0 %1730
      %1732 = vrot.lane.b32.xlu0 %v770, 32
      %v1733 = vpop.permute.xlu0 %1732
      %1734 = vrot.lane.b32.xlu0 %v771, 32
      %v1735 = vpop.permute.xlu0 %1734
      %1736 = vrot.lane.b32.xlu0 %v772, 32
      %v1737 = vpop.permute.xlu0 %1736
      %1738 = vrot.lane.b32.xlu0 %v773, 32
      %v1739 = vpop.permute.xlu0 %1738
      %1740 = vrot.lane.b32.xlu0 %v774, 32
      %v1741 = vpop.permute.xlu0 %1740
      %1742 = vrot.lane.b32.xlu0 %v775, 32
      %v1743 = vpop.permute.xlu0 %1742
      %1744 = vrot.lane.b32.xlu0 %v776, 32
      %v1745 = vpop.permute.xlu0 %1744
      %1746 = vrot.lane.b32.xlu0 %v777, 32
      %v1747 = vpop.permute.xlu0 %1746
      %1748 = vrot.lane.b32.xlu0 %v778, 32
      %v1749 = vpop.permute.xlu0 %1748
      %1750 = vrot.lane.b32.xlu0 %v779, 32
      %v1751 = vpop.permute.xlu0 %1750
      %1752 = vrot.lane.b32.xlu0 %v780, 32
      %v1753 = vpop.permute.xlu0 %1752
      %1754 = vrot.lane.b32.xlu0 %v781, 32
      %v1755 = vpop.permute.xlu0 %1754
      %1756 = vrot.lane.b32.xlu0 %v782, 32
      %v1757 = vpop.permute.xlu0 %1756
      %1758 = vrot.lane.b32.xlu0 %v783, 32
      %v1759 = vpop.permute.xlu0 %1758
      %1760 = vrot.lane.b32.xlu0 %v784, 32
      %v1761 = vpop.permute.xlu0 %1760
      %1762 = vrot.lane.b32.xlu0 %v785, 32
      %v1763 = vpop.permute.xlu0 %1762
      %1764 = vrot.lane.b32.xlu0 %v786, 32
      %v1765 = vpop.permute.xlu0 %1764
      %1766 = vrot.lane.b32.xlu0 %v787, 32
      %v1767 = vpop.permute.xlu0 %1766
      %1768 = vrot.lane.b32.xlu0 %v788, 32
      %v1769 = vpop.permute.xlu0 %1768
      %1770 = vrot.lane.b32.xlu0 %v789, 32
      %v1771 = vpop.permute.xlu0 %1770
      %1772 = vrot.lane.b32.xlu0 %v790, 32
      %v1773 = vpop.permute.xlu0 %1772
      %1774 = vrot.lane.b32.xlu0 %v791, 32
      %v1775 = vpop.permute.xlu0 %1774
      %1776 = vrot.lane.b32.xlu0 %v792, 32
      %v1777 = vpop.permute.xlu0 %1776
      %1778 = vrot.lane.b32.xlu0 %v793, 32
      %v1779 = vpop.permute.xlu0 %1778
      %1780 = vrot.lane.b32.xlu0 %v794, 32
      %v1781 = vpop.permute.xlu0 %1780
      %1782 = vrot.lane.b32.xlu0 %v795, 32
      %v1783 = vpop.permute.xlu0 %1782
      %1784 = vrot.lane.b32.xlu0 %v796, 32
      %v1785 = vpop.permute.xlu0 %1784
      %1786 = vrot.lane.b32.xlu0 %v797, 32
      %v1787 = vpop.permute.xlu0 %1786
      %1788 = vrot.lane.b32.xlu0 %v798, 32
      %v1789 = vpop.permute.xlu0 %1788
      %1790 = vrot.lane.b32.xlu0 %v799, 32
      %v1791 = vpop.permute.xlu0 %1790
      %v1824 = vsel %vm280, %v511, %v833
      %v1825 = vsel %vm280, %v512, %v835
      %v1826 = vsel %vm280, %v513, %v837
      %v1827 = vsel %vm280, %v514, %v839
      %v1828 = vsel %vm280, %v515, %v841
      %v1829 = vsel %vm280, %v516, %v843
      %v1830 = vsel %vm280, %v517, %v845
      %v1831 = vsel %vm280, %v518, %v847
      %v1832 = vsel %vm280, %v519, %v849
      %v1833 = vsel %vm280, %v520, %v851
      %v1834 = vsel %vm280, %v521, %v853
      %v1835 = vsel %vm280, %v522, %v855
      %v1836 = vsel %vm280, %v523, %v857
      %v1837 = vsel %vm280, %v524, %v859
      %v1838 = vsel %vm280, %v525, %v861
      %v1839 = vsel %vm280, %v526, %v863
      %v1840 = vsel %vm280, %v527, %v865
      %v1841 = vsel %vm280, %v528, %v867
      %v1842 = vsel %vm280, %v529, %v869
      %v1843 = vsel %vm280, %v530, %v871
      %v1844 = vsel %vm280, %v531, %v873
      %v1845 = vsel %vm280, %v532, %v875
      %v1846 = vsel %vm280, %v533, %v877
      %v1847 = vsel %vm280, %v534, %v879
      %v1848 = vsel %vm280, %v535, %v881
      %v1849 = vsel %vm280, %v536, %v883
      %v1850 = vsel %vm280, %v537, %v885
      %v1851 = vsel %vm280, %v538, %v887
      %v1852 = vsel %vm280, %v539, %v889
      %v1853 = vsel %vm280, %v540, %v891
      %v1854 = vsel %vm280, %v541, %v893
      %v1855 = vsel %vm280, %v542, %v895
      %vm1856 = vcmask 64512
      %v1857 = vsel %vm1856, %v1824, %v961
      %v1858 = vsel %vm1856, %v1825, %v963
      %v1859 = vsel %vm1856, %v1826, %v965
      %v1860 = vsel %vm1856, %v1827, %v967
      %v1861 = vsel %vm1856, %v1828, %v969
      %v1862 = vsel %vm1856, %v1829, %v971
      %v1863 = vsel %vm1856, %v1830, %v973
      %v1864 = vsel %vm1856, %v1831, %v975
      %v1865 = vsel %vm1856, %v1832, %v977
      %v1866 = vsel %vm1856, %v1833, %v979
      %v1867 = vsel %vm1856, %v1834, %v981
      %v1868 = vsel %vm1856, %v1835, %v983
      %v1869 = vsel %vm1856, %v1836, %v985
      %v1870 = vsel %vm1856, %v1837, %v987
      %v1871 = vsel %vm1856, %v1838, %v989
      %v1872 = vsel %vm1856, %v1839, %v991
      %v1873 = vsel %vm1856, %v1840, %v993
      %v1874 = vsel %vm1856, %v1841, %v995
      %v1875 = vsel %vm1856, %v1842, %v997
      %v1876 = vsel %vm1856, %v1843, %v999
      %v1877 = vsel %vm1856, %v1844, %v1001
      %v1878 = vsel %vm1856, %v1845, %v1003
      %v1879 = vsel %vm1856, %v1846, %v1005
      %v1880 = vsel %vm1856, %v1847, %v1007
      %v1881 = vsel %vm1856, %v1848, %v1009
      %v1882 = vsel %vm1856, %v1849, %v1011
      %v1883 = vsel %vm1856, %v1850, %v1013
      %v1884 = vsel %vm1856, %v1851, %v1015
      %v1885 = vsel %vm1856, %v1852, %v1017
      %v1886 = vsel %vm1856, %v1853, %v1019
      %v1887 = vsel %vm1856, %v1854, %v1021
      %v1888 = vsel %vm1856, %v1855, %v1023
      %vm1889 = vcmask 97280
      %v1890 = vsel %vm1889, %v1857, %v1089
      %v1891 = vsel %vm1889, %v1858, %v1091
      %v1892 = vsel %vm1889, %v1859, %v1093
      %v1893 = vsel %vm1889, %v1860, %v1095
      %v1894 = vsel %vm1889, %v1861, %v1097
      %v1895 = vsel %vm1889, %v1862, %v1099
      %v1896 = vsel %vm1889, %v1863, %v1101
      %v1897 = vsel %vm1889, %v1864, %v1103
      %v1898 = vsel %vm1889, %v1865, %v1105
      %v1899 = vsel %vm1889, %v1866, %v1107
      %v1900 = vsel %vm1889, %v1867, %v1109
      %v1901 = vsel %vm1889, %v1868, %v1111
      %v1902 = vsel %vm1889, %v1869, %v1113
      %v1903 = vsel %vm1889, %v1870, %v1115
      %v1904 = vsel %vm1889, %v1871, %v1117
      %v1905 = vsel %vm1889, %v1872, %v1119
      %v1906 = vsel %vm1889, %v1873, %v1121
      %v1907 = vsel %vm1889, %v1874, %v1123
      %v1908 = vsel %vm1889, %v1875, %v1125
      %v1909 = vsel %vm1889, %v1876, %v1127
      %v1910 = vsel %vm1889, %v1877, %v1129
      %v1911 = vsel %vm1889, %v1878, %v1131
      %v1912 = vsel %vm1889, %v1879, %v1133
      %v1913 = vsel %vm1889, %v1880, %v1135
      %v1914 = vsel %vm1889, %v1881, %v1137
      %v1915 = vsel %vm1889, %v1882, %v1139
      %v1916 = vsel %vm1889, %v1883, %v1141
      %v1917 = vsel %vm1889, %v1884, %v1143
      %v1918 = vsel %vm1889, %v1885, %v1145
      %v1919 = vsel %vm1889, %v1886, %v1147
      %v1920 = vsel %vm1889, %v1887, %v1149
      %v1921 = vsel %vm1889, %v1888, %v1151
      %vm1922 = vcmask 130048
      %v1923 = vsel %vm1922, %v1890, %v1217
      %v1924 = vsel %vm1922, %v1891, %v1219
      %v1925 = vsel %vm1922, %v1892, %v1221
      %v1926 = vsel %vm1922, %v1893, %v1223
      %v1927 = vsel %vm1922, %v1894, %v1225
      %v1928 = vsel %vm1922, %v1895, %v1227
      %v1929 = vsel %vm1922, %v1896, %v1229
      %v1930 = vsel %vm1922, %v1897, %v1231
      %v1931 = vsel %vm1922, %v1898, %v1233
      %v1932 = vsel %vm1922, %v1899, %v1235
      %v1933 = vsel %vm1922, %v1900, %v1237
      %v1934 = vsel %vm1922, %v1901, %v1239
      %v1935 = vsel %vm1922, %v1902, %v1241
      %v1936 = vsel %vm1922, %v1903, %v1243
      %v1937 = vsel %vm1922, %v1904, %v1245
      %v1938 = vsel %vm1922, %v1905, %v1247
      %v1939 = vsel %vm1922, %v1906, %v1249
      %v1940 = vsel %vm1922, %v1907, %v1251
      %v1941 = vsel %vm1922, %v1908, %v1253
      %v1942 = vsel %vm1922, %v1909, %v1255
      %v1943 = vsel %vm1922, %v1910, %v1257
      %v1944 = vsel %vm1922, %v1911, %v1259
      %v1945 = vsel %vm1922, %v1912, %v1261
      %v1946 = vsel %vm1922, %v1913, %v1263
      %v1947 = vsel %vm1922, %v1914, %v1265
      %v1948 = vsel %vm1922, %v1915, %v1267
      %v1949 = vsel %vm1922, %v1916, %v1269
      %v1950 = vsel %vm1922, %v1917, %v1271
      %v1951 = vsel %vm1922, %v1918, %v1273
      %v1952 = vsel %vm1922, %v1919, %v1275
      %v1953 = vsel %vm1922, %v1920, %v1277
      %v1954 = vsel %vm1922, %v1921, %v1279
      %vm1955 = vcmask 162816
      %v1956 = vsel %vm1955, %v1923, %v1345
      %v1957 = vsel %vm1955, %v1924, %v1347
      %v1958 = vsel %vm1955, %v1925, %v1349
      %v1959 = vsel %vm1955, %v1926, %v1351
      %v1960 = vsel %vm1955, %v1927, %v1353
      %v1961 = vsel %vm1955, %v1928, %v1355
      %v1962 = vsel %vm1955, %v1929, %v1357
      %v1963 = vsel %vm1955, %v1930, %v1359
      %v1964 = vsel %vm1955, %v1931, %v1361
      %v1965 = vsel %vm1955, %v1932, %v1363
      %v1966 = vsel %vm1955, %v1933, %v1365
      %v1967 = vsel %vm1955, %v1934, %v1367
      %v1968 = vsel %vm1955, %v1935, %v1369
      %v1969 = vsel %vm1955, %v1936, %v1371
      %v1970 = vsel %vm1955, %v1937, %v1373
      %v1971 = vsel %vm1955, %v1938, %v1375
      %v1972 = vsel %vm1955, %v1939, %v1377
      %v1973 = vsel %vm1955, %v1940, %v1379
      %v1974 = vsel %vm1955, %v1941, %v1381
      %v1975 = vsel %vm1955, %v1942, %v1383
      %v1976 = vsel %vm1955, %v1943, %v1385
      %v1977 = vsel %vm1955, %v1944, %v1387
      %v1978 = vsel %vm1955, %v1945, %v1389
      %v1979 = vsel %vm1955, %v1946, %v1391
      %v1980 = vsel %vm1955, %v1947, %v1393
      %v1981 = vsel %vm1955, %v1948, %v1395
      %v1982 = vsel %vm1955, %v1949, %v1397
      %v1983 = vsel %vm1955, %v1950, %v1399
      %v1984 = vsel %vm1955, %v1951, %v1401
      %v1985 = vsel %vm1955, %v1952, %v1403
      %v1986 = vsel %vm1955, %v1953, %v1405
      %v1987 = vsel %vm1955, %v1954, %v1407
      %vm1988 = vcmask 195584
      %v1989 = vsel %vm1988, %v1956, %v1473
      %v1990 = vsel %vm1988, %v1957, %v1475
      %v1991 = vsel %vm1988, %v1958, %v1477
      %v1992 = vsel %vm1988, %v1959, %v1479
      %v1993 = vsel %vm1988, %v1960, %v1481
      %v1994 = vsel %vm1988, %v1961, %v1483
      %v1995 = vsel %vm1988, %v1962, %v1485
      %v1996 = vsel %vm1988, %v1963, %v1487
      %v1997 = vsel %vm1988, %v1964, %v1489
      %v1998 = vsel %vm1988, %v1965, %v1491
      %v1999 = vsel %vm1988, %v1966, %v1493
      %v2000 = vsel %vm1988, %v1967, %v1495
      %v2001 = vsel %vm1988, %v1968, %v1497
      %v2002 = vsel %vm1988, %v1969, %v1499
      %v2003 = vsel %vm1988, %v1970, %v1501
      %v2004 = vsel %vm1988, %v1971, %v1503
      %v2005 = vsel %vm1988, %v1972, %v1505
      %v2006 = vsel %vm1988, %v1973, %v1507
      %v2007 = vsel %vm1988, %v1974, %v1509
      %v2008 = vsel %vm1988, %v1975, %v1511
      %v2009 = vsel %vm1988, %v1976, %v1513
      %v2010 = vsel %vm1988, %v1977, %v1515
      %v2011 = vsel %vm1988, %v1978, %v1517
      %v2012 = vsel %vm1988, %v1979, %v1519
      %v2013 = vsel %vm1988, %v1980, %v1521
      %v2014 = vsel %vm1988, %v1981, %v1523
      %v2015 = vsel %vm1988, %v1982, %v1525
      %v2016 = vsel %vm1988, %v1983, %v1527
      %v2017 = vsel %vm1988, %v1984, %v1529
      %v2018 = vsel %vm1988, %v1985, %v1531
      %v2019 = vsel %vm1988, %v1986, %v1533
      %v2020 = vsel %vm1988, %v1987, %v1535
      %vm2021 = vcmask 228352
      %v2022 = vsel %vm2021, %v1989, %v1601
      %v2023 = vsel %vm2021, %v1990, %v1603
      %v2024 = vsel %vm2021, %v1991, %v1605
      %v2025 = vsel %vm2021, %v1992, %v1607
      %v2026 = vsel %vm2021, %v1993, %v1609
      %v2027 = vsel %vm2021, %v1994, %v1611
      %v2028 = vsel %vm2021, %v1995, %v1613
      %v2029 = vsel %vm2021, %v1996, %v1615
      %v2030 = vsel %vm2021, %v1997, %v1617
      %v2031 = vsel %vm2021, %v1998, %v1619
      %v2032 = vsel %vm2021, %v1999, %v1621
      %v2033 = vsel %vm2021, %v2000, %v1623
      %v2034 = vsel %vm2021, %v2001, %v1625
      %v2035 = vsel %vm2021, %v2002, %v1627
      %v2036 = vsel %vm2021, %v2003, %v1629
      %v2037 = vsel %vm2021, %v2004, %v1631
      %v2038 = vsel %vm2021, %v2005, %v1633
      %v2039 = vsel %vm2021, %v2006, %v1635
      %v2040 = vsel %vm2021, %v2007, %v1637
      %v2041 = vsel %vm2021, %v2008, %v1639
      %v2042 = vsel %vm2021, %v2009, %v1641
      %v2043 = vsel %vm2021, %v2010, %v1643
      %v2044 = vsel %vm2021, %v2011, %v1645
      %v2045 = vsel %vm2021, %v2012, %v1647
      %v2046 = vsel %vm2021, %v2013, %v1649
      %v2047 = vsel %vm2021, %v2014, %v1651
      %v2048 = vsel %vm2021, %v2015, %v1653
      %v2049 = vsel %vm2021, %v2016, %v1655
      %v2050 = vsel %vm2021, %v2017, %v1657
      %v2051 = vsel %vm2021, %v2018, %v1659
      %v2052 = vsel %vm2021, %v2019, %v1661
      %v2053 = vsel %vm2021, %v2020, %v1663
      %vm2054 = vcmask 261120
      %v2055 = vsel %vm2054, %v2022, %v1729
      %v2056 = vsel %vm2054, %v2023, %v1731
      %v2057 = vsel %vm2054, %v2024, %v1733
      %v2058 = vsel %vm2054, %v2025, %v1735
      %v2059 = vsel %vm2054, %v2026, %v1737
      %v2060 = vsel %vm2054, %v2027, %v1739
      %v2061 = vsel %vm2054, %v2028, %v1741
      %v2062 = vsel %vm2054, %v2029, %v1743
      %v2063 = vsel %vm2054, %v2030, %v1745
      %v2064 = vsel %vm2054, %v2031, %v1747
      %v2065 = vsel %vm2054, %v2032, %v1749
      %v2066 = vsel %vm2054, %v2033, %v1751
      %v2067 = vsel %vm2054, %v2034, %v1753
      %v2068 = vsel %vm2054, %v2035, %v1755
      %v2069 = vsel %vm2054, %v2036, %v1757
      %v2070 = vsel %vm2054, %v2037, %v1759
      %v2071 = vsel %vm2054, %v2038, %v1761
      %v2072 = vsel %vm2054, %v2039, %v1763
      %v2073 = vsel %vm2054, %v2040, %v1765
      %v2074 = vsel %vm2054, %v2041, %v1767
      %v2075 = vsel %vm2054, %v2042, %v1769
      %v2076 = vsel %vm2054, %v2043, %v1771
      %v2077 = vsel %vm2054, %v2044, %v1773
      %v2078 = vsel %vm2054, %v2045, %v1775
      %v2079 = vsel %vm2054, %v2046, %v1777
      %v2080 = vsel %vm2054, %v2047, %v1779
      %v2081 = vsel %vm2054, %v2048, %v1781
      %v2082 = vsel %vm2054, %v2049, %v1783
      %v2083 = vsel %vm2054, %v2050, %v1785
      %v2084 = vsel %vm2054, %v2051, %v1787
      %v2085 = vsel %vm2054, %v2052, %v1789
      %v2086 = vsel %vm2054, %v2053, %v1791
      %v2087 = vpack.c.bf16 %v2056, %v2055
      %v2088 = vpack.c.bf16 %v2058, %v2057
      %v2089 = vpack.c.bf16 %v2060, %v2059
      %v2090 = vpack.c.bf16 %v2062, %v2061
      %v2091 = vpack.c.bf16 %v2064, %v2063
      %v2092 = vpack.c.bf16 %v2066, %v2065
      %v2093 = vpack.c.bf16 %v2068, %v2067
      %v2094 = vpack.c.bf16 %v2070, %v2069
      %v2095 = vpack.c.bf16 %v2072, %v2071
      %v2096 = vpack.c.bf16 %v2074, %v2073
      %v2097 = vpack.c.bf16 %v2076, %v2075
      %v2098 = vpack.c.bf16 %v2078, %v2077
      %v2099 = vpack.c.bf16 %v2080, %v2079
      %v2100 = vpack.c.bf16 %v2082, %v2081
      %v2101 = vpack.c.bf16 %v2084, %v2083
      %v2102 = vpack.c.bf16 %v2086, %v2085
      %v2103 = vld [vmem:[%s1] sm:$0xf]
      %v2104 = vld [vmem:[%s1 + $0x4] sm:$0xf]
      %v2105 = vld [vmem:[%s1 + $0x8] sm:$0xf]
      %v2106 = vld [vmem:[%s1 + $0xc] sm:$0xf]
      %v2107 = vld [vmem:[%s1 + $0x10] sm:$0x3]
      %v2108 = vld [vmem:[%s2] sm:$0x1]
      %v2110 = vlaneseq
      %v2111 = vshrl.u32 %v2110, 7
      %v2112 = vsub.s32 0, %v2111
      %v2113 = vrot.slane %v2108, %v2112
      %v2120 = vunpack.c.l.b16 %v2103
      %v2121 = vunpack.c.l.b16 %v2104
      %v2122 = vunpack.c.l.b16 %v2105
      %v2123 = vunpack.c.l.b16 %v2106
      %v2124 = vunpack.c.l.b16 %v2107
      %v2125 = vpack.c.b16 %v2121, %v2120
      %v2126 = vpack.c.b16 %v2123, %v2122
      %v2127 = vpack.c.b16 %v2124, %v2124
      %vm2130 = vcmask 293888
      %v2132 = vsel %vm2130, %v2087, 0
      %v2135 = vsel %vm2130, %v2088, 0
      %v2138 = vsel %vm2130, %v2089, 0
      %v2141 = vsel %vm2130, %v2090, 0
      %v2144 = vsel %vm2130, %v2091, 0
      %v2147 = vsel %vm2130, %v2092, 0
      %v2150 = vsel %vm2130, %v2093, 0
      %v2153 = vsel %vm2130, %v2094, 0
      %v2156 = vsel %vm2130, %v2095, 0
      %v2159 = vsel %vm2130, %v2096, 0
      %v2162 = vsel %vm2130, %v2097, 0
      %v2165 = vsel %vm2130, %v2098, 0
      %v2168 = vsel %vm2130, %v2099, 0
      %v2171 = vsel %vm2130, %v2100, 0
      %v2174 = vsel %vm2130, %v2101, 0
      %v2177 = vsel %vm2130, %v2102, 0
      %vm2179 = vcmask 1041408
      %v2181 = vsel %vm2179, %v2127, 0
      %2183 = vmatprep.subr.bf16.mxu0 0
      %2184 = vmatpush1.bf16.msra.mxu0 %v2125
      %2185 = vmatprep.subr.bf16.mxu0 0
      %2186 = vmatpush1.bf16.msra.mxu0 %v2126
      %2187 = vmatprep.subr.bf16.mxu0 0
      %2188 = vmatpush1.bf16.msra.mxu0 %v2181
      %2189 = vmatprep.subr.bf16.mxu0 0
      %2190 = vmatpush1.bf16.msra.mxu0 0
      %2191 = vmatprep.subr.bf16.mxu0 0
      %2192 = vmatpush1.bf16.msra.mxu0 0
      %2193 = vmatprep.subr.bf16.mxu0 0
      %2194 = vmatpush1.bf16.msra.mxu0 0
      %2195 = vmatprep.subr.bf16.mxu0 0
      %2196 = vmatpush1.bf16.msra.mxu0 0
      %2197 = vmatprep.subr.bf16.mxu0 0
      %2198 = vmatpush1.bf16.msra.mxu0 0
      %2199 = vmatprep.subr.bf16.mxu0 0
      %2200 = vmatpush1.bf16.msra.mxu0 0
      %2201 = vmatprep.subr.bf16.mxu0 0
      %2202 = vmatpush1.bf16.msra.mxu0 0
      %2203 = vmatprep.subr.bf16.mxu0 0
      %2204 = vmatpush1.bf16.msra.mxu0 0
      %2205 = vmatprep.subr.bf16.mxu0 0
      %2206 = vmatpush1.bf16.msra.mxu0 0
      %2207 = vmatprep.subr.bf16.mxu0 0
      %2208 = vmatpush1.bf16.msra.mxu0 0
      %2209 = vmatprep.subr.bf16.mxu0 0
      %2210 = vmatpush1.bf16.msra.mxu0 0
      %2211 = vmatprep.subr.bf16.mxu0 0
      %2212 = vmatpush1.bf16.msra.mxu0 0
      %2213 = vmatprep.subr.bf16.mxu0 0
      %2214 = vmatpush1.bf16.msra.mxu0 0
      %2215 = vmatprep.mubr.bf16.mxu0 0
      %2216 = vmatmul.mubr.bf16.gmra.mrb[0].mxu0 %v2132
      %v2217 = vpop.f32.mrb[0].mxu0
      %v2218 = vadd.f32 %v2113, %v2217
      %v2219 = vpop.f32.mrb[0].mxu0
      %v2220 = vpop.f32.mrb[0].mxu0
      %v2221 = vadd.f32 %v2113, %v2220
      %v2222 = vpop.f32.mrb[0].mxu0
      %2223 = vmatprep.mubr.bf16.mxu0 0
      %2224 = vmatmul.mubr.bf16.gmra.mrb[0].mxu0 %v2135
      %v2225 = vpop.f32.mrb[0].mxu0
      %v2226 = vadd.f32 %v2113, %v2225
      %v2227 = vpop.f32.mrb[0].mxu0
      %v2228 = vpop.f32.mrb[0].mxu0
      %v2229 = vadd.f32 %v2113, %v2228
      %v2230 = vpop.f32.mrb[0].mxu0
      %2231 = vmatprep.mubr.bf16.mxu0 0
      %2232 = vmatmul.mubr.bf16.gmra.mrb[0].mxu0 %v2138
      %v2233 = vpop.f32.mrb[0].mxu0
      %v2234 = vadd.f32 %v2113, %v2233
      %v2235 = vpop.f32.mrb[0].mxu0
      %v2236 = vpop.f32.mrb[0].mxu0
      %v2237 = vadd.f32 %v2113, %v2236
      %v2238 = vpop.f32.mrb[0].mxu0
      %2239 = vmatprep.mubr.bf16.mxu0 0
      %2240 = vmatmul.mubr.bf16.gmra.mrb[0].mxu0 %v2141
      %v2241 = vpop.f32.mrb[0].mxu0
      %v2242 = vadd.f32 %v2113, %v2241
      %v2243 = vpop.f32.mrb[0].mxu0
      %v2244 = vpop.f32.mrb[0].mxu0
      %v2245 = vadd.f32 %v2113, %v2244
      %v2246 = vpop.f32.mrb[0].mxu0
      %2247 = vmatprep.mubr.bf16.mxu0 0
      %2248 = vmatmul.mubr.bf16.gmra.mrb[0].mxu0 %v2144
      %v2249 = vpop.f32.mrb[0].mxu0
      %v2250 = vadd.f32 %v2113, %v2249
      %v2251 = vpop.f32.mrb[0].mxu0
      %v2252 = vpop.f32.mrb[0].mxu0
      %v2253 = vadd.f32 %v2113, %v2252
      %v2254 = vpop.f32.mrb[0].mxu0
      %2255 = vmatprep.mubr.bf16.mxu0 0
      %2256 = vmatmul.mubr.bf16.gmra.mrb[0].mxu0 %v2147
      %v2257 = vpop.f32.mrb[0].mxu0
      %v2258 = vadd.f32 %v2113, %v2257
      %v2259 = vpop.f32.mrb[0].mxu0
      %v2260 = vpop.f32.mrb[0].mxu0
      %v2261 = vadd.f32 %v2113, %v2260
      %v2262 = vpop.f32.mrb[0].mxu0
      %2263 = vmatprep.mubr.bf16.mxu0 0
      %2264 = vmatmul.mubr.bf16.gmra.mrb[0].mxu0 %v2150
      %v2265 = vpop.f32.mrb[0].mxu0
      %v2266 = vadd.f32 %v2113, %v2265
      %v2267 = vpop.f32.mrb[0].mxu0
      %v2268 = vpop.f32.mrb[0].mxu0
      %v2269 = vadd.f32 %v2113, %v2268
      %v2270 = vpop.f32.mrb[0].mxu0
      %2271 = vmatprep.mubr.bf16.mxu0 0
      %2272 = vmatmul.mubr.bf16.gmra.mrb[0].mxu0 %v2153
      %v2273 = vpop.f32.mrb[0].mxu0
      %v2274 = vadd.f32 %v2113, %v2273
      %v2275 = vpop.f32.mrb[0].mxu0
      %v2276 = vpop.f32.mrb[0].mxu0
      %v2277 = vadd.f32 %v2113, %v2276
      %v2278 = vpop.f32.mrb[0].mxu0
      %2279 = vmatprep.mubr.bf16.mxu0 0
      %2280 = vmatmul.mubr.bf16.gmra.mrb[0].mxu0 %v2156
      %v2281 = vpop.f32.mrb[0].mxu0
      %v2282 = vadd.f32 %v2113, %v2281
      %v2283 = vpop.f32.mrb[0].mxu0
      %v2284 = vpop.f32.mrb[0].mxu0
      %v2285 = vadd.f32 %v2113, %v2284
      %v2286 = vpop.f32.mrb[0].mxu0
      %2287 = vmatprep.mubr.bf16.mxu0 0
      %2288 = vmatmul.mubr.bf16.gmra.mrb[0].mxu0 %v2159
      %v2289 = vpop.f32.mrb[0].mxu0
      %v2290 = vadd.f32 %v2113, %v2289
      %v2291 = vpop.f32.mrb[0].mxu0
      %v2292 = vpop.f32.mrb[0].mxu0
      %v2293 = vadd.f32 %v2113, %v2292
      %v2294 = vpop.f32.mrb[0].mxu0
      %2295 = vmatprep.mubr.bf16.mxu0 0
      %2296 = vmatmul.mubr.bf16.gmra.mrb[0].mxu0 %v2162
      %v2297 = vpop.f32.mrb[0].mxu0
      %v2298 = vadd.f32 %v2113, %v2297
      %v2299 = vpop.f32.mrb[0].mxu0
      %v2300 = vpop.f32.mrb[0].mxu0
      %v2301 = vadd.f32 %v2113, %v2300
      %v2302 = vpop.f32.mrb[0].mxu0
      %2303 = vmatprep.mubr.bf16.mxu0 0
      %2304 = vmatmul.mubr.bf16.gmra.mrb[0].mxu0 %v2165
      %v2305 = vpop.f32.mrb[0].mxu0
      %v2306 = vadd.f32 %v2113, %v2305
      %v2307 = vpop.f32.mrb[0].mxu0
      %v2308 = vpop.f32.mrb[0].mxu0
      %v2309 = vadd.f32 %v2113, %v2308
      %v2310 = vpop.f32.mrb[0].mxu0
      %2311 = vmatprep.mubr.bf16.mxu0 0
      %2312 = vmatmul.mubr.bf16.gmra.mrb[0].mxu0 %v2168
      %v2313 = vpop.f32.mrb[0].mxu0
      %v2314 = vadd.f32 %v2113, %v2313
      %v2315 = vpop.f32.mrb[0].mxu0
      %v2316 = vpop.f32.mrb[0].mxu0
      %v2317 = vadd.f32 %v2113, %v2316
      %v2318 = vpop.f32.mrb[0].mxu0
      %2319 = vmatprep.mubr.bf16.mxu0 0
      %2320 = vmatmul.mubr.bf16.gmra.mrb[0].mxu0 %v2171
      %v2321 = vpop.f32.mrb[0].mxu0
      %v2322 = vadd.f32 %v2113, %v2321
      %v2323 = vpop.f32.mrb[0].mxu0
      %v2324 = vpop.f32.mrb[0].mxu0
      %v2325 = vadd.f32 %v2113, %v2324
      %v2326 = vpop.f32.mrb[0].mxu0
      %2327 = vmatprep.mubr.bf16.mxu0 0
      %2328 = vmatmul.mubr.bf16.gmra.mrb[0].mxu0 %v2174
      %v2329 = vpop.f32.mrb[0].mxu0
      %v2330 = vadd.f32 %v2113, %v2329
      %v2331 = vpop.f32.mrb[0].mxu0
      %v2332 = vpop.f32.mrb[0].mxu0
      %v2333 = vadd.f32 %v2113, %v2332
      %v2334 = vpop.f32.mrb[0].mxu0
      %2335 = vmatprep.mubr.bf16.mxu0 0
      %2336 = vmatmul.mubr.bf16.gmra.mrb[0].mxu0 %v2177
      %v2337 = vpop.f32.mrb[0].mxu0
      %v2338 = vadd.f32 %v2113, %v2337
      %v2339 = vpop.f32.mrb[0].mxu0
      %v2340 = vpop.f32.mrb[0].mxu0
      %v2341 = vadd.f32 %v2113, %v2340
      %v2342 = vpop.f32.mrb[0].mxu0
      %2343 = vdwg.mxu0
      %v2344 = vmax.f32 %v2218, 0.0
      %v2345 = vmax.f32 %v2221, 0.0
      %v2346 = vmax.f32 %v2226, 0.0
      %v2347 = vmax.f32 %v2229, 0.0
      %v2348 = vmax.f32 %v2234, 0.0
      %v2349 = vmax.f32 %v2237, 0.0
      %v2350 = vmax.f32 %v2242, 0.0
      %v2351 = vmax.f32 %v2245, 0.0
      %v2352 = vmax.f32 %v2250, 0.0
      %v2353 = vmax.f32 %v2253, 0.0
      %v2354 = vmax.f32 %v2258, 0.0
      %v2355 = vmax.f32 %v2261, 0.0
      %v2356 = vmax.f32 %v2266, 0.0
      %v2357 = vmax.f32 %v2269, 0.0
      %v2358 = vmax.f32 %v2274, 0.0
      %v2359 = vmax.f32 %v2277, 0.0
      %v2360 = vmax.f32 %v2282, 0.0
      %v2361 = vmax.f32 %v2285, 0.0
      %v2362 = vmax.f32 %v2290, 0.0
      %v2363 = vmax.f32 %v2293, 0.0
      %v2364 = vmax.f32 %v2298, 0.0
      %v2365 = vmax.f32 %v2301, 0.0
      %v2366 = vmax.f32 %v2306, 0.0
      %v2367 = vmax.f32 %v2309, 0.0
      %v2368 = vmax.f32 %v2314, 0.0
      %v2369 = vmax.f32 %v2317, 0.0
      %v2370 = vmax.f32 %v2322, 0.0
      %v2371 = vmax.f32 %v2325, 0.0
      %v2372 = vmax.f32 %v2330, 0.0
      %v2373 = vmax.f32 %v2333, 0.0
      %v2374 = vmax.f32 %v2338, 0.0
      %v2375 = vmax.f32 %v2341, 0.0
      %s2376 = scalar_lea.vmem [#allocation3], 24
      %2377 = vst.msk [vmem:[%s2376 + $0x1] sm:$0xff] %vm336, %v2344
      %2378 = vst.msk [vmem:[%s2376 + $0x9] sm:$0xff] %vm336, %v2345
      %2379 = vst.msk [vmem:[%s2376 + $0x19] sm:$0xff] %vm336, %v2346
      %2380 = vst.msk [vmem:[%s2376 + $0x21] sm:$0xff] %vm336, %v2347
      %2381 = vst.msk [vmem:[%s2376 + $0x31] sm:$0xff] %vm336, %v2348
      %2382 = vst.msk [vmem:[%s2376 + $0x39] sm:$0xff] %vm336, %v2349
      %2383 = vst.msk [vmem:[%s2376 + $0x49] sm:$0xff] %vm336, %v2350
      %2384 = vst.msk [vmem:[%s2376 + $0x51] sm:$0xff] %vm336, %v2351
      %2385 = vst.msk [vmem:[%s2376 + $0x61] sm:$0xff] %vm336, %v2352
      %2386 = vst.msk [vmem:[%s2376 + $0x69] sm:$0xff] %vm336, %v2353
      %2387 = vst.msk [vmem:[%s2376 + $0x79] sm:$0xff] %vm336, %v2354
      %2388 = vst.msk [vmem:[%s2376 + $0x81] sm:$0xff] %vm336, %v2355
      %2389 = vst.msk [vmem:[%s2376 + $0x91] sm:$0xff] %vm336, %v2356
      %2390 = vst.msk [vmem:[%s2376 + $0x99] sm:$0xff] %vm336, %v2357
      %2391 = vst.msk [vmem:[%s2376 + $0xa9] sm:$0xff] %vm336, %v2358
      %2392 = vst.msk [vmem:[%s2376 + $0xb1] sm:$0xff] %vm336, %v2359
      %2393 = vst.msk [vmem:[%s2376 + $0xc1] sm:$0xff] %vm336, %v2360
      %2394 = vst.msk [vmem:[%s2376 + $0xc9] sm:$0xff] %vm336, %v2361
      %2395 = vst.msk [vmem:[%s2376 + $0xd9] sm:$0xff] %vm336, %v2362
      %2396 = vst.msk [vmem:[%s2376 + $0xe1] sm:$0xff] %vm336, %v2363
      %2397 = vst.msk [vmem:[%s2376 + $0xf1] sm:$0xff] %vm336, %v2364
      %2398 = vst.msk [vmem:[%s2376 + $0xf9] sm:$0xff] %vm336, %v2365
      %2399 = vst.msk [vmem:[%s2376 + $0x109] sm:$0xff] %vm336, %v2366
      %2400 = vst.msk [vmem:[%s2376 + $0x111] sm:$0xff] %vm336, %v2367
      %2401 = vst.msk [vmem:[%s2376 + $0x121] sm:$0xff] %vm336, %v2368
      %2402 = vst.msk [vmem:[%s2376 + $0x129] sm:$0xff] %vm336, %v2369
      %2403 = vst.msk [vmem:[%s2376 + $0x139] sm:$0xff] %vm336, %v2370
      %2404 = vst.msk [vmem:[%s2376 + $0x141] sm:$0xff] %vm336, %v2371
      %2405 = vst.msk [vmem:[%s2376 + $0x151] sm:$0xff] %vm336, %v2372
      %2406 = vst.msk [vmem:[%s2376 + $0x159] sm:$0xff] %vm336, %v2373
      %2407 = vst.msk [vmem:[%s2376 + $0x169] sm:$0xff] %vm336, %v2374
      %2408 = vst.msk [vmem:[%s2376 + $0x171] sm:$0xff] %vm336, %v2375
      %v2409 = vld [vmem:[#allocation3] sm:$0xff]
      %v2410 = vld [vmem:[#allocation3 + $0x8] sm:$0xff]
      %v2411 = vld [vmem:[#allocation3 + $0x18] sm:$0xff]
      %v2412 = vld [vmem:[#allocation3 + $0x20] sm:$0xff]
      %v2413 = vld [vmem:[#allocation3 + $0x30] sm:$0xff]
      %v2414 = vld [vmem:[#allocation3 + $0x38] sm:$0xff]
      %v2415 = vld [vmem:[#allocation3 + $0x48] sm:$0xff]
      %v2416 = vld [vmem:[#allocation3 + $0x50] sm:$0xff]
      %v2417 = vld [vmem:[#allocation3 + $0x60] sm:$0xff]
      %v2418 = vld [vmem:[#allocation3 + $0x68] sm:$0xff]
      %v2419 = vld [vmem:[#allocation3 + $0x78] sm:$0xff]
      %v2420 = vld [vmem:[#allocation3 + $0x80] sm:$0xff]
      %v2421 = vld [vmem:[#allocation3 + $0x90] sm:$0xff]
      %v2422 = vld [vmem:[#allocation3 + $0x98] sm:$0xff]
      %v2423 = vld [vmem:[#allocation3 + $0xa8] sm:$0xff]
      %v2424 = vld [vmem:[#allocation3 + $0xb0] sm:$0xff]
      %v2425 = vld [vmem:[#allocation3 + $0xc0] sm:$0xff]
      %v2426 = vld [vmem:[#allocation3 + $0xc8] sm:$0xff]
      %v2427 = vld [vmem:[#allocation3 + $0xd8] sm:$0xff]
      %v2428 = vld [vmem:[#allocation3 + $0xe0] sm:$0xff]
      %v2429 = vld [vmem:[#allocation3 + $0xf0] sm:$0xff]
      %v2430 = vld [vmem:[#allocation3 + $0xf8] sm:$0xff]
      %v2431 = vld [vmem:[#allocation3 + $0x108] sm:$0xff]
      %v2432 = vld [vmem:[#allocation3 + $0x110] sm:$0xff]
      %v2433 = vld [vmem:[#allocation3 + $0x120] sm:$0xff]
      %v2434 = vld [vmem:[#allocation3 + $0x128] sm:$0xff]
      %v2435 = vld [vmem:[#allocation3 + $0x138] sm:$0xff]
      %v2436 = vld [vmem:[#allocation3 + $0x140] sm:$0xff]
      %v2437 = vld [vmem:[#allocation3 + $0x150] sm:$0xff]
      %v2438 = vld [vmem:[#allocation3 + $0x158] sm:$0xff]
      %v2439 = vld [vmem:[#allocation3 + $0x168] sm:$0xff]
      %v2440 = vld [vmem:[#allocation3 + $0x170] sm:$0xff]
      %v2441 = vld [vmem:[#allocation3 + $0x1] sm:$0xff]
      %v2442 = vld [vmem:[#allocation3 + $0x9] sm:$0xff]
      %v2443 = vld [vmem:[#allocation3 + $0x19] sm:$0xff]
      %v2444 = vld [vmem:[#allocation3 + $0x21] sm:$0xff]
      %v2445 = vld [vmem:[#allocation3 + $0x31] sm:$0xff]
      %v2446 = vld [vmem:[#allocation3 + $0x39] sm:$0xff]
      %v2447 = vld [vmem:[#allocation3 + $0x49] sm:$0xff]
      %v2448 = vld [vmem:[#allocation3 + $0x51] sm:$0xff]
      %v2449 = vld [vmem:[#allocation3 + $0x61] sm:$0xff]
      %v2450 = vld [vmem:[#allocation3 + $0x69] sm:$0xff]
      %v2451 = vld [vmem:[#allocation3 + $0x79] sm:$0xff]
      %v2452 = vld [vmem:[#allocation3 + $0x81] sm:$0xff]
      %v2453 = vld [vmem:[#allocation3 + $0x91] sm:$0xff]
      %v2454 = vld [vmem:[#allocation3 + $0x99] sm:$0xff]
      %v2455 = vld [vmem:[#allocation3 + $0xa9] sm:$0xff]
      %v2456 = vld [vmem:[#allocation3 + $0xb1] sm:$0xff]
      %v2457 = vld [vmem:[#allocation3 + $0xc1] sm:$0xff]
      %v2458 = vld [vmem:[#allocation3 + $0xc9] sm:$0xff]
      %v2459 = vld [vmem:[#allocation3 + $0xd9] sm:$0xff]
      %v2460 = vld [vmem:[#allocation3 + $0xe1] sm:$0xff]
      %v2461 = vld [vmem:[#allocation3 + $0xf1] sm:$0xff]
      %v2462 = vld [vmem:[#allocation3 + $0xf9] sm:$0xff]
      %v2463 = vld [vmem:[#allocation3 + $0x109] sm:$0xff]
      %v2464 = vld [vmem:[#allocation3 + $0x111] sm:$0xff]
      %v2465 = vld [vmem:[#allocation3 + $0x121] sm:$0xff]
      %v2466 = vld [vmem:[#allocation3 + $0x129] sm:$0xff]
      %v2467 = vld [vmem:[#allocation3 + $0x139] sm:$0xff]
      %v2468 = vld [vmem:[#allocation3 + $0x141] sm:$0xff]
      %v2469 = vld [vmem:[#allocation3 + $0x151] sm:$0xff]
      %v2470 = vld [vmem:[#allocation3 + $0x159] sm:$0xff]
      %v2471 = vld [vmem:[#allocation3 + $0x169] sm:$0xff]
      %v2472 = vld [vmem:[#allocation3 + $0x171] sm:$0xff]
      %v2473 = vld [vmem:[#allocation3 + $0x2] sm:$0xff]
      %v2474 = vld [vmem:[#allocation3 + $0xa] sm:$0xff]
      %v2475 = vld [vmem:[#allocation3 + $0x1a] sm:$0xff]
      %v2476 = vld [vmem:[#allocation3 + $0x22] sm:$0xff]
      %v2477 = vld [vmem:[#allocation3 + $0x32] sm:$0xff]
      %v2478 = vld [vmem:[#allocation3 + $0x3a] sm:$0xff]
      %v2479 = vld [vmem:[#allocation3 + $0x4a] sm:$0xff]
      %v2480 = vld [vmem:[#allocation3 + $0x52] sm:$0xff]
      %v2481 = vld [vmem:[#allocation3 + $0x62] sm:$0xff]
      %v2482 = vld [vmem:[#allocation3 + $0x6a] sm:$0xff]
      %v2483 = vld [vmem:[#allocation3 + $0x7a] sm:$0xff]
      %v2484 = vld [vmem:[#allocation3 + $0x82] sm:$0xff]
      %v2485 = vld [vmem:[#allocation3 + $0x92] sm:$0xff]
      %v2486 = vld [vmem:[#allocation3 + $0x9a] sm:$0xff]
      %v2487 = vld [vmem:[#allocation3 + $0xaa] sm:$0xff]
      %v2488 = vld [vmem:[#allocation3 + $0xb2] sm:$0xff]
      %v2489 = vld [vmem:[#allocation3 + $0xc2] sm:$0xff]
      %v2490 = vld [vmem:[#allocation3 + $0xca] sm:$0xff]
      %v2491 = vld [vmem:[#allocation3 + $0xda] sm:$0xff]
      %v2492 = vld [vmem:[#allocation3 + $0xe2] sm:$0xff]
      %v2493 = vld [vmem:[#allocation3 + $0xf2] sm:$0xff]
      %v2494 = vld [vmem:[#allocation3 + $0xfa] sm:$0xff]
      %v2495 = vld [vmem:[#allocation3 + $0x10a] sm:$0xff]
      %v2496 = vld [vmem:[#allocation3 + $0x112] sm:$0xff]
      %v2497 = vld [vmem:[#allocation3 + $0x122] sm:$0xff]
      %v2498 = vld [vmem:[#allocation3 + $0x12a] sm:$0xff]
      %v2499 = vld [vmem:[#allocation3 + $0x13a] sm:$0xff]
      %v2500 = vld [vmem:[#allocation3 + $0x142] sm:$0xff]
      %v2501 = vld [vmem:[#allocation3 + $0x152] sm:$0xff]
      %v2502 = vld [vmem:[#allocation3 + $0x15a] sm:$0xff]
      %v2503 = vld [vmem:[#allocation3 + $0x16a] sm:$0xff]
      %v2504 = vld [vmem:[#allocation3 + $0x172] sm:$0xff]
      %v2505 = vld [vmem:[%s2376] sm:$0xff]
      %v2506 = vld [vmem:[%s2376 + $0x8] sm:$0xff]
      %v2507 = vld [vmem:[%s2376 + $0x18] sm:$0xff]
      %v2508 = vld [vmem:[%s2376 + $0x20] sm:$0xff]
      %v2509 = vld [vmem:[%s2376 + $0x30] sm:$0xff]
      %v2510 = vld [vmem:[%s2376 + $0x38] sm:$0xff]
      %v2511 = vld [vmem:[%s2376 + $0x48] sm:$0xff]
      %v2512 = vld [vmem:[%s2376 + $0x50] sm:$0xff]
      %v2513 = vld [vmem:[%s2376 + $0x60] sm:$0xff]
      %v2514 = vld [vmem:[%s2376 + $0x68] sm:$0xff]
      %v2515 = vld [vmem:[%s2376 + $0x78] sm:$0xff]
      %v2516 = vld [vmem:[%s2376 + $0x80] sm:$0xff]
      %v2517 = vld [vmem:[%s2376 + $0x90] sm:$0xff]
      %v2518 = vld [vmem:[%s2376 + $0x98] sm:$0xff]
      %v2519 = vld [vmem:[%s2376 + $0xa8] sm:$0xff]
      %v2520 = vld [vmem:[%s2376 + $0xb0] sm:$0xff]
      %v2521 = vld [vmem:[%s2376 + $0xc0] sm:$0xff]
      %v2522 = vld [vmem:[%s2376 + $0xc8] sm:$0xff]
      %v2523 = vld [vmem:[%s2376 + $0xd8] sm:$0xff]
      %v2524 = vld [vmem:[%s2376 + $0xe0] sm:$0xff]
      %v2525 = vld [vmem:[%s2376 + $0xf0] sm:$0xff]
      %v2526 = vld [vmem:[%s2376 + $0xf8] sm:$0xff]
      %v2527 = vld [vmem:[%s2376 + $0x108] sm:$0xff]
      %v2528 = vld [vmem:[%s2376 + $0x110] sm:$0xff]
      %v2529 = vld [vmem:[%s2376 + $0x120] sm:$0xff]
      %v2530 = vld [vmem:[%s2376 + $0x128] sm:$0xff]
      %v2531 = vld [vmem:[%s2376 + $0x138] sm:$0xff]
      %v2532 = vld [vmem:[%s2376 + $0x140] sm:$0xff]
      %v2533 = vld [vmem:[%s2376 + $0x150] sm:$0xff]
      %v2534 = vld [vmem:[%s2376 + $0x158] sm:$0xff]
      %v2535 = vld [vmem:[%s2376 + $0x168] sm:$0xff]
      %v2536 = vld [vmem:[%s2376 + $0x170] sm:$0xff]
      %v2537 = vld [vmem:[%s2376 + $0x1] sm:$0xff]
      %v2538 = vld [vmem:[%s2376 + $0x9] sm:$0xff]
      %v2539 = vld [vmem:[%s2376 + $0x19] sm:$0xff]
      %v2540 = vld [vmem:[%s2376 + $0x21] sm:$0xff]
      %v2541 = vld [vmem:[%s2376 + $0x31] sm:$0xff]
      %v2542 = vld [vmem:[%s2376 + $0x39] sm:$0xff]
      %v2543 = vld [vmem:[%s2376 + $0x49] sm:$0xff]
      %v2544 = vld [vmem:[%s2376 + $0x51] sm:$0xff]
      %v2545 = vld [vmem:[%s2376 + $0x61] sm:$0xff]
      %v2546 = vld [vmem:[%s2376 + $0x69] sm:$0xff]
      %v2547 = vld [vmem:[%s2376 + $0x79] sm:$0xff]
      %v2548 = vld [vmem:[%s2376 + $0x81] sm:$0xff]
      %v2549 = vld [vmem:[%s2376 + $0x91] sm:$0xff]
      %v2550 = vld [vmem:[%s2376 + $0x99] sm:$0xff]
      %v2551 = vld [vmem:[%s2376 + $0xa9] sm:$0xff]
      %v2552 = vld [vmem:[%s2376 + $0xb1] sm:$0xff]
      %v2553 = vld [vmem:[%s2376 + $0xc1] sm:$0xff]
      %v2554 = vld [vmem:[%s2376 + $0xc9] sm:$0xff]
      %v2555 = vld [vmem:[%s2376 + $0xd9] sm:$0xff]
      %v2556 = vld [vmem:[%s2376 + $0xe1] sm:$0xff]
      %v2557 = vld [vmem:[%s2376 + $0xf1] sm:$0xff]
      %v2558 = vld [vmem:[%s2376 + $0xf9] sm:$0xff]
      %v2559 = vld [vmem:[%s2376 + $0x109] sm:$0xff]
      %v2560 = vld [vmem:[%s2376 + $0x111] sm:$0xff]
      %v2561 = vld [vmem:[%s2376 + $0x121] sm:$0xff]
      %v2562 = vld [vmem:[%s2376 + $0x129] sm:$0xff]
      %v2563 = vld [vmem:[%s2376 + $0x139] sm:$0xff]
      %v2564 = vld [vmem:[%s2376 + $0x141] sm:$0xff]
      %v2565 = vld [vmem:[%s2376 + $0x151] sm:$0xff]
      %v2566 = vld [vmem:[%s2376 + $0x159] sm:$0xff]
      %v2567 = vld [vmem:[%s2376 + $0x169] sm:$0xff]
      %v2568 = vld [vmem:[%s2376 + $0x171] sm:$0xff]
      %v2569 = vld [vmem:[%s2376 + $0x2] sm:$0xff]
      %v2570 = vld [vmem:[%s2376 + $0xa] sm:$0xff]
      %v2571 = vld [vmem:[%s2376 + $0x1a] sm:$0xff]
      %v2572 = vld [vmem:[%s2376 + $0x22] sm:$0xff]
      %v2573 = vld [vmem:[%s2376 + $0x32] sm:$0xff]
      %v2574 = vld [vmem:[%s2376 + $0x3a] sm:$0xff]
      %v2575 = vld [vmem:[%s2376 + $0x4a] sm:$0xff]
      %v2576 = vld [vmem:[%s2376 + $0x52] sm:$0xff]
      %v2577 = vld [vmem:[%s2376 + $0x62] sm:$0xff]
      %v2578 = vld [vmem:[%s2376 + $0x6a] sm:$0xff]
      %v2579 = vld [vmem:[%s2376 + $0x7a] sm:$0xff]
      %v2580 = vld [vmem:[%s2376 + $0x82] sm:$0xff]
      %v2581 = vld [vmem:[%s2376 + $0x92] sm:$0xff]
      %v2582 = vld [vmem:[%s2376 + $0x9a] sm:$0xff]
      %v2583 = vld [vmem:[%s2376 + $0xaa] sm:$0xff]
      %v2584 = vld [vmem:[%s2376 + $0xb2] sm:$0xff]
      %v2585 = vld [vmem:[%s2376 + $0xc2] sm:$0xff]
      %v2586 = vld [vmem:[%s2376 + $0xca] sm:$0xff]
      %v2587 = vld [vmem:[%s2376 + $0xda] sm:$0xff]
      %v2588 = vld [vmem:[%s2376 + $0xe2] sm:$0xff]
      %v2589 = vld [vmem:[%s2376 + $0xf2] sm:$0xff]
      %v2590 = vld [vmem:[%s2376 + $0xfa] sm:$0xff]
      %v2591 = vld [vmem:[%s2376 + $0x10a] sm:$0xff]
      %v2592 = vld [vmem:[%s2376 + $0x112] sm:$0xff]
      %v2593 = vld [vmem:[%s2376 + $0x122] sm:$0xff]
      %v2594 = vld [vmem:[%s2376 + $0x12a] sm:$0xff]
      %v2595 = vld [vmem:[%s2376 + $0x13a] sm:$0xff]
      %v2596 = vld [vmem:[%s2376 + $0x142] sm:$0xff]
      %v2597 = vld [vmem:[%s2376 + $0x152] sm:$0xff]
      %v2598 = vld [vmem:[%s2376 + $0x15a] sm:$0xff]
      %v2599 = vld [vmem:[%s2376 + $0x16a] sm:$0xff]
      %v2600 = vld [vmem:[%s2376 + $0x172] sm:$0xff]
      %s2601 = scalar_lea.vmem [#allocation3], 48
      %v2602 = vld [vmem:[%s2601] sm:$0xff]
      %v2603 = vld [vmem:[%s2601 + $0x8] sm:$0xff]
      %v2604 = vld [vmem:[%s2601 + $0x18] sm:$0xff]
      %v2605 = vld [vmem:[%s2601 + $0x20] sm:$0xff]
      %v2606 = vld [vmem:[%s2601 + $0x30] sm:$0xff]
      %v2607 = vld [vmem:[%s2601 + $0x38] sm:$0xff]
      %v2608 = vld [vmem:[%s2601 + $0x48] sm:$0xff]
      %v2609 = vld [vmem:[%s2601 + $0x50] sm:$0xff]
      %v2610 = vld [vmem:[%s2601 + $0x60] sm:$0xff]
      %v2611 = vld [vmem:[%s2601 + $0x68] sm:$0xff]
      %v2612 = vld [vmem:[%s2601 + $0x78] sm:$0xff]
      %v2613 = vld [vmem:[%s2601 + $0x80] sm:$0xff]
      %v2614 = vld [vmem:[%s2601 + $0x90] sm:$0xff]
      %v2615 = vld [vmem:[%s2601 + $0x98] sm:$0xff]
      %v2616 = vld [vmem:[%s2601 + $0xa8] sm:$0xff]
      %v2617 = vld [vmem:[%s2601 + $0xb0] sm:$0xff]
      %v2618 = vld [vmem:[%s2601 + $0xc0] sm:$0xff]
      %v2619 = vld [vmem:[%s2601 + $0xc8] sm:$0xff]
      %v2620 = vld [vmem:[%s2601 + $0xd8] sm:$0xff]
      %v2621 = vld [vmem:[%s2601 + $0xe0] sm:$0xff]
      %v2622 = vld [vmem:[%s2601 + $0xf0] sm:$0xff]
      %v2623 = vld [vmem:[%s2601 + $0xf8] sm:$0xff]
      %v2624 = vld [vmem:[%s2601 + $0x108] sm:$0xff]
      %v2625 = vld [vmem:[%s2601 + $0x110] sm:$0xff]
      %v2626 = vld [vmem:[%s2601 + $0x120] sm:$0xff]
      %v2627 = vld [vmem:[%s2601 + $0x128] sm:$0xff]
      %v2628 = vld [vmem:[%s2601 + $0x138] sm:$0xff]
      %v2629 = vld [vmem:[%s2601 + $0x140] sm:$0xff]
      %v2630 = vld [vmem:[%s2601 + $0x150] sm:$0xff]
      %v2631 = vld [vmem:[%s2601 + $0x158] sm:$0xff]
      %v2632 = vld [vmem:[%s2601 + $0x168] sm:$0xff]
      %v2633 = vld [vmem:[%s2601 + $0x170] sm:$0xff]
      %v2634 = vld [vmem:[%s2601 + $0x1] sm:$0xff]
      %v2635 = vld [vmem:[%s2601 + $0x9] sm:$0xff]
      %v2636 = vld [vmem:[%s2601 + $0x19] sm:$0xff]
      %v2637 = vld [vmem:[%s2601 + $0x21] sm:$0xff]
      %v2638 = vld [vmem:[%s2601 + $0x31] sm:$0xff]
      %v2639 = vld [vmem:[%s2601 + $0x39] sm:$0xff]
      %v2640 = vld [vmem:[%s2601 + $0x49] sm:$0xff]
      %v2641 = vld [vmem:[%s2601 + $0x51] sm:$0xff]
      %v2642 = vld [vmem:[%s2601 + $0x61] sm:$0xff]
      %v2643 = vld [vmem:[%s2601 + $0x69] sm:$0xff]
      %v2644 = vld [vmem:[%s2601 + $0x79] sm:$0xff]
      %v2645 = vld [vmem:[%s2601 + $0x81] sm:$0xff]
      %v2646 = vld [vmem:[%s2601 + $0x91] sm:$0xff]
      %v2647 = vld [vmem:[%s2601 + $0x99] sm:$0xff]
      %v2648 = vld [vmem:[%s2601 + $0xa9] sm:$0xff]
      %v2649 = vld [vmem:[%s2601 + $0xb1] sm:$0xff]
      %v2650 = vld [vmem:[%s2601 + $0xc1] sm:$0xff]
      %v2651 = vld [vmem:[%s2601 + $0xc9] sm:$0xff]
      %v2652 = vld [vmem:[%s2601 + $0xd9] sm:$0xff]
      %v2653 = vld [vmem:[%s2601 + $0xe1] sm:$0xff]
      %v2654 = vld [vmem:[%s2601 + $0xf1] sm:$0xff]
      %v2655 = vld [vmem:[%s2601 + $0xf9] sm:$0xff]
      %v2656 = vld [vmem:[%s2601 + $0x109] sm:$0xff]
      %v2657 = vld [vmem:[%s2601 + $0x111] sm:$0xff]
      %v2658 = vld [vmem:[%s2601 + $0x121] sm:$0xff]
      %v2659 = vld [vmem:[%s2601 + $0x129] sm:$0xff]
      %v2660 = vld [vmem:[%s2601 + $0x139] sm:$0xff]
      %v2661 = vld [vmem:[%s2601 + $0x141] sm:$0xff]
      %v2662 = vld [vmem:[%s2601 + $0x151] sm:$0xff]
      %v2663 = vld [vmem:[%s2601 + $0x159] sm:$0xff]
      %v2664 = vld [vmem:[%s2601 + $0x169] sm:$0xff]
      %v2665 = vld [vmem:[%s2601 + $0x171] sm:$0xff]
      %v2666 = vld [vmem:[%s2601 + $0x2] sm:$0xff]
      %v2667 = vld [vmem:[%s2601 + $0xa] sm:$0xff]
      %v2668 = vld [vmem:[%s2601 + $0x1a] sm:$0xff]
      %v2669 = vld [vmem:[%s2601 + $0x22] sm:$0xff]
      %v2670 = vld [vmem:[%s2601 + $0x32] sm:$0xff]
      %v2671 = vld [vmem:[%s2601 + $0x3a] sm:$0xff]
      %v2672 = vld [vmem:[%s2601 + $0x4a] sm:$0xff]
      %v2673 = vld [vmem:[%s2601 + $0x52] sm:$0xff]
      %v2674 = vld [vmem:[%s2601 + $0x62] sm:$0xff]
      %v2675 = vld [vmem:[%s2601 + $0x6a] sm:$0xff]
      %v2676 = vld [vmem:[%s2601 + $0x7a] sm:$0xff]
      %v2677 = vld [vmem:[%s2601 + $0x82] sm:$0xff]
      %v2678 = vld [vmem:[%s2601 + $0x92] sm:$0xff]
      %v2679 = vld [vmem:[%s2601 + $0x9a] sm:$0xff]
      %v2680 = vld [vmem:[%s2601 + $0xaa] sm:$0xff]
      %v2681 = vld [vmem:[%s2601 + $0xb2] sm:$0xff]
      %v2682 = vld [vmem:[%s2601 + $0xc2] sm:$0xff]
      %v2683 = vld [vmem:[%s2601 + $0xca] sm:$0xff]
      %v2684 = vld [vmem:[%s2601 + $0xda] sm:$0xff]
      %v2685 = vld [vmem:[%s2601 + $0xe2] sm:$0xff]
      %v2686 = vld [vmem:[%s2601 + $0xf2] sm:$0xff]
      %v2687 = vld [vmem:[%s2601 + $0xfa] sm:$0xff]
      %v2688 = vld [vmem:[%s2601 + $0x10a] sm:$0xff]
      %v2689 = vld [vmem:[%s2601 + $0x112] sm:$0xff]
      %v2690 = vld [vmem:[%s2601 + $0x122] sm:$0xff]
      %v2691 = vld [vmem:[%s2601 + $0x12a] sm:$0xff]
      %v2692 = vld [vmem:[%s2601 + $0x13a] sm:$0xff]
      %v2693 = vld [vmem:[%s2601 + $0x142] sm:$0xff]
      %v2694 = vld [vmem:[%s2601 + $0x152] sm:$0xff]
      %v2695 = vld [vmem:[%s2601 + $0x15a] sm:$0xff]
      %v2696 = vld [vmem:[%s2601 + $0x16a] sm:$0xff]
      %v2697 = vld [vmem:[%s2601 + $0x172] sm:$0xff]
      %2730 = vrot.lane.b32.xlu0 %v2441, 64
      %v2731 = vpop.permute.xlu0 %2730
      %2732 = vrot.lane.b32.xlu0 %v2442, 64
      %v2733 = vpop.permute.xlu0 %2732
      %2734 = vrot.lane.b32.xlu0 %v2443, 64
      %v2735 = vpop.permute.xlu0 %2734
      %2736 = vrot.lane.b32.xlu0 %v2444, 64
      %v2737 = vpop.permute.xlu0 %2736
      %2738 = vrot.lane.b32.xlu0 %v2445, 64
      %v2739 = vpop.permute.xlu0 %2738
      %2740 = vrot.lane.b32.xlu0 %v2446, 64
      %v2741 = vpop.permute.xlu0 %2740
      %2742 = vrot.lane.b32.xlu0 %v2447, 64
      %v2743 = vpop.permute.xlu0 %2742
      %2744 = vrot.lane.b32.xlu0 %v2448, 64
      %v2745 = vpop.permute.xlu0 %2744
      %2746 = vrot.lane.b32.xlu0 %v2449, 64
      %v2747 = vpop.permute.xlu0 %2746
      %2748 = vrot.lane.b32.xlu0 %v2450, 64
      %v2749 = vpop.permute.xlu0 %2748
      %2750 = vrot.lane.b32.xlu0 %v2451, 64
      %v2751 = vpop.permute.xlu0 %2750
      %2752 = vrot.lane.b32.xlu0 %v2452, 64
      %v2753 = vpop.permute.xlu0 %2752
      %2754 = vrot.lane.b32.xlu0 %v2453, 64
      %v2755 = vpop.permute.xlu0 %2754
      %2756 = vrot.lane.b32.xlu0 %v2454, 64
      %v2757 = vpop.permute.xlu0 %2756
      %2758 = vrot.lane.b32.xlu0 %v2455, 64
      %v2759 = vpop.permute.xlu0 %2758
      %2760 = vrot.lane.b32.xlu0 %v2456, 64
      %v2761 = vpop.permute.xlu0 %2760
      %2762 = vrot.lane.b32.xlu0 %v2457, 64
      %v2763 = vpop.permute.xlu0 %2762
      %2764 = vrot.lane.b32.xlu0 %v2458, 64
      %v2765 = vpop.permute.xlu0 %2764
      %2766 = vrot.lane.b32.xlu0 %v2459, 64
      %v2767 = vpop.permute.xlu0 %2766
      %2768 = vrot.lane.b32.xlu0 %v2460, 64
      %v2769 = vpop.permute.xlu0 %2768
      %2770 = vrot.lane.b32.xlu0 %v2461, 64
      %v2771 = vpop.permute.xlu0 %2770
      %2772 = vrot.lane.b32.xlu0 %v2462, 64
      %v2773 = vpop.permute.xlu0 %2772
      %2774 = vrot.lane.b32.xlu0 %v2463, 64
      %v2775 = vpop.permute.xlu0 %2774
      %2776 = vrot.lane.b32.xlu0 %v2464, 64
      %v2777 = vpop.permute.xlu0 %2776
      %2778 = vrot.lane.b32.xlu0 %v2465, 64
      %v2779 = vpop.permute.xlu0 %2778
      %2780 = vrot.lane.b32.xlu0 %v2466, 64
      %v2781 = vpop.permute.xlu0 %2780
      %2782 = vrot.lane.b32.xlu0 %v2467, 64
      %v2783 = vpop.permute.xlu0 %2782
      %2784 = vrot.lane.b32.xlu0 %v2468, 64
      %v2785 = vpop.permute.xlu0 %2784
      %2786 = vrot.lane.b32.xlu0 %v2469, 64
      %v2787 = vpop.permute.xlu0 %2786
      %2788 = vrot.lane.b32.xlu0 %v2470, 64
      %v2789 = vpop.permute.xlu0 %2788
      %2790 = vrot.lane.b32.xlu0 %v2471, 64
      %v2791 = vpop.permute.xlu0 %2790
      %2792 = vrot.lane.b32.xlu0 %v2472, 64
      %v2793 = vpop.permute.xlu0 %2792
      %2858 = vrot.lane.b32.xlu0 %v2505, 64
      %v2859 = vpop.permute.xlu0 %2858
      %2860 = vrot.lane.b32.xlu0 %v2506, 64
      %v2861 = vpop.permute.xlu0 %2860
      %2862 = vrot.lane.b32.xlu0 %v2507, 64
      %v2863 = vpop.permute.xlu0 %2862
      %2864 = vrot.lane.b32.xlu0 %v2508, 64
      %v2865 = vpop.permute.xlu0 %2864
      %2866 = vrot.lane.b32.xlu0 %v2509, 64
      %v2867 = vpop.permute.xlu0 %2866
      %2868 = vrot.lane.b32.xlu0 %v2510, 64
      %v2869 = vpop.permute.xlu0 %2868
      %2870 = vrot.lane.b32.xlu0 %v2511, 64
      %v2871 = vpop.permute.xlu0 %2870
      %2872 = vrot.lane.b32.xlu0 %v2512, 64
      %v2873 = vpop.permute.xlu0 %2872
      %2874 = vrot.lane.b32.xlu0 %v2513, 64
      %v2875 = vpop.permute.xlu0 %2874
      %2876 = vrot.lane.b32.xlu0 %v2514, 64
      %v2877 = vpop.permute.xlu0 %2876
      %2878 = vrot.lane.b32.xlu0 %v2515, 64
      %v2879 = vpop.permute.xlu0 %2878
      %2880 = vrot.lane.b32.xlu0 %v2516, 64
      %v2881 = vpop.permute.xlu0 %2880
      %2882 = vrot.lane.b32.xlu0 %v2517, 64
      %v2883 = vpop.permute.xlu0 %2882
      %2884 = vrot.lane.b32.xlu0 %v2518, 64
      %v2885 = vpop.permute.xlu0 %2884
      %2886 = vrot.lane.b32.xlu0 %v2519, 64
      %v2887 = vpop.permute.xlu0 %2886
      %2888 = vrot.lane.b32.xlu0 %v2520, 64
      %v2889 = vpop.permute.xlu0 %2888
      %2890 = vrot.lane.b32.xlu0 %v2521, 64
      %v2891 = vpop.permute.xlu0 %2890
      %2892 = vrot.lane.b32.xlu0 %v2522, 64
      %v2893 = vpop.permute.xlu0 %2892
      %2894 = vrot.lane.b32.xlu0 %v2523, 64
      %v2895 = vpop.permute.xlu0 %2894
      %2896 = vrot.lane.b32.xlu0 %v2524, 64
      %v2897 = vpop.permute.xlu0 %2896
      %2898 = vrot.lane.b32.xlu0 %v2525, 64
      %v2899 = vpop.permute.xlu0 %2898
      %2900 = vrot.lane.b32.xlu0 %v2526, 64
      %v2901 = vpop.permute.xlu0 %2900
      %2902 = vrot.lane.b32.xlu0 %v2527, 64
      %v2903 = vpop.permute.xlu0 %2902
      %2904 = vrot.lane.b32.xlu0 %v2528, 64
      %v2905 = vpop.permute.xlu0 %2904
      %2906 = vrot.lane.b32.xlu0 %v2529, 64
      %v2907 = vpop.permute.xlu0 %2906
      %2908 = vrot.lane.b32.xlu0 %v2530, 64
      %v2909 = vpop.permute.xlu0 %2908
      %2910 = vrot.lane.b32.xlu0 %v2531, 64
      %v2911 = vpop.permute.xlu0 %2910
      %2912 = vrot.lane.b32.xlu0 %v2532, 64
      %v2913 = vpop.permute.xlu0 %2912
      %2914 = vrot.lane.b32.xlu0 %v2533, 64
      %v2915 = vpop.permute.xlu0 %2914
      %2916 = vrot.lane.b32.xlu0 %v2534, 64
      %v2917 = vpop.permute.xlu0 %2916
      %2918 = vrot.lane.b32.xlu0 %v2535, 64
      %v2919 = vpop.permute.xlu0 %2918
      %2920 = vrot.lane.b32.xlu0 %v2536, 64
      %v2921 = vpop.permute.xlu0 %2920
      %2986 = vrot.lane.b32.xlu0 %v2569, 64
      %v2987 = vpop.permute.xlu0 %2986
      %2988 = vrot.lane.b32.xlu0 %v2570, 64
      %v2989 = vpop.permute.xlu0 %2988
      %2990 = vrot.lane.b32.xlu0 %v2571, 64
      %v2991 = vpop.permute.xlu0 %2990
      %2992 = vrot.lane.b32.xlu0 %v2572, 64
      %v2993 = vpop.permute.xlu0 %2992
      %2994 = vrot.lane.b32.xlu0 %v2573, 64
      %v2995 = vpop.permute.xlu0 %2994
      %2996 = vrot.lane.b32.xlu0 %v2574, 64
      %v2997 = vpop.permute.xlu0 %2996
      %2998 = vrot.lane.b32.xlu0 %v2575, 64
      %v2999 = vpop.permute.xlu0 %2998
      %3000 = vrot.lane.b32.xlu0 %v2576, 64
      %v3001 = vpop.permute.xlu0 %3000
      %3002 = vrot.lane.b32.xlu0 %v2577, 64
      %v3003 = vpop.permute.xlu0 %3002
      %3004 = vrot.lane.b32.xlu0 %v2578, 64
      %v3005 = vpop.permute.xlu0 %3004
      %3006 = vrot.lane.b32.xlu0 %v2579, 64
      %v3007 = vpop.permute.xlu0 %3006
      %3008 = vrot.lane.b32.xlu0 %v2580, 64
      %v3009 = vpop.permute.xlu0 %3008
      %3010 = vrot.lane.b32.xlu0 %v2581, 64
      %v3011 = vpop.permute.xlu0 %3010
      %3012 = vrot.lane.b32.xlu0 %v2582, 64
      %v3013 = vpop.permute.xlu0 %3012
      %3014 = vrot.lane.b32.xlu0 %v2583, 64
      %v3015 = vpop.permute.xlu0 %3014
      %3016 = vrot.lane.b32.xlu0 %v2584, 64
      %v3017 = vpop.permute.xlu0 %3016
      %3018 = vrot.lane.b32.xlu0 %v2585, 64
      %v3019 = vpop.permute.xlu0 %3018
      %3020 = vrot.lane.b32.xlu0 %v2586, 64
      %v3021 = vpop.permute.xlu0 %3020
      %3022 = vrot.lane.b32.xlu0 %v2587, 64
      %v3023 = vpop.permute.xlu0 %3022
      %3024 = vrot.lane.b32.xlu0 %v2588, 64
      %v3025 = vpop.permute.xlu0 %3024
      %3026 = vrot.lane.b32.xlu0 %v2589, 64
      %v3027 = vpop.permute.xlu0 %3026
      %3028 = vrot.lane.b32.xlu0 %v2590, 64
      %v3029 = vpop.permute.xlu0 %3028
      %3030 = vrot.lane.b32.xlu0 %v2591, 64
      %v3031 = vpop.permute.xlu0 %3030
      %3032 = vrot.lane.b32.xlu0 %v2592, 64
      %v3033 = vpop.permute.xlu0 %3032
      %3034 = vrot.lane.b32.xlu0 %v2593, 64
      %v3035 = vpop.permute.xlu0 %3034
      %3036 = vrot.lane.b32.xlu0 %v2594, 64
      %v3037 = vpop.permute.xlu0 %3036
      %3038 = vrot.lane.b32.xlu0 %v2595, 64
      %v3039 = vpop.permute.xlu0 %3038
      %3040 = vrot.lane.b32.xlu0 %v2596, 64
      %v3041 = vpop.permute.xlu0 %3040
      %3042 = vrot.lane.b32.xlu0 %v2597, 64
      %v3043 = vpop.permute.xlu0 %3042
      %3044 = vrot.lane.b32.xlu0 %v2598, 64
      %v3045 = vpop.permute.xlu0 %3044
      %3046 = vrot.lane.b32.xlu0 %v2599, 64
      %v3047 = vpop.permute.xlu0 %3046
      %3048 = vrot.lane.b32.xlu0 %v2600, 64
      %v3049 = vpop.permute.xlu0 %3048
      %3114 = vrot.lane.b32.xlu0 %v2634, 64
      %v3115 = vpop.permute.xlu0 %3114
      %3116 = vrot.lane.b32.xlu0 %v2635, 64
      %v3117 = vpop.permute.xlu0 %3116
      %3118 = vrot.lane.b32.xlu0 %v2636, 64
      %v3119 = vpop.permute.xlu0 %3118
      %3120 = vrot.lane.b32.xlu0 %v2637, 64
      %v3121 = vpop.permute.xlu0 %3120
      %3122 = vrot.lane.b32.xlu0 %v2638, 64
      %v3123 = vpop.permute.xlu0 %3122
      %3124 = vrot.lane.b32.xlu0 %v2639, 64
      %v3125 = vpop.permute.xlu0 %3124
      %3126 = vrot.lane.b32.xlu0 %v2640, 64
      %v3127 = vpop.permute.xlu0 %3126
      %3128 = vrot.lane.b32.xlu0 %v2641, 64
      %v3129 = vpop.permute.xlu0 %3128
      %3130 = vrot.lane.b32.xlu0 %v2642, 64
      %v3131 = vpop.permute.xlu0 %3130
      %3132 = vrot.lane.b32.xlu0 %v2643, 64
      %v3133 = vpop.permute.xlu0 %3132
      %3134 = vrot.lane.b32.xlu0 %v2644, 64
      %v3135 = vpop.permute.xlu0 %3134
      %3136 = vrot.lane.b32.xlu0 %v2645, 64
      %v3137 = vpop.permute.xlu0 %3136
      %3138 = vrot.lane.b32.xlu0 %v2646, 64
      %v3139 = vpop.permute.xlu0 %3138
      %3140 = vrot.lane.b32.xlu0 %v2647, 64
      %v3141 = vpop.permute.xlu0 %3140
      %3142 = vrot.lane.b32.xlu0 %v2648, 64
      %v3143 = vpop.permute.xlu0 %3142
      %3144 = vrot.lane.b32.xlu0 %v2649, 64
      %v3145 = vpop.permute.xlu0 %3144
      %3146 = vrot.lane.b32.xlu0 %v2650, 64
      %v3147 = vpop.permute.xlu0 %3146
      %3148 = vrot.lane.b32.xlu0 %v2651, 64
      %v3149 = vpop.permute.xlu0 %3148
      %3150 = vrot.lane.b32.xlu0 %v2652, 64
      %v3151 = vpop.permute.xlu0 %3150
      %3152 = vrot.lane.b32.xlu0 %v2653, 64
      %v3153 = vpop.permute.xlu0 %3152
      %3154 = vrot.lane.b32.xlu0 %v2654, 64
      %v3155 = vpop.permute.xlu0 %3154
      %3156 = vrot.lane.b32.xlu0 %v2655, 64
      %v3157 = vpop.permute.xlu0 %3156
      %3158 = vrot.lane.b32.xlu0 %v2656, 64
      %v3159 = vpop.permute.xlu0 %3158
      %3160 = vrot.lane.b32.xlu0 %v2657, 64
      %v3161 = vpop.permute.xlu0 %3160
      %3162 = vrot.lane.b32.xlu0 %v2658, 64
      %v3163 = vpop.permute.xlu0 %3162
      %3164 = vrot.lane.b32.xlu0 %v2659, 64
      %v3165 = vpop.permute.xlu0 %3164
      %3166 = vrot.lane.b32.xlu0 %v2660, 64
      %v3167 = vpop.permute.xlu0 %3166
      %3168 = vrot.lane.b32.xlu0 %v2661, 64
      %v3169 = vpop.permute.xlu0 %3168
      %3170 = vrot.lane.b32.xlu0 %v2662, 64
      %v3171 = vpop.permute.xlu0 %3170
      %3172 = vrot.lane.b32.xlu0 %v2663, 64
      %v3173 = vpop.permute.xlu0 %3172
      %3174 = vrot.lane.b32.xlu0 %v2664, 64
      %v3175 = vpop.permute.xlu0 %3174
      %3176 = vrot.lane.b32.xlu0 %v2665, 64
      %v3177 = vpop.permute.xlu0 %3176
      %v3210 = vsel %vm336, %v2409, %v2731
      %v3211 = vsel %vm336, %v2410, %v2733
      %v3212 = vsel %vm336, %v2411, %v2735
      %v3213 = vsel %vm336, %v2412, %v2737
      %v3214 = vsel %vm336, %v2413, %v2739
      %v3215 = vsel %vm336, %v2414, %v2741
      %v3216 = vsel %vm336, %v2415, %v2743
      %v3217 = vsel %vm336, %v2416, %v2745
      %v3218 = vsel %vm336, %v2417, %v2747
      %v3219 = vsel %vm336, %v2418, %v2749
      %v3220 = vsel %vm336, %v2419, %v2751
      %v3221 = vsel %vm336, %v2420, %v2753
      %v3222 = vsel %vm336, %v2421, %v2755
      %v3223 = vsel %vm336, %v2422, %v2757
      %v3224 = vsel %vm336, %v2423, %v2759
      %v3225 = vsel %vm336, %v2424, %v2761
      %v3226 = vsel %vm336, %v2425, %v2763
      %v3227 = vsel %vm336, %v2426, %v2765
      %v3228 = vsel %vm336, %v2427, %v2767
      %v3229 = vsel %vm336, %v2428, %v2769
      %v3230 = vsel %vm336, %v2429, %v2771
      %v3231 = vsel %vm336, %v2430, %v2773
      %v3232 = vsel %vm336, %v2431, %v2775
      %v3233 = vsel %vm336, %v2432, %v2777
      %v3234 = vsel %vm336, %v2433, %v2779
      %v3235 = vsel %vm336, %v2434, %v2781
      %v3236 = vsel %vm336, %v2435, %v2783
      %v3237 = vsel %vm336, %v2436, %v2785
      %v3238 = vsel %vm336, %v2437, %v2787
      %v3239 = vsel %vm336, %v2438, %v2789
      %v3240 = vsel %vm336, %v2439, %v2791
      %v3241 = vsel %vm336, %v2440, %v2793
      %v3242 = vsel %vm336, %v2473, %v2859
      %v3243 = vsel %vm336, %v2474, %v2861
      %v3244 = vsel %vm336, %v2475, %v2863
      %v3245 = vsel %vm336, %v2476, %v2865
      %v3246 = vsel %vm336, %v2477, %v2867
      %v3247 = vsel %vm336, %v2478, %v2869
      %v3248 = vsel %vm336, %v2479, %v2871
      %v3249 = vsel %vm336, %v2480, %v2873
      %v3250 = vsel %vm336, %v2481, %v2875
      %v3251 = vsel %vm336, %v2482, %v2877
      %v3252 = vsel %vm336, %v2483, %v2879
      %v3253 = vsel %vm336, %v2484, %v2881
      %v3254 = vsel %vm336, %v2485, %v2883
      %v3255 = vsel %vm336, %v2486, %v2885
      %v3256 = vsel %vm336, %v2487, %v2887
      %v3257 = vsel %vm336, %v2488, %v2889
      %v3258 = vsel %vm336, %v2489, %v2891
      %v3259 = vsel %vm336, %v2490, %v2893
      %v3260 = vsel %vm336, %v2491, %v2895
      %v3261 = vsel %vm336, %v2492, %v2897
      %v3262 = vsel %vm336, %v2493, %v2899
      %v3263 = vsel %vm336, %v2494, %v2901
      %v3264 = vsel %vm336, %v2495, %v2903
      %v3265 = vsel %vm336, %v2496, %v2905
      %v3266 = vsel %vm336, %v2497, %v2907
      %v3267 = vsel %vm336, %v2498, %v2909
      %v3268 = vsel %vm336, %v2499, %v2911
      %v3269 = vsel %vm336, %v2500, %v2913
      %v3270 = vsel %vm336, %v2501, %v2915
      %v3271 = vsel %vm336, %v2502, %v2917
      %v3272 = vsel %vm336, %v2503, %v2919
      %v3273 = vsel %vm336, %v2504, %v2921
      %v3274 = vsel %vm336, %v2537, %v2987
      %v3275 = vsel %vm336, %v2538, %v2989
      %v3276 = vsel %vm336, %v2539, %v2991
      %v3277 = vsel %vm336, %v2540, %v2993
      %v3278 = vsel %vm336, %v2541, %v2995
      %v3279 = vsel %vm336, %v2542, %v2997
      %v3280 = vsel %vm336, %v2543, %v2999
      %v3281 = vsel %vm336, %v2544, %v3001
      %v3282 = vsel %vm336, %v2545, %v3003
      %v3283 = vsel %vm336, %v2546, %v3005
      %v3284 = vsel %vm336, %v2547, %v3007
      %v3285 = vsel %vm336, %v2548, %v3009
      %v3286 = vsel %vm336, %v2549, %v3011
      %v3287 = vsel %vm336, %v2550, %v3013
      %v3288 = vsel %vm336, %v2551, %v3015
      %v3289 = vsel %vm336, %v2552, %v3017
      %v3290 = vsel %vm336, %v2553, %v3019
      %v3291 = vsel %vm336, %v2554, %v3021
      %v3292 = vsel %vm336, %v2555, %v3023
      %v3293 = vsel %vm336, %v2556, %v3025
      %v3294 = vsel %vm336, %v2557, %v3027
      %v3295 = vsel %vm336, %v2558, %v3029
      %v3296 = vsel %vm336, %v2559, %v3031
      %v3297 = vsel %vm336, %v2560, %v3033
      %v3298 = vsel %vm336, %v2561, %v3035
      %v3299 = vsel %vm336, %v2562, %v3037
      %v3300 = vsel %vm336, %v2563, %v3039
      %v3301 = vsel %vm336, %v2564, %v3041
      %v3302 = vsel %vm336, %v2565, %v3043
      %v3303 = vsel %vm336, %v2566, %v3045
      %v3304 = vsel %vm336, %v2567, %v3047
      %v3305 = vsel %vm336, %v2568, %v3049
      %v3306 = vsel %vm336, %v2602, %v3115
      %v3307 = vsel %vm336, %v2603, %v3117
      %v3308 = vsel %vm336, %v2604, %v3119
      %v3309 = vsel %vm336, %v2605, %v3121
      %v3310 = vsel %vm336, %v2606, %v3123
      %v3311 = vsel %vm336, %v2607, %v3125
      %v3312 = vsel %vm336, %v2608, %v3127
      %v3313 = vsel %vm336, %v2609, %v3129
      %v3314 = vsel %vm336, %v2610, %v3131
      %v3315 = vsel %vm336, %v2611, %v3133
      %v3316 = vsel %vm336, %v2612, %v3135
      %v3317 = vsel %vm336, %v2613, %v3137
      %v3318 = vsel %vm336, %v2614, %v3139
      %v3319 = vsel %vm336, %v2615, %v3141
      %v3320 = vsel %vm336, %v2616, %v3143
      %v3321 = vsel %vm336, %v2617, %v3145
      %v3322 = vsel %vm336, %v2618, %v3147
      %v3323 = vsel %vm336, %v2619, %v3149
      %v3324 = vsel %vm336, %v2620, %v3151
      %v3325 = vsel %vm336, %v2621, %v3153
      %v3326 = vsel %vm336, %v2622, %v3155
      %v3327 = vsel %vm336, %v2623, %v3157
      %v3328 = vsel %vm336, %v2624, %v3159
      %v3329 = vsel %vm336, %v2625, %v3161
      %v3330 = vsel %vm336, %v2626, %v3163
      %v3331 = vsel %vm336, %v2627, %v3165
      %v3332 = vsel %vm336, %v2628, %v3167
      %v3333 = vsel %vm336, %v2629, %v3169
      %v3334 = vsel %vm336, %v2630, %v3171
      %v3335 = vsel %vm336, %v2631, %v3173
      %v3336 = vsel %vm336, %v2632, %v3175
      %v3337 = vsel %vm336, %v2633, %v3177
      %v3338 = vpack.c.bf16 %v3211, %v3210
      %v3339 = vpack.c.bf16 %v3243, %v3242
      %v3340 = vpack.c.bf16 %v3275, %v3274
      %v3341 = vpack.c.bf16 %v3307, %v3306
      %v3342 = vpack.c.bf16 %v2667, %v2666
      %v3343 = vpack.c.bf16 %v3213, %v3212
      %v3344 = vpack.c.bf16 %v3245, %v3244
      %v3345 = vpack.c.bf16 %v3277, %v3276
      %v3346 = vpack.c.bf16 %v3309, %v3308
      %v3347 = vpack.c.bf16 %v2669, %v2668
      %v3348 = vpack.c.bf16 %v3215, %v3214
      %v3349 = vpack.c.bf16 %v3247, %v3246
      %v3350 = vpack.c.bf16 %v3279, %v3278
      %v3351 = vpack.c.bf16 %v3311, %v3310
      %v3352 = vpack.c.bf16 %v2671, %v2670
      %v3353 = vpack.c.bf16 %v3217, %v3216
      %v3354 = vpack.c.bf16 %v3249, %v3248
      %v3355 = vpack.c.bf16 %v3281, %v3280
      %v3356 = vpack.c.bf16 %v3313, %v3312
      %v3357 = vpack.c.bf16 %v2673, %v2672
      %v3358 = vpack.c.bf16 %v3219, %v3218
      %v3359 = vpack.c.bf16 %v3251, %v3250
      %v3360 = vpack.c.bf16 %v3283, %v3282
      %v3361 = vpack.c.bf16 %v3315, %v3314
      %v3362 = vpack.c.bf16 %v2675, %v2674
      %v3363 = vpack.c.bf16 %v3221, %v3220
      %v3364 = vpack.c.bf16 %v3253, %v3252
      %v3365 = vpack.c.bf16 %v3285, %v3284
      %v3366 = vpack.c.bf16 %v3317, %v3316
      %v3367 = vpack.c.bf16 %v2677, %v2676
      %v3368 = vpack.c.bf16 %v3223, %v3222
      %v3369 = vpack.c.bf16 %v3255, %v3254
      %v3370 = vpack.c.bf16 %v3287, %v3286
      %v3371 = vpack.c.bf16 %v3319, %v3318
      %v3372 = vpack.c.bf16 %v2679, %v2678
      %v3373 = vpack.c.bf16 %v3225, %v3224
      %v3374 = vpack.c.bf16 %v3257, %v3256
      %v3375 = vpack.c.bf16 %v3289, %v3288
      %v3376 = vpack.c.bf16 %v3321, %v3320
      %v3377 = vpack.c.bf16 %v2681, %v2680
      %v3378 = vpack.c.bf16 %v3227, %v3226
      %v3379 = vpack.c.bf16 %v3259, %v3258
      %v3380 = vpack.c.bf16 %v3291, %v3290
      %v3381 = vpack.c.bf16 %v3323, %v3322
      %v3382 = vpack.c.bf16 %v2683, %v2682
      %v3383 = vpack.c.bf16 %v3229, %v3228
      %v3384 = vpack.c.bf16 %v3261, %v3260
      %v3385 = vpack.c.bf16 %v3293, %v3292
      %v3386 = vpack.c.bf16 %v3325, %v3324
      %v3387 = vpack.c.bf16 %v2685, %v2684
      %v3388 = vpack.c.bf16 %v3231, %v3230
      %v3389 = vpack.c.bf16 %v3263, %v3262
      %v3390 = vpack.c.bf16 %v3295, %v3294
      %v3391 = vpack.c.bf16 %v3327, %v3326
      %v3392 = vpack.c.bf16 %v2687, %v2686
      %v3393 = vpack.c.bf16 %v3233, %v3232
      %v3394 = vpack.c.bf16 %v3265, %v3264
      %v3395 = vpack.c.bf16 %v3297, %v3296
      %v3396 = vpack.c.bf16 %v3329, %v3328
      %v3397 = vpack.c.bf16 %v2689, %v2688
      %v3398 = vpack.c.bf16 %v3235, %v3234
      %v3399 = vpack.c.bf16 %v3267, %v3266
      %v3400 = vpack.c.bf16 %v3299, %v3298
      %v3401 = vpack.c.bf16 %v3331, %v3330
      %v3402 = vpack.c.bf16 %v2691, %v2690
      %v3403 = vpack.c.bf16 %v3237, %v3236
      %v3404 = vpack.c.bf16 %v3269, %v3268
      %v3405 = vpack.c.bf16 %v3301, %v3300
      %v3406 = vpack.c.bf16 %v3333, %v3332
      %v3407 = vpack.c.bf16 %v2693, %v2692
      %v3408 = vpack.c.bf16 %v3239, %v3238
      %v3409 = vpack.c.bf16 %v3271, %v3270
      %v3410 = vpack.c.bf16 %v3303, %v3302
      %v3411 = vpack.c.bf16 %v3335, %v3334
      %v3412 = vpack.c.bf16 %v2695, %v2694
      %v3413 = vpack.c.bf16 %v3241, %v3240
      %v3414 = vpack.c.bf16 %v3273, %v3272
      %v3415 = vpack.c.bf16 %v3305, %v3304
      %v3416 = vpack.c.bf16 %v3337, %v3336
      %v3417 = vpack.c.bf16 %v2697, %v2696
      %v3418 = vld [vmem:[%s3] sm:$0xf]
      %v3419 = vld [vmem:[%s3 + $0x4] sm:$0xf]
      %v3420 = vld [vmem:[%s3 + $0x8] sm:$0xf]
      %v3421 = vld [vmem:[%s3 + $0xc] sm:$0xf]
      %v3422 = vld [vmem:[%s3 + $0x10] sm:$0xf]
      %v3423 = vld [vmem:[%s3 + $0x14] sm:$0xf]
      %v3424 = vld [vmem:[%s3 + $0x18] sm:$0xf]
      %v3425 = vld [vmem:[%s3 + $0x1c] sm:$0xf]
      %v3426 = vld [vmem:[%s3 + $0x20] sm:$0xf]
      %v3427 = vld [vmem:[%s3 + $0x24] sm:$0xf]
      %v3428 = vld [vmem:[%s3 + $0x28] sm:$0xf]
      %v3429 = vld [vmem:[%s3 + $0x2c] sm:$0xf]
      %v3430 = vld [vmem:[%s3 + $0x30] sm:$0xf]
      %v3431 = vld [vmem:[%s3 + $0x34] sm:$0xf]
      %v3432 = vld [vmem:[%s3 + $0x38] sm:$0xf]
      %v3433 = vld [vmem:[%s3 + $0x3c] sm:$0xf]
      %v3434 = vld [vmem:[%s3 + $0x40] sm:$0xf]
      %v3435 = vld [vmem:[%s3 + $0x44] sm:$0xf]
      %v3436 = vld [vmem:[%s3 + $0x48] sm:$0xf]
      %v3437 = vld [vmem:[%s3 + $0x4c] sm:$0xf]
      %v3438 = vld [vmem:[%s3 + $0x50] sm:$0xf]
      %v3439 = vld [vmem:[%s3 + $0x54] sm:$0xf]
      %v3440 = vld [vmem:[%s3 + $0x58] sm:$0xf]
      %v3441 = vld [vmem:[%s3 + $0x5c] sm:$0xf]
      %v3442 = vld [vmem:[%s3 + $0x60] sm:$0xf]
      %v3443 = vld [vmem:[%s3 + $0x64] sm:$0xf]
      %v3444 = vld [vmem:[%s3 + $0x68] sm:$0xf]
      %v3445 = vld [vmem:[%s3 + $0x6c] sm:$0xf]
      %v3446 = vld [vmem:[%s3 + $0x70] sm:$0xf]
      %v3447 = vld [vmem:[%s3 + $0x74] sm:$0xf]
      %v3448 = vld [vmem:[%s3 + $0x78] sm:$0xf]
      %v3449 = vld [vmem:[%s3 + $0x7c] sm:$0xf]
      %v3450 = vld [vmem:[%s3 + $0x80] sm:$0xf]
      %v3451 = vld [vmem:[%s3 + $0x84] sm:$0xf]
      %v3452 = vld [vmem:[%s3 + $0x88] sm:$0xf]
      %v3453 = vld [vmem:[%s3 + $0x8c] sm:$0xf]
      %v3454 = vld [vmem:[%s3 + $0x90] sm:$0xf]
      %v3455 = vld [vmem:[%s3 + $0x94] sm:$0xf]
      %v3456 = vld [vmem:[%s3 + $0x98] sm:$0xf]
      %v3457 = vld [vmem:[%s3 + $0x9c] sm:$0xf]
      %v3458 = vld [vmem:[%s3 + $0xa0] sm:$0xf]
      %v3459 = vld [vmem:[%s3 + $0xa4] sm:$0xf]
      %v3460 = vld [vmem:[%s3 + $0xa8] sm:$0xf]
      %v3461 = vld [vmem:[%s3 + $0xac] sm:$0xf]
      %v3462 = vld [vmem:[%s3 + $0xb0] sm:$0xf]
      %v3463 = vld [vmem:[%s3 + $0xb4] sm:$0xf]
      %v3464 = vld [vmem:[%s3 + $0xb8] sm:$0xf]
      %v3465 = vld [vmem:[%s3 + $0xbc] sm:$0xf]
      %v3466 = vld [vmem:[%s3 + $0xc0] sm:$0xf]
      %v3467 = vld [vmem:[%s3 + $0xc4] sm:$0xf]
      %v3468 = vld [vmem:[%s3 + $0xc8] sm:$0xf]
      %v3469 = vld [vmem:[%s3 + $0xcc] sm:$0xf]
      %v3470 = vld [vmem:[%s3 + $0xd0] sm:$0xf]
      %v3471 = vld [vmem:[%s3 + $0xd4] sm:$0xf]
      %v3472 = vld [vmem:[%s3 + $0xd8] sm:$0xf]
      %v3473 = vld [vmem:[%s3 + $0xdc] sm:$0xf]
      %v3474 = vld [vmem:[%s3 + $0xe0] sm:$0xf]
      %v3475 = vld [vmem:[%s3 + $0xe4] sm:$0xf]
      %v3476 = vld [vmem:[%s3 + $0xe8] sm:$0xf]
      %v3477 = vld [vmem:[%s3 + $0xec] sm:$0xf]
      %v3478 = vld [vmem:[%s3 + $0xf0] sm:$0xf]
      %v3479 = vld [vmem:[%s3 + $0xf4] sm:$0xf]
      %v3480 = vld [vmem:[%s3 + $0xf8] sm:$0xf]
      %v3481 = vld [vmem:[%s3 + $0xfc] sm:$0xf]
      %v3482 = vld [vmem:[%s3 + $0x100] sm:$0xf]
      %v3483 = vld [vmem:[%s3 + $0x104] sm:$0xf]
      %v3484 = vld [vmem:[%s3 + $0x108] sm:$0xf]
      %v3485 = vld [vmem:[%s3 + $0x10c] sm:$0xf]
      %v3486 = vld [vmem:[%s3 + $0x110] sm:$0xf]
      %v3487 = vld [vmem:[%s3 + $0x114] sm:$0xf]
      %v3488 = vld [vmem:[%s3 + $0x118] sm:$0xf]
      %v3489 = vld [vmem:[%s3 + $0x11c] sm:$0xf]
      %v3490 = vld [vmem:[%s4] sm:$0x1]
      %v3492 = vlaneseq
      %v3493 = vshrl.u32 %v3492, 7
      %v3494 = vsub.s32 0, %v3493
      %v3495 = vrot.slane %v3490, %v3494
      %v3569 = vunpack.c.l.b16 %v3418
      %v3570 = vunpack.c.l.b16 %v3419
      %v3571 = vunpack.c.l.b16 %v3420
      %v3572 = vunpack.c.l.b16 %v3421
      %v3573 = vunpack.c.l.b16 %v3422
      %v3574 = vunpack.c.l.b16 %v3423
      %v3575 = vunpack.c.l.b16 %v3424
      %v3576 = vunpack.c.l.b16 %v3425
      %v3577 = vunpack.c.l.b16 %v3426
      %v3578 = vunpack.c.l.b16 %v3427
      %v3579 = vunpack.c.l.b16 %v3428
      %v3580 = vunpack.c.l.b16 %v3429
      %v3581 = vunpack.c.l.b16 %v3430
      %v3582 = vunpack.c.l.b16 %v3431
      %v3583 = vunpack.c.l.b16 %v3432
      %v3584 = vunpack.c.l.b16 %v3433
      %v3585 = vunpack.c.l.b16 %v3434
      %v3586 = vunpack.c.l.b16 %v3435
      %v3587 = vunpack.c.l.b16 %v3436
      %v3588 = vunpack.c.l.b16 %v3437
      %v3589 = vunpack.c.l.b16 %v3438
      %v3590 = vunpack.c.l.b16 %v3439
      %v3591 = vunpack.c.l.b16 %v3440
      %v3592 = vunpack.c.l.b16 %v3441
      %v3593 = vunpack.c.l.b16 %v3442
      %v3594 = vunpack.c.l.b16 %v3443
      %v3595 = vunpack.c.l.b16 %v3444
      %v3596 = vunpack.c.l.b16 %v3445
      %v3597 = vunpack.c.l.b16 %v3446
      %v3598 = vunpack.c.l.b16 %v3447
      %v3599 = vunpack.c.l.b16 %v3448
      %v3600 = vunpack.c.l.b16 %v3449
      %v3601 = vunpack.c.l.b16 %v3450
      %v3602 = vunpack.c.l.b16 %v3451
      %v3603 = vunpack.c.l.b16 %v3452
      %v3604 = vunpack.c.l.b16 %v3453
      %v3605 = vunpack.c.l.b16 %v3454
      %v3606 = vunpack.c.l.b16 %v3455
      %v3607 = vunpack.c.l.b16 %v3456
      %v3608 = vunpack.c.l.b16 %v3457
      %v3609 = vunpack.c.l.b16 %v3458
      %v3610 = vunpack.c.l.b16 %v3459
      %v3611 = vunpack.c.l.b16 %v3460
      %v3612 = vunpack.c.l.b16 %v3461
      %v3613 = vunpack.c.l.b16 %v3462
      %v3614 = vunpack.c.l.b16 %v3463
      %v3615 = vunpack.c.l.b16 %v3464
      %v3616 = vunpack.c.l.b16 %v3465
      %v3617 = vunpack.c.l.b16 %v3466
      %v3618 = vunpack.c.l.b16 %v3467
      %v3619 = vunpack.c.l.b16 %v3468
      %v3620 = vunpack.c.l.b16 %v3469
      %v3621 = vunpack.c.l.b16 %v3470
      %v3622 = vunpack.c.l.b16 %v3471
      %v3623 = vunpack.c.l.b16 %v3472
      %v3624 = vunpack.c.l.b16 %v3473
      %v3625 = vunpack.c.l.b16 %v3474
      %v3626 = vunpack.c.l.b16 %v3475
      %v3627 = vunpack.c.l.b16 %v3476
      %v3628 = vunpack.c.l.b16 %v3477
      %v3629 = vunpack.c.l.b16 %v3478
      %v3630 = vunpack.c.l.b16 %v3479
      %v3631 = vunpack.c.l.b16 %v3480
      %v3632 = vunpack.c.l.b16 %v3481
      %v3633 = vunpack.c.l.b16 %v3482
      %v3634 = vunpack.c.l.b16 %v3483
      %v3635 = vunpack.c.l.b16 %v3484
      %v3636 = vunpack.c.l.b16 %v3485
      %v3637 = vunpack.c.l.b16 %v3486
      %v3638 = vunpack.c.l.b16 %v3487
      %v3639 = vunpack.c.l.b16 %v3488
      %v3640 = vunpack.c.l.b16 %v3489
      %v3641 = vpack.c.b16 %v3570, %v3569
      %v3642 = vpack.c.b16 %v3572, %v3571
      %v3643 = vpack.c.b16 %v3574, %v3573
      %v3644 = vpack.c.b16 %v3576, %v3575
      %v3645 = vpack.c.b16 %v3578, %v3577
      %v3646 = vpack.c.b16 %v3580, %v3579
      %v3647 = vpack.c.b16 %v3582, %v3581
      %v3648 = vpack.c.b16 %v3584, %v3583
      %v3649 = vpack.c.b16 %v3586, %v3585
      %v3650 = vpack.c.b16 %v3588, %v3587
      %v3651 = vpack.c.b16 %v3590, %v3589
      %v3652 = vpack.c.b16 %v3592, %v3591
      %v3653 = vpack.c.b16 %v3594, %v3593
      %v3654 = vpack.c.b16 %v3596, %v3595
      %v3655 = vpack.c.b16 %v3598, %v3597
      %v3656 = vpack.c.b16 %v3600, %v3599
      %v3657 = vpack.c.b16 %v3602, %v3601
      %v3658 = vpack.c.b16 %v3604, %v3603
      %v3659 = vpack.c.b16 %v3606, %v3605
      %v3660 = vpack.c.b16 %v3608, %v3607
      %v3661 = vpack.c.b16 %v3610, %v3609
      %v3662 = vpack.c.b16 %v3612, %v3611
      %v3663 = vpack.c.b16 %v3614, %v3613
      %v3664 = vpack.c.b16 %v3616, %v3615
      %v3665 = vpack.c.b16 %v3618, %v3617
      %v3666 = vpack.c.b16 %v3620, %v3619
      %v3667 = vpack.c.b16 %v3622, %v3621
      %v3668 = vpack.c.b16 %v3624, %v3623
      %v3669 = vpack.c.b16 %v3626, %v3625
      %v3670 = vpack.c.b16 %v3628, %v3627
      %v3671 = vpack.c.b16 %v3630, %v3629
      %v3672 = vpack.c.b16 %v3632, %v3631
      %v3673 = vpack.c.b16 %v3634, %v3633
      %v3674 = vpack.c.b16 %v3636, %v3635
      %v3675 = vpack.c.b16 %v3638, %v3637
      %v3676 = vpack.c.b16 %v3640, %v3639
      %v3714 = vsel %vm336, %v3342, 0
      %v3717 = vsel %vm336, %v3347, 0
      %v3720 = vsel %vm336, %v3352, 0
      %v3723 = vsel %vm336, %v3357, 0
      %v3726 = vsel %vm336, %v3362, 0
      %v3729 = vsel %vm336, %v3367, 0
      %v3732 = vsel %vm336, %v3372, 0
      %v3735 = vsel %vm336, %v3377, 0
      %v3738 = vsel %vm336, %v3382, 0
      %v3741 = vsel %vm336, %v3387, 0
      %v3744 = vsel %vm336, %v3392, 0
      %v3747 = vsel %vm336, %v3397, 0
      %v3750 = vsel %vm336, %v3402, 0
      %v3753 = vsel %vm336, %v3407, 0
      %v3756 = vsel %vm336, %v3412, 0
      %v3759 = vsel %vm336, %v3417, 0
      %3761 = vmatprep.subr.bf16.mxu0 0
      %3762 = vmatpush1.bf16.msra.mxu0 %v3641
      %3763 = vmatprep.subr.bf16.mxu0 0
      %3764 = vmatpush1.bf16.msra.mxu0 %v3642
      %3765 = vmatprep.subr.bf16.mxu0 0
      %3766 = vmatpush1.bf16.msra.mxu0 %v3643
      %3767 = vmatprep.subr.bf16.mxu0 0
      %3768 = vmatpush1.bf16.msra.mxu0 %v3644
      %3769 = vmatprep.subr.bf16.mxu0 0
      %3770 = vmatpush1.bf16.msra.mxu0 %v3645
      %3771 = vmatprep.subr.bf16.mxu0 0
      %3772 = vmatpush1.bf16.msra.mxu0 %v3646
      %3773 = vmatprep.subr.bf16.mxu0 0
      %3774 = vmatpush1.bf16.msra.mxu0 %v3647
      %3775 = vmatprep.subr.bf16.mxu0 0
      %3776 = vmatpush1.bf16.msra.mxu0 %v3648
      %3777 = vmatprep.subr.bf16.mxu0 0
      %3778 = vmatpush1.bf16.msra.mxu0 %v3649
      %3779 = vmatprep.subr.bf16.mxu0 0
      %3780 = vmatpush1.bf16.msra.mxu0 %v3650
      %3781 = vmatprep.subr.bf16.mxu0 0
      %3782 = vmatpush1.bf16.msra.mxu0 %v3651
      %3783 = vmatprep.subr.bf16.mxu0 0
      %3784 = vmatpush1.bf16.msra.mxu0 %v3652
      %3785 = vmatprep.subr.bf16.mxu0 0
      %3786 = vmatpush1.bf16.msra.mxu0 %v3653
      %3787 = vmatprep.subr.bf16.mxu0 0
      %3788 = vmatpush1.bf16.msra.mxu0 %v3654
      %3789 = vmatprep.subr.bf16.mxu0 0
      %3790 = vmatpush1.bf16.msra.mxu0 %v3655
      %3791 = vmatprep.subr.bf16.mxu0 0
      %3792 = vmatpush1.bf16.msra.mxu0 %v3656
      %3793 = vmatprep.mubr.bf16.mxu0 %v3339
      %3794 = vmatmul.mubr.bf16.gmra.mrb[0].mxu0 %v3338
      %v3795 = vpop.f32.mrb[0].mxu0
      %v3796 = vadd.f32 %v3495, %v3795
      %v3797 = vpop.f32.mrb[0].mxu0
      %v3798 = vpop.f32.mrb[0].mxu0
      %v3799 = vadd.f32 %v3495, %v3798
      %v3800 = vpop.f32.mrb[0].mxu0
      %3801 = vmatprep.mubr.bf16.mxu0 %v3344
      %3802 = vmatmul.mubr.bf16.gmra.mrb[0].mxu0 %v3343
      %v3803 = vpop.f32.mrb[0].mxu0
      %v3804 = vadd.f32 %v3495, %v3803
      %v3805 = vpop.f32.mrb[0].mxu0
      %v3806 = vpop.f32.mrb[0].mxu0
      %v3807 = vadd.f32 %v3495, %v3806
      %v3808 = vpop.f32.mrb[0].mxu0
      %3809 = vmatprep.mubr.bf16.mxu0 %v3349
      %3810 = vmatmul.mubr.bf16.gmra.mrb[0].mxu0 %v3348
      %v3811 = vpop.f32.mrb[0].mxu0
      %v3812 = vadd.f32 %v3495, %v3811
      %v3813 = vpop.f32.mrb[0].mxu0
      %v3814 = vpop.f32.mrb[0].mxu0
      %v3815 = vadd.f32 %v3495, %v3814
      %v3816 = vpop.f32.mrb[0].mxu0
      %3817 = vmatprep.mubr.bf16.mxu0 %v3354
      %3818 = vmatmul.mubr.bf16.gmra.mrb[0].mxu0 %v3353
      %v3819 = vpop.f32.mrb[0].mxu0
      %v3820 = vadd.f32 %v3495, %v3819
      %v3821 = vpop.f32.mrb[0].mxu0
      %v3822 = vpop.f32.mrb[0].mxu0
      %v3823 = vadd.f32 %v3495, %v3822
      %v3824 = vpop.f32.mrb[0].mxu0
      %3825 = vmatprep.mubr.bf16.mxu0 %v3359
      %3826 = vmatmul.mubr.bf16.gmra.mrb[0].mxu0 %v3358
      %v3827 = vpop.f32.mrb[0].mxu0
      %v3828 = vadd.f32 %v3495, %v3827
      %v3829 = vpop.f32.mrb[0].mxu0
      %v3830 = vpop.f32.mrb[0].mxu0
      %v3831 = vadd.f32 %v3495, %v3830
      %v3832 = vpop.f32.mrb[0].mxu0
      %3833 = vmatprep.mubr.bf16.mxu0 %v3364
      %3834 = vmatmul.mubr.bf16.gmra.mrb[0].mxu0 %v3363
      %v3835 = vpop.f32.mrb[0].mxu0
      %v3836 = vadd.f32 %v3495, %v3835
      %v3837 = vpop.f32.mrb[0].mxu0
      %v3838 = vpop.f32.mrb[0].mxu0
      %v3839 = vadd.f32 %v3495, %v3838
      %v3840 = vpop.f32.mrb[0].mxu0
      %3841 = vmatprep.mubr.bf16.mxu0 %v3369
      %3842 = vmatmul.mubr.bf16.gmra.mrb[0].mxu0 %v3368
      %v3843 = vpop.f32.mrb[0].mxu0
      %v3844 = vadd.f32 %v3495, %v3843
      %v3845 = vpop.f32.mrb[0].mxu0
      %v3846 = vpop.f32.mrb[0].mxu0
      %v3847 = vadd.f32 %v3495, %v3846
      %v3848 = vpop.f32.mrb[0].mxu0
      %3849 = vmatprep.mubr.bf16.mxu0 %v3374
      %3850 = vmatmul.mubr.bf16.gmra.mrb[0].mxu0 %v3373
      %v3851 = vpop.f32.mrb[0].mxu0
      %v3852 = vadd.f32 %v3495, %v3851
      %v3853 = vpop.f32.mrb[0].mxu0
      %v3854 = vpop.f32.mrb[0].mxu0
      %v3855 = vadd.f32 %v3495, %v3854
      %v3856 = vpop.f32.mrb[0].mxu0
      %3857 = vmatprep.mubr.bf16.mxu0 %v3379
      %3858 = vmatmul.mubr.bf16.gmra.mrb[0].mxu0 %v3378
      %v3859 = vpop.f32.mrb[0].mxu0
      %v3860 = vadd.f32 %v3495, %v3859
      %v3861 = vpop.f32.mrb[0].mxu0
      %v3862 = vpop.f32.mrb[0].mxu0
      %v3863 = vadd.f32 %v3495, %v3862
      %v3864 = vpop.f32.mrb[0].mxu0
      %3865 = vmatprep.mubr.bf16.mxu0 %v3384
      %3866 = vmatmul.mubr.bf16.gmra.mrb[0].mxu0 %v3383
      %v3867 = vpop.f32.mrb[0].mxu0
      %v3868 = vadd.f32 %v3495, %v3867
      %v3869 = vpop.f32.mrb[0].mxu0
      %v3870 = vpop.f32.mrb[0].mxu0
      %v3871 = vadd.f32 %v3495, %v3870
      %v3872 = vpop.f32.mrb[0].mxu0
      %3873 = vmatprep.mubr.bf16.mxu0 %v3389
      %3874 = vmatmul.mubr.bf16.gmra.mrb[0].mxu0 %v3388
      %v3875 = vpop.f32.mrb[0].mxu0
      %v3876 = vadd.f32 %v3495, %v3875
      %v3877 = vpop.f32.mrb[0].mxu0
      %v3878 = vpop.f32.mrb[0].mxu0
      %v3879 = vadd.f32 %v3495, %v3878
      %v3880 = vpop.f32.mrb[0].mxu0
      %3881 = vmatprep.mubr.bf16.mxu0 %v3394
      %3882 = vmatmul.mubr.bf16.gmra.mrb[0].mxu0 %v3393
      %v3883 = vpop.f32.mrb[0].mxu0
      %v3884 = vadd.f32 %v3495, %v3883
      %v3885 = vpop.f32.mrb[0].mxu0
      %v3886 = vpop.f32.mrb[0].mxu0
      %v3887 = vadd.f32 %v3495, %v3886
      %v3888 = vpop.f32.mrb[0].mxu0
      %3889 = vmatprep.mubr.bf16.mxu0 %v3399
      %3890 = vmatmul.mubr.bf16.gmra.mrb[0].mxu0 %v3398
      %v3891 = vpop.f32.mrb[0].mxu0
      %v3892 = vadd.f32 %v3495, %v3891
      %v3893 = vpop.f32.mrb[0].mxu0
      %v3894 = vpop.f32.mrb[0].mxu0
      %v3895 = vadd.f32 %v3495, %v3894
      %v3896 = vpop.f32.mrb[0].mxu0
      %3897 = vmatprep.mubr.bf16.mxu0 %v3404
      %3898 = vmatmul.mubr.bf16.gmra.mrb[0].mxu0 %v3403
      %v3899 = vpop.f32.mrb[0].mxu0
      %v3900 = vadd.f32 %v3495, %v3899
      %v3901 = vpop.f32.mrb[0].mxu0
      %v3902 = vpop.f32.mrb[0].mxu0
      %v3903 = vadd.f32 %v3495, %v3902
      %v3904 = vpop.f32.mrb[0].mxu0
      %3905 = vmatprep.mubr.bf16.mxu0 %v3409
      %3906 = vmatmul.mubr.bf16.gmra.mrb[0].mxu0 %v3408
      %v3907 = vpop.f32.mrb[0].mxu0
      %v3908 = vadd.f32 %v3495, %v3907
      %v3909 = vpop.f32.mrb[0].mxu0
      %v3910 = vpop.f32.mrb[0].mxu0
      %v3911 = vadd.f32 %v3495, %v3910
      %v3912 = vpop.f32.mrb[0].mxu0
      %3913 = vmatprep.mubr.bf16.mxu0 %v3414
      %3914 = vmatmul.mubr.bf16.gmra.mrb[0].mxu0 %v3413
      %v3915 = vpop.f32.mrb[0].mxu0
      %v3916 = vadd.f32 %v3495, %v3915
      %v3917 = vpop.f32.mrb[0].mxu0
      %v3918 = vpop.f32.mrb[0].mxu0
      %v3919 = vadd.f32 %v3495, %v3918
      %v3920 = vpop.f32.mrb[0].mxu0
      %3921 = vdwg.mxu0
      %3922 = vmatprep.subr.bf16.mxu0 0
      %3923 = vmatpush1.bf16.msra.mxu0 %v3657
      %3924 = vmatprep.subr.bf16.mxu0 0
      %3925 = vmatpush1.bf16.msra.mxu0 %v3658
      %3926 = vmatprep.subr.bf16.mxu0 0
      %3927 = vmatpush1.bf16.msra.mxu0 %v3659
      %3928 = vmatprep.subr.bf16.mxu0 0
      %3929 = vmatpush1.bf16.msra.mxu0 %v3660
      %3930 = vmatprep.subr.bf16.mxu0 0
      %3931 = vmatpush1.bf16.msra.mxu0 %v3661
      %3932 = vmatprep.subr.bf16.mxu0 0
      %3933 = vmatpush1.bf16.msra.mxu0 %v3662
      %3934 = vmatprep.subr.bf16.mxu0 0
      %3935 = vmatpush1.bf16.msra.mxu0 %v3663
      %3936 = vmatprep.subr.bf16.mxu0 0
      %3937 = vmatpush1.bf16.msra.mxu0 %v3664
      %3938 = vmatprep.subr.bf16.mxu0 0
      %3939 = vmatpush1.bf16.msra.mxu0 %v3665
      %3940 = vmatprep.subr.bf16.mxu0 0
      %3941 = vmatpush1.bf16.msra.mxu0 %v3666
      %3942 = vmatprep.subr.bf16.mxu0 0
      %3943 = vmatpush1.bf16.msra.mxu0 %v3667
      %3944 = vmatprep.subr.bf16.mxu0 0
      %3945 = vmatpush1.bf16.msra.mxu0 %v3668
      %3946 = vmatprep.subr.bf16.mxu0 0
      %3947 = vmatpush1.bf16.msra.mxu0 %v3669
      %3948 = vmatprep.subr.bf16.mxu0 0
      %3949 = vmatpush1.bf16.msra.mxu0 %v3670
      %3950 = vmatprep.subr.bf16.mxu0 0
      %3951 = vmatpush1.bf16.msra.mxu0 %v3671
      %3952 = vmatprep.subr.bf16.mxu0 0
      %3953 = vmatpush1.bf16.msra.mxu0 %v3672
      %3954 = vmatprep.mubr.bf16.mxu0 %v3341
      %3955 = vmatmul.mubr.bf16.gmra.mrb[0].mxu0 %v3340
      %v3956 = vpop.f32.mrb[0].mxu0
      %v3957 = vadd.f32 %v3796, %v3956
      %v3958 = vpop.f32.mrb[0].mxu0
      %v3959 = vpop.f32.mrb[0].mxu0
      %v3960 = vadd.f32 %v3799, %v3959
      %v3961 = vpop.f32.mrb[0].mxu0
      %3962 = vmatprep.mubr.bf16.mxu0 %v3346
      %3963 = vmatmul.mubr.bf16.gmra.mrb[0].mxu0 %v3345
      %v3964 = vpop.f32.mrb[0].mxu0
      %v3965 = vadd.f32 %v3804, %v3964
      %v3966 = vpop.f32.mrb[0].mxu0
      %v3967 = vpop.f32.mrb[0].mxu0
      %v3968 = vadd.f32 %v3807, %v3967
      %v3969 = vpop.f32.mrb[0].mxu0
      %3970 = vmatprep.mubr.bf16.mxu0 %v3351
      %3971 = vmatmul.mubr.bf16.gmra.mrb[0].mxu0 %v3350
      %v3972 = vpop.f32.mrb[0].mxu0
      %v3973 = vadd.f32 %v3812, %v3972
      %v3974 = vpop.f32.mrb[0].mxu0
      %v3975 = vpop.f32.mrb[0].mxu0
      %v3976 = vadd.f32 %v3815, %v3975
      %v3977 = vpop.f32.mrb[0].mxu0
      %3978 = vmatprep.mubr.bf16.mxu0 %v3356
      %3979 = vmatmul.mubr.bf16.gmra.mrb[0].mxu0 %v3355
      %v3980 = vpop.f32.mrb[0].mxu0
      %v3981 = vadd.f32 %v3820, %v3980
      %v3982 = vpop.f32.mrb[0].mxu0
      %v3983 = vpop.f32.mrb[0].mxu0
      %v3984 = vadd.f32 %v3823, %v3983
      %v3985 = vpop.f32.mrb[0].mxu0
      %3986 = vmatprep.mubr.bf16.mxu0 %v3361
      %3987 = vmatmul.mubr.bf16.gmra.mrb[0].mxu0 %v3360
      %v3988 = vpop.f32.mrb[0].mxu0
      %v3989 = vadd.f32 %v3828, %v3988
      %v3990 = vpop.f32.mrb[0].mxu0
      %v3991 = vpop.f32.mrb[0].mxu0
      %v3992 = vadd.f32 %v3831, %v3991
      %v3993 = vpop.f32.mrb[0].mxu0
      %3994 = vmatprep.mubr.bf16.mxu0 %v3366
      %3995 = vmatmul.mubr.bf16.gmra.mrb[0].mxu0 %v3365
      %v3996 = vpop.f32.mrb[0].mxu0
      %v3997 = vadd.f32 %v3836, %v3996
      %v3998 = vpop.f32.mrb[0].mxu0
      %v3999 = vpop.f32.mrb[0].mxu0
      %v4000 = vadd.f32 %v3839, %v3999
      %v4001 = vpop.f32.mrb[0].mxu0
      %4002 = vmatprep.mubr.bf16.mxu0 %v3371
      %4003 = vmatmul.mubr.bf16.gmra.mrb[0].mxu0 %v3370
      %v4004 = vpop.f32.mrb[0].mxu0
      %v4005 = vadd.f32 %v3844, %v4004
      %v4006 = vpop.f32.mrb[0].mxu0
      %v4007 = vpop.f32.mrb[0].mxu0
      %v4008 = vadd.f32 %v3847, %v4007
      %v4009 = vpop.f32.mrb[0].mxu0
      %4010 = vmatprep.mubr.bf16.mxu0 %v3376
      %4011 = vmatmul.mubr.bf16.gmra.mrb[0].mxu0 %v3375
      %v4012 = vpop.f32.mrb[0].mxu0
      %v4013 = vadd.f32 %v3852, %v4012
      %v4014 = vpop.f32.mrb[0].mxu0
      %v4015 = vpop.f32.mrb[0].mxu0
      %v4016 = vadd.f32 %v3855, %v4015
      %v4017 = vpop.f32.mrb[0].mxu0
      %4018 = vmatprep.mubr.bf16.mxu0 %v3381
      %4019 = vmatmul.mubr.bf16.gmra.mrb[0].mxu0 %v3380
      %v4020 = vpop.f32.mrb[0].mxu0
      %v4021 = vadd.f32 %v3860, %v4020
      %v4022 = vpop.f32.mrb[0].mxu0
      %v4023 = vpop.f32.mrb[0].mxu0
      %v4024 = vadd.f32 %v3863, %v4023
      %v4025 = vpop.f32.mrb[0].mxu0
      %4026 = vmatprep.mubr.bf16.mxu0 %v3386
      %4027 = vmatmul.mubr.bf16.gmra.mrb[0].mxu0 %v3385
      %v4028 = vpop.f32.mrb[0].mxu0
      %v4029 = vadd.f32 %v3868, %v4028
      %v4030 = vpop.f32.mrb[0].mxu0
      %v4031 = vpop.f32.mrb[0].mxu0
      %v4032 = vadd.f32 %v3871, %v4031
      %v4033 = vpop.f32.mrb[0].mxu0
      %4034 = vmatprep.mubr.bf16.mxu0 %v3391
      %4035 = vmatmul.mubr.bf16.gmra.mrb[0].mxu0 %v3390
      %v4036 = vpop.f32.mrb[0].mxu0
      %v4037 = vadd.f32 %v3876, %v4036
      %v4038 = vpop.f32.mrb[0].mxu0
      %v4039 = vpop.f32.mrb[0].mxu0
      %v4040 = vadd.f32 %v3879, %v4039
      %v4041 = vpop.f32.mrb[0].mxu0
      %4042 = vmatprep.mubr.bf16.mxu0 %v3396
      %4043 = vmatmul.mubr.bf16.gmra.mrb[0].mxu0 %v3395
      %v4044 = vpop.f32.mrb[0].mxu0
      %v4045 = vadd.f32 %v3884, %v4044
      %v4046 = vpop.f32.mrb[0].mxu0
      %v4047 = vpop.f32.mrb[0].mxu0
      %v4048 = vadd.f32 %v3887, %v4047
      %v4049 = vpop.f32.mrb[0].mxu0
      %4050 = vmatprep.mubr.bf16.mxu0 %v3401
      %4051 = vmatmul.mubr.bf16.gmra.mrb[0].mxu0 %v3400
      %v4052 = vpop.f32.mrb[0].mxu0
      %v4053 = vadd.f32 %v3892, %v4052
      %v4054 = vpop.f32.mrb[0].mxu0
      %v4055 = vpop.f32.mrb[0].mxu0
      %v4056 = vadd.f32 %v3895, %v4055
      %v4057 = vpop.f32.mrb[0].mxu0
      %4058 = vmatprep.mubr.bf16.mxu0 %v3406
      %4059 = vmatmul.mubr.bf16.gmra.mrb[0].mxu0 %v3405
      %v4060 = vpop.f32.mrb[0].mxu0
      %v4061 = vadd.f32 %v3900, %v4060
      %v4062 = vpop.f32.mrb[0].mxu0
      %v4063 = vpop.f32.mrb[0].mxu0
      %v4064 = vadd.f32 %v3903, %v4063
      %v4065 = vpop.f32.mrb[0].mxu0
      %4066 = vmatprep.mubr.bf16.mxu0 %v3411
      %4067 = vmatmul.mubr.bf16.gmra.mrb[0].mxu0 %v3410
      %v4068 = vpop.f32.mrb[0].mxu0
      %v4069 = vadd.f32 %v3908, %v4068
      %v4070 = vpop.f32.mrb[0].mxu0
      %v4071 = vpop.f32.mrb[0].mxu0
      %v4072 = vadd.f32 %v3911, %v4071
      %v4073 = vpop.f32.mrb[0].mxu0
      %4074 = vmatprep.mubr.bf16.mxu0 %v3416
      %4075 = vmatmul.mubr.bf16.gmra.mrb[0].mxu0 %v3415
      %v4076 = vpop.f32.mrb[0].mxu0
      %v4077 = vadd.f32 %v3916, %v4076
      %v4078 = vpop.f32.mrb[0].mxu0
      %v4079 = vpop.f32.mrb[0].mxu0
      %v4080 = vadd.f32 %v3919, %v4079
      %v4081 = vpop.f32.mrb[0].mxu0
      %4082 = vdwg.mxu0
      %4083 = vmatprep.subr.bf16.mxu0 0
      %4084 = vmatpush1.bf16.msra.mxu0 %v3673
      %4085 = vmatprep.subr.bf16.mxu0 0
      %4086 = vmatpush1.bf16.msra.mxu0 %v3674
      %4087 = vmatprep.subr.bf16.mxu0 0
      %4088 = vmatpush1.bf16.msra.mxu0 %v3675
      %4089 = vmatprep.subr.bf16.mxu0 0
      %4090 = vmatpush1.bf16.msra.mxu0 %v3676
      %4091 = vmatprep.subr.bf16.mxu0 0
      %4092 = vmatpush1.bf16.msra.mxu0 0
      %4093 = vmatprep.subr.bf16.mxu0 0
      %4094 = vmatpush1.bf16.msra.mxu0 0
      %4095 = vmatprep.subr.bf16.mxu0 0
      %4096 = vmatpush1.bf16.msra.mxu0 0
      %4097 = vmatprep.subr.bf16.mxu0 0
      %4098 = vmatpush1.bf16.msra.mxu0 0
      %4099 = vmatprep.subr.bf16.mxu0 0
      %4100 = vmatpush1.bf16.msra.mxu0 0
      %4101 = vmatprep.subr.bf16.mxu0 0
      %4102 = vmatpush1.bf16.msra.mxu0 0
      %4103 = vmatprep.subr.bf16.mxu0 0
      %4104 = vmatpush1.bf16.msra.mxu0 0
      %4105 = vmatprep.subr.bf16.mxu0 0
      %4106 = vmatpush1.bf16.msra.mxu0 0
      %4107 = vmatprep.subr.bf16.mxu0 0
      %4108 = vmatpush1.bf16.msra.mxu0 0
      %4109 = vmatprep.subr.bf16.mxu0 0
      %4110 = vmatpush1.bf16.msra.mxu0 0
      %4111 = vmatprep.subr.bf16.mxu0 0
      %4112 = vmatpush1.bf16.msra.mxu0 0
      %4113 = vmatprep.subr.bf16.mxu0 0
      %4114 = vmatpush1.bf16.msra.mxu0 0
      %4115 = vmatprep.mubr.bf16.mxu0 0
      %4116 = vmatmul.mubr.bf16.gmra.mrb[0].mxu0 %v3714
      %v4117 = vpop.f32.mrb[0].mxu0
      %v4118 = vadd.f32 %v3957, %v4117
      %v4119 = vpop.f32.mrb[0].mxu0
      %v4120 = vpop.f32.mrb[0].mxu0
      %v4121 = vadd.f32 %v3960, %v4120
      %v4122 = vpop.f32.mrb[0].mxu0
      %4123 = vmatprep.mubr.bf16.mxu0 0
      %4124 = vmatmul.mubr.bf16.gmra.mrb[0].mxu0 %v3717
      %v4125 = vpop.f32.mrb[0].mxu0
      %v4126 = vadd.f32 %v3965, %v4125
      %v4127 = vpop.f32.mrb[0].mxu0
      %v4128 = vpop.f32.mrb[0].mxu0
      %v4129 = vadd.f32 %v3968, %v4128
      %v4130 = vpop.f32.mrb[0].mxu0
      %4131 = vmatprep.mubr.bf16.mxu0 0
      %4132 = vmatmul.mubr.bf16.gmra.mrb[0].mxu0 %v3720
      %v4133 = vpop.f32.mrb[0].mxu0
      %v4134 = vadd.f32 %v3973, %v4133
      %v4135 = vpop.f32.mrb[0].mxu0
      %v4136 = vpop.f32.mrb[0].mxu0
      %v4137 = vadd.f32 %v3976, %v4136
      %v4138 = vpop.f32.mrb[0].mxu0
      %4139 = vmatprep.mubr.bf16.mxu0 0
      %4140 = vmatmul.mubr.bf16.gmra.mrb[0].mxu0 %v3723
      %v4141 = vpop.f32.mrb[0].mxu0
      %v4142 = vadd.f32 %v3981, %v4141
      %v4143 = vpop.f32.mrb[0].mxu0
      %v4144 = vpop.f32.mrb[0].mxu0
      %v4145 = vadd.f32 %v3984, %v4144
      %v4146 = vpop.f32.mrb[0].mxu0
      %4147 = vmatprep.mubr.bf16.mxu0 0
      %4148 = vmatmul.mubr.bf16.gmra.mrb[0].mxu0 %v3726
      %v4149 = vpop.f32.mrb[0].mxu0
      %v4150 = vadd.f32 %v3989, %v4149
      %v4151 = vpop.f32.mrb[0].mxu0
      %v4152 = vpop.f32.mrb[0].mxu0
      %v4153 = vadd.f32 %v3992, %v4152
      %v4154 = vpop.f32.mrb[0].mxu0
      %4155 = vmatprep.mubr.bf16.mxu0 0
      %4156 = vmatmul.mubr.bf16.gmra.mrb[0].mxu0 %v3729
      %v4157 = vpop.f32.mrb[0].mxu0
      %v4158 = vadd.f32 %v3997, %v4157
      %v4159 = vpop.f32.mrb[0].mxu0
      %v4160 = vpop.f32.mrb[0].mxu0
      %v4161 = vadd.f32 %v4000, %v4160
      %v4162 = vpop.f32.mrb[0].mxu0
      %4163 = vmatprep.mubr.bf16.mxu0 0
      %4164 = vmatmul.mubr.bf16.gmra.mrb[0].mxu0 %v3732
      %v4165 = vpop.f32.mrb[0].mxu0
      %v4166 = vadd.f32 %v4005, %v4165
      %v4167 = vpop.f32.mrb[0].mxu0
      %v4168 = vpop.f32.mrb[0].mxu0
      %v4169 = vadd.f32 %v4008, %v4168
      %v4170 = vpop.f32.mrb[0].mxu0
      %4171 = vmatprep.mubr.bf16.mxu0 0
      %4172 = vmatmul.mubr.bf16.gmra.mrb[0].mxu0 %v3735
      %v4173 = vpop.f32.mrb[0].mxu0
      %v4174 = vadd.f32 %v4013, %v4173
      %v4175 = vpop.f32.mrb[0].mxu0
      %v4176 = vpop.f32.mrb[0].mxu0
      %v4177 = vadd.f32 %v4016, %v4176
      %v4178 = vpop.f32.mrb[0].mxu0
      %4179 = vmatprep.mubr.bf16.mxu0 0
      %4180 = vmatmul.mubr.bf16.gmra.mrb[0].mxu0 %v3738
      %v4181 = vpop.f32.mrb[0].mxu0
      %v4182 = vadd.f32 %v4021, %v4181
      %v4183 = vpop.f32.mrb[0].mxu0
      %v4184 = vpop.f32.mrb[0].mxu0
      %v4185 = vadd.f32 %v4024, %v4184
      %v4186 = vpop.f32.mrb[0].mxu0
      %4187 = vmatprep.mubr.bf16.mxu0 0
      %4188 = vmatmul.mubr.bf16.gmra.mrb[0].mxu0 %v3741
      %v4189 = vpop.f32.mrb[0].mxu0
      %v4190 = vadd.f32 %v4029, %v4189
      %v4191 = vpop.f32.mrb[0].mxu0
      %v4192 = vpop.f32.mrb[0].mxu0
      %v4193 = vadd.f32 %v4032, %v4192
      %v4194 = vpop.f32.mrb[0].mxu0
      %4195 = vmatprep.mubr.bf16.mxu0 0
      %4196 = vmatmul.mubr.bf16.gmra.mrb[0].mxu0 %v3744
      %v4197 = vpop.f32.mrb[0].mxu0
      %v4198 = vadd.f32 %v4037, %v4197
      %v4199 = vpop.f32.mrb[0].mxu0
      %v4200 = vpop.f32.mrb[0].mxu0
      %v4201 = vadd.f32 %v4040, %v4200
      %v4202 = vpop.f32.mrb[0].mxu0
      %4203 = vmatprep.mubr.bf16.mxu0 0
      %4204 = vmatmul.mubr.bf16.gmra.mrb[0].mxu0 %v3747
      %v4205 = vpop.f32.mrb[0].mxu0
      %v4206 = vadd.f32 %v4045, %v4205
      %v4207 = vpop.f32.mrb[0].mxu0
      %v4208 = vpop.f32.mrb[0].mxu0
      %v4209 = vadd.f32 %v4048, %v4208
      %v4210 = vpop.f32.mrb[0].mxu0
      %4211 = vmatprep.mubr.bf16.mxu0 0
      %4212 = vmatmul.mubr.bf16.gmra.mrb[0].mxu0 %v3750
      %v4213 = vpop.f32.mrb[0].mxu0
      %v4214 = vadd.f32 %v4053, %v4213
      %v4215 = vpop.f32.mrb[0].mxu0
      %v4216 = vpop.f32.mrb[0].mxu0
      %v4217 = vadd.f32 %v4056, %v4216
      %v4218 = vpop.f32.mrb[0].mxu0
      %4219 = vmatprep.mubr.bf16.mxu0 0
      %4220 = vmatmul.mubr.bf16.gmra.mrb[0].mxu0 %v3753
      %v4221 = vpop.f32.mrb[0].mxu0
      %v4222 = vadd.f32 %v4061, %v4221
      %v4223 = vpop.f32.mrb[0].mxu0
      %v4224 = vpop.f32.mrb[0].mxu0
      %v4225 = vadd.f32 %v4064, %v4224
      %v4226 = vpop.f32.mrb[0].mxu0
      %4227 = vmatprep.mubr.bf16.mxu0 0
      %4228 = vmatmul.mubr.bf16.gmra.mrb[0].mxu0 %v3756
      %v4229 = vpop.f32.mrb[0].mxu0
      %v4230 = vadd.f32 %v4069, %v4229
      %v4231 = vpop.f32.mrb[0].mxu0
      %v4232 = vpop.f32.mrb[0].mxu0
      %v4233 = vadd.f32 %v4072, %v4232
      %v4234 = vpop.f32.mrb[0].mxu0
      %4235 = vmatprep.mubr.bf16.mxu0 0
      %4236 = vmatmul.mubr.bf16.gmra.mrb[0].mxu0 %v3759
      %v4237 = vpop.f32.mrb[0].mxu0
      %v4238 = vadd.f32 %v4077, %v4237
      %v4239 = vpop.f32.mrb[0].mxu0
      %v4240 = vpop.f32.mrb[0].mxu0
      %v4241 = vadd.f32 %v4080, %v4240
      %v4242 = vpop.f32.mrb[0].mxu0
      %4243 = vdwg.mxu0
      %v4244 = vmax.f32 %v4118, 0.0
      %v4245 = vmax.f32 %v4121, 0.0
      %v4246 = vmax.f32 %v4126, 0.0
      %v4247 = vmax.f32 %v4129, 0.0
      %v4248 = vmax.f32 %v4134, 0.0
      %v4249 = vmax.f32 %v4137, 0.0
      %v4250 = vmax.f32 %v4142, 0.0
      %v4251 = vmax.f32 %v4145, 0.0
      %v4252 = vmax.f32 %v4150, 0.0
      %v4253 = vmax.f32 %v4153, 0.0
      %v4254 = vmax.f32 %v4158, 0.0
      %v4255 = vmax.f32 %v4161, 0.0
      %v4256 = vmax.f32 %v4166, 0.0
      %v4257 = vmax.f32 %v4169, 0.0
      %v4258 = vmax.f32 %v4174, 0.0
      %v4259 = vmax.f32 %v4177, 0.0
      %v4260 = vmax.f32 %v4182, 0.0
      %v4261 = vmax.f32 %v4185, 0.0
      %v4262 = vmax.f32 %v4190, 0.0
      %v4263 = vmax.f32 %v4193, 0.0
      %v4264 = vmax.f32 %v4198, 0.0
      %v4265 = vmax.f32 %v4201, 0.0
      %v4266 = vmax.f32 %v4206, 0.0
      %v4267 = vmax.f32 %v4209, 0.0
      %v4268 = vmax.f32 %v4214, 0.0
      %v4269 = vmax.f32 %v4217, 0.0
      %v4270 = vmax.f32 %v4222, 0.0
      %v4271 = vmax.f32 %v4225, 0.0
      %v4272 = vmax.f32 %v4230, 0.0
      %v4273 = vmax.f32 %v4233, 0.0
      %v4274 = vmax.f32 %v4238, 0.0
      %v4275 = vmax.f32 %v4241, 0.0
      %s4276 = scalar_lea.vmem [#allocation4], 24
      %4277 = vst.msk [vmem:[%s4276 + $0x1] sm:$0xff] %vm336, %v4244
      %4278 = vst.msk [vmem:[%s4276 + $0x9] sm:$0xff] %vm336, %v4245
      %4279 = vst.msk [vmem:[%s4276 + $0x19] sm:$0xff] %vm336, %v4246
      %4280 = vst.msk [vmem:[%s4276 + $0x21] sm:$0xff] %vm336, %v4247
      %4281 = vst.msk [vmem:[%s4276 + $0x31] sm:$0xff] %vm336, %v4248
      %4282 = vst.msk [vmem:[%s4276 + $0x39] sm:$0xff] %vm336, %v4249
      %4283 = vst.msk [vmem:[%s4276 + $0x49] sm:$0xff] %vm336, %v4250
      %4284 = vst.msk [vmem:[%s4276 + $0x51] sm:$0xff] %vm336, %v4251
      %4285 = vst.msk [vmem:[%s4276 + $0x61] sm:$0xff] %vm336, %v4252
      %4286 = vst.msk [vmem:[%s4276 + $0x69] sm:$0xff] %vm336, %v4253
      %4287 = vst.msk [vmem:[%s4276 + $0x79] sm:$0xff] %vm336, %v4254
      %4288 = vst.msk [vmem:[%s4276 + $0x81] sm:$0xff] %vm336, %v4255
      %4289 = vst.msk [vmem:[%s4276 + $0x91] sm:$0xff] %vm336, %v4256
      %4290 = vst.msk [vmem:[%s4276 + $0x99] sm:$0xff] %vm336, %v4257
      %4291 = vst.msk [vmem:[%s4276 + $0xa9] sm:$0xff] %vm336, %v4258
      %4292 = vst.msk [vmem:[%s4276 + $0xb1] sm:$0xff] %vm336, %v4259
      %4293 = vst.msk [vmem:[%s4276 + $0xc1] sm:$0xff] %vm336, %v4260
      %4294 = vst.msk [vmem:[%s4276 + $0xc9] sm:$0xff] %vm336, %v4261
      %4295 = vst.msk [vmem:[%s4276 + $0xd9] sm:$0xff] %vm336, %v4262
      %4296 = vst.msk [vmem:[%s4276 + $0xe1] sm:$0xff] %vm336, %v4263
      %4297 = vst.msk [vmem:[%s4276 + $0xf1] sm:$0xff] %vm336, %v4264
      %4298 = vst.msk [vmem:[%s4276 + $0xf9] sm:$0xff] %vm336, %v4265
      %4299 = vst.msk [vmem:[%s4276 + $0x109] sm:$0xff] %vm336, %v4266
      %4300 = vst.msk [vmem:[%s4276 + $0x111] sm:$0xff] %vm336, %v4267
      %4301 = vst.msk [vmem:[%s4276 + $0x121] sm:$0xff] %vm336, %v4268
      %4302 = vst.msk [vmem:[%s4276 + $0x129] sm:$0xff] %vm336, %v4269
      %4303 = vst.msk [vmem:[%s4276 + $0x139] sm:$0xff] %vm336, %v4270
      %4304 = vst.msk [vmem:[%s4276 + $0x141] sm:$0xff] %vm336, %v4271
      %4305 = vst.msk [vmem:[%s4276 + $0x151] sm:$0xff] %vm336, %v4272
      %4306 = vst.msk [vmem:[%s4276 + $0x159] sm:$0xff] %vm336, %v4273
      %4307 = vst.msk [vmem:[%s4276 + $0x169] sm:$0xff] %vm336, %v4274
      %4308 = vst.msk [vmem:[%s4276 + $0x171] sm:$0xff] %vm336, %v4275
      %v4309 = vld [vmem:[#allocation4] sm:$0xff]
      %v4310 = vld [vmem:[#allocation4 + $0x8] sm:$0xff]
      %v4311 = vld [vmem:[#allocation4 + $0x18] sm:$0xff]
      %v4312 = vld [vmem:[#allocation4 + $0x20] sm:$0xff]
      %v4313 = vld [vmem:[#allocation4 + $0x30] sm:$0xff]
      %v4314 = vld [vmem:[#allocation4 + $0x38] sm:$0xff]
      %v4315 = vld [vmem:[#allocation4 + $0x48] sm:$0xff]
      %v4316 = vld [vmem:[#allocation4 + $0x50] sm:$0xff]
      %v4317 = vld [vmem:[#allocation4 + $0x60] sm:$0xff]
      %v4318 = vld [vmem:[#allocation4 + $0x68] sm:$0xff]
      %v4319 = vld [vmem:[#allocation4 + $0x78] sm:$0xff]
      %v4320 = vld [vmem:[#allocation4 + $0x80] sm:$0xff]
      %v4321 = vld [vmem:[#allocation4 + $0x90] sm:$0xff]
      %v4322 = vld [vmem:[#allocation4 + $0x98] sm:$0xff]
      %v4323 = vld [vmem:[#allocation4 + $0xa8] sm:$0xff]
      %v4324 = vld [vmem:[#allocation4 + $0xb0] sm:$0xff]
      %v4325 = vld [vmem:[#allocation4 + $0xc0] sm:$0xff]
      %v4326 = vld [vmem:[#allocation4 + $0xc8] sm:$0xff]
      %v4327 = vld [vmem:[#allocation4 + $0xd8] sm:$0xff]
      %v4328 = vld [vmem:[#allocation4 + $0xe0] sm:$0xff]
      %v4329 = vld [vmem:[#allocation4 + $0xf0] sm:$0xff]
      %v4330 = vld [vmem:[#allocation4 + $0xf8] sm:$0xff]
      %v4331 = vld [vmem:[#allocation4 + $0x108] sm:$0xff]
      %v4332 = vld [vmem:[#allocation4 + $0x110] sm:$0xff]
      %v4333 = vld [vmem:[#allocation4 + $0x120] sm:$0xff]
      %v4334 = vld [vmem:[#allocation4 + $0x128] sm:$0xff]
      %v4335 = vld [vmem:[#allocation4 + $0x138] sm:$0xff]
      %v4336 = vld [vmem:[#allocation4 + $0x140] sm:$0xff]
      %v4337 = vld [vmem:[#allocation4 + $0x150] sm:$0xff]
      %v4338 = vld [vmem:[#allocation4 + $0x158] sm:$0xff]
      %v4339 = vld [vmem:[#allocation4 + $0x168] sm:$0xff]
      %v4340 = vld [vmem:[#allocation4 + $0x170] sm:$0xff]
      %v4341 = vld [vmem:[#allocation4 + $0x1] sm:$0xff]
      %v4342 = vld [vmem:[#allocation4 + $0x9] sm:$0xff]
      %v4343 = vld [vmem:[#allocation4 + $0x19] sm:$0xff]
      %v4344 = vld [vmem:[#allocation4 + $0x21] sm:$0xff]
      %v4345 = vld [vmem:[#allocation4 + $0x31] sm:$0xff]
      %v4346 = vld [vmem:[#allocation4 + $0x39] sm:$0xff]
      %v4347 = vld [vmem:[#allocation4 + $0x49] sm:$0xff]
      %v4348 = vld [vmem:[#allocation4 + $0x51] sm:$0xff]
      %v4349 = vld [vmem:[#allocation4 + $0x61] sm:$0xff]
      %v4350 = vld [vmem:[#allocation4 + $0x69] sm:$0xff]
      %v4351 = vld [vmem:[#allocation4 + $0x79] sm:$0xff]
      %v4352 = vld [vmem:[#allocation4 + $0x81] sm:$0xff]
      %v4353 = vld [vmem:[#allocation4 + $0x91] sm:$0xff]
      %v4354 = vld [vmem:[#allocation4 + $0x99] sm:$0xff]
      %v4355 = vld [vmem:[#allocation4 + $0xa9] sm:$0xff]
      %v4356 = vld [vmem:[#allocation4 + $0xb1] sm:$0xff]
      %v4357 = vld [vmem:[#allocation4 + $0xc1] sm:$0xff]
      %v4358 = vld [vmem:[#allocation4 + $0xc9] sm:$0xff]
      %v4359 = vld [vmem:[#allocation4 + $0xd9] sm:$0xff]
      %v4360 = vld [vmem:[#allocation4 + $0xe1] sm:$0xff]
      %v4361 = vld [vmem:[#allocation4 + $0xf1] sm:$0xff]
      %v4362 = vld [vmem:[#allocation4 + $0xf9] sm:$0xff]
      %v4363 = vld [vmem:[#allocation4 + $0x109] sm:$0xff]
      %v4364 = vld [vmem:[#allocation4 + $0x111] sm:$0xff]
      %v4365 = vld [vmem:[#allocation4 + $0x121] sm:$0xff]
      %v4366 = vld [vmem:[#allocation4 + $0x129] sm:$0xff]
      %v4367 = vld [vmem:[#allocation4 + $0x139] sm:$0xff]
      %v4368 = vld [vmem:[#allocation4 + $0x141] sm:$0xff]
      %v4369 = vld [vmem:[#allocation4 + $0x151] sm:$0xff]
      %v4370 = vld [vmem:[#allocation4 + $0x159] sm:$0xff]
      %v4371 = vld [vmem:[#allocation4 + $0x169] sm:$0xff]
      %v4372 = vld [vmem:[#allocation4 + $0x171] sm:$0xff]
      %v4373 = vld [vmem:[#allocation4 + $0x2] sm:$0xff]
      %v4374 = vld [vmem:[#allocation4 + $0xa] sm:$0xff]
      %v4375 = vld [vmem:[#allocation4 + $0x1a] sm:$0xff]
      %v4376 = vld [vmem:[#allocation4 + $0x22] sm:$0xff]
      %v4377 = vld [vmem:[#allocation4 + $0x32] sm:$0xff]
      %v4378 = vld [vmem:[#allocation4 + $0x3a] sm:$0xff]
      %v4379 = vld [vmem:[#allocation4 + $0x4a] sm:$0xff]
      %v4380 = vld [vmem:[#allocation4 + $0x52] sm:$0xff]
      %v4381 = vld [vmem:[#allocation4 + $0x62] sm:$0xff]
      %v4382 = vld [vmem:[#allocation4 + $0x6a] sm:$0xff]
      %v4383 = vld [vmem:[#allocation4 + $0x7a] sm:$0xff]
      %v4384 = vld [vmem:[#allocation4 + $0x82] sm:$0xff]
      %v4385 = vld [vmem:[#allocation4 + $0x92] sm:$0xff]
      %v4386 = vld [vmem:[#allocation4 + $0x9a] sm:$0xff]
      %v4387 = vld [vmem:[#allocation4 + $0xaa] sm:$0xff]
      %v4388 = vld [vmem:[#allocation4 + $0xb2] sm:$0xff]
      %v4389 = vld [vmem:[#allocation4 + $0xc2] sm:$0xff]
      %v4390 = vld [vmem:[#allocation4 + $0xca] sm:$0xff]
      %v4391 = vld [vmem:[#allocation4 + $0xda] sm:$0xff]
      %v4392 = vld [vmem:[#allocation4 + $0xe2] sm:$0xff]
      %v4393 = vld [vmem:[#allocation4 + $0xf2] sm:$0xff]
      %v4394 = vld [vmem:[#allocation4 + $0xfa] sm:$0xff]
      %v4395 = vld [vmem:[#allocation4 + $0x10a] sm:$0xff]
      %v4396 = vld [vmem:[#allocation4 + $0x112] sm:$0xff]
      %v4397 = vld [vmem:[#allocation4 + $0x122] sm:$0xff]
      %v4398 = vld [vmem:[#allocation4 + $0x12a] sm:$0xff]
      %v4399 = vld [vmem:[#allocation4 + $0x13a] sm:$0xff]
      %v4400 = vld [vmem:[#allocation4 + $0x142] sm:$0xff]
      %v4401 = vld [vmem:[#allocation4 + $0x152] sm:$0xff]
      %v4402 = vld [vmem:[#allocation4 + $0x15a] sm:$0xff]
      %v4403 = vld [vmem:[#allocation4 + $0x16a] sm:$0xff]
      %v4404 = vld [vmem:[#allocation4 + $0x172] sm:$0xff]
      %v4405 = vld [vmem:[%s4276] sm:$0xff]
      %v4406 = vld [vmem:[%s4276 + $0x8] sm:$0xff]
      %v4407 = vld [vmem:[%s4276 + $0x18] sm:$0xff]
      %v4408 = vld [vmem:[%s4276 + $0x20] sm:$0xff]
      %v4409 = vld [vmem:[%s4276 + $0x30] sm:$0xff]
      %v4410 = vld [vmem:[%s4276 + $0x38] sm:$0xff]
      %v4411 = vld [vmem:[%s4276 + $0x48] sm:$0xff]
      %v4412 = vld [vmem:[%s4276 + $0x50] sm:$0xff]
      %v4413 = vld [vmem:[%s4276 + $0x60] sm:$0xff]
      %v4414 = vld [vmem:[%s4276 + $0x68] sm:$0xff]
      %v4415 = vld [vmem:[%s4276 + $0x78] sm:$0xff]
      %v4416 = vld [vmem:[%s4276 + $0x80] sm:$0xff]
      %v4417 = vld [vmem:[%s4276 + $0x90] sm:$0xff]
      %v4418 = vld [vmem:[%s4276 + $0x98] sm:$0xff]
      %v4419 = vld [vmem:[%s4276 + $0xa8] sm:$0xff]
      %v4420 = vld [vmem:[%s4276 + $0xb0] sm:$0xff]
      %v4421 = vld [vmem:[%s4276 + $0xc0] sm:$0xff]
      %v4422 = vld [vmem:[%s4276 + $0xc8] sm:$0xff]
      %v4423 = vld [vmem:[%s4276 + $0xd8] sm:$0xff]
      %v4424 = vld [vmem:[%s4276 + $0xe0] sm:$0xff]
      %v4425 = vld [vmem:[%s4276 + $0xf0] sm:$0xff]
      %v4426 = vld [vmem:[%s4276 + $0xf8] sm:$0xff]
      %v4427 = vld [vmem:[%s4276 + $0x108] sm:$0xff]
      %v4428 = vld [vmem:[%s4276 + $0x110] sm:$0xff]
      %v4429 = vld [vmem:[%s4276 + $0x120] sm:$0xff]
      %v4430 = vld [vmem:[%s4276 + $0x128] sm:$0xff]
      %v4431 = vld [vmem:[%s4276 + $0x138] sm:$0xff]
      %v4432 = vld [vmem:[%s4276 + $0x140] sm:$0xff]
      %v4433 = vld [vmem:[%s4276 + $0x150] sm:$0xff]
      %v4434 = vld [vmem:[%s4276 + $0x158] sm:$0xff]
      %v4435 = vld [vmem:[%s4276 + $0x168] sm:$0xff]
      %v4436 = vld [vmem:[%s4276 + $0x170] sm:$0xff]
      %v4437 = vld [vmem:[%s4276 + $0x1] sm:$0xff]
      %v4438 = vld [vmem:[%s4276 + $0x9] sm:$0xff]
      %v4439 = vld [vmem:[%s4276 + $0x19] sm:$0xff]
      %v4440 = vld [vmem:[%s4276 + $0x21] sm:$0xff]
      %v4441 = vld [vmem:[%s4276 + $0x31] sm:$0xff]
      %v4442 = vld [vmem:[%s4276 + $0x39] sm:$0xff]
      %v4443 = vld [vmem:[%s4276 + $0x49] sm:$0xff]
      %v4444 = vld [vmem:[%s4276 + $0x51] sm:$0xff]
      %v4445 = vld [vmem:[%s4276 + $0x61] sm:$0xff]
      %v4446 = vld [vmem:[%s4276 + $0x69] sm:$0xff]
      %v4447 = vld [vmem:[%s4276 + $0x79] sm:$0xff]
      %v4448 = vld [vmem:[%s4276 + $0x81] sm:$0xff]
      %v4449 = vld [vmem:[%s4276 + $0x91] sm:$0xff]
      %v4450 = vld [vmem:[%s4276 + $0x99] sm:$0xff]
      %v4451 = vld [vmem:[%s4276 + $0xa9] sm:$0xff]
      %v4452 = vld [vmem:[%s4276 + $0xb1] sm:$0xff]
      %v4453 = vld [vmem:[%s4276 + $0xc1] sm:$0xff]
      %v4454 = vld [vmem:[%s4276 + $0xc9] sm:$0xff]
      %v4455 = vld [vmem:[%s4276 + $0xd9] sm:$0xff]
      %v4456 = vld [vmem:[%s4276 + $0xe1] sm:$0xff]
      %v4457 = vld [vmem:[%s4276 + $0xf1] sm:$0xff]
      %v4458 = vld [vmem:[%s4276 + $0xf9] sm:$0xff]
      %v4459 = vld [vmem:[%s4276 + $0x109] sm:$0xff]
      %v4460 = vld [vmem:[%s4276 + $0x111] sm:$0xff]
      %v4461 = vld [vmem:[%s4276 + $0x121] sm:$0xff]
      %v4462 = vld [vmem:[%s4276 + $0x129] sm:$0xff]
      %v4463 = vld [vmem:[%s4276 + $0x139] sm:$0xff]
      %v4464 = vld [vmem:[%s4276 + $0x141] sm:$0xff]
      %v4465 = vld [vmem:[%s4276 + $0x151] sm:$0xff]
      %v4466 = vld [vmem:[%s4276 + $0x159] sm:$0xff]
      %v4467 = vld [vmem:[%s4276 + $0x169] sm:$0xff]
      %v4468 = vld [vmem:[%s4276 + $0x171] sm:$0xff]
      %v4469 = vld [vmem:[%s4276 + $0x2] sm:$0xff]
      %v4470 = vld [vmem:[%s4276 + $0xa] sm:$0xff]
      %v4471 = vld [vmem:[%s4276 + $0x1a] sm:$0xff]
      %v4472 = vld [vmem:[%s4276 + $0x22] sm:$0xff]
      %v4473 = vld [vmem:[%s4276 + $0x32] sm:$0xff]
      %v4474 = vld [vmem:[%s4276 + $0x3a] sm:$0xff]
      %v4475 = vld [vmem:[%s4276 + $0x4a] sm:$0xff]
      %v4476 = vld [vmem:[%s4276 + $0x52] sm:$0xff]
      %v4477 = vld [vmem:[%s4276 + $0x62] sm:$0xff]
      %v4478 = vld [vmem:[%s4276 + $0x6a] sm:$0xff]
      %v4479 = vld [vmem:[%s4276 + $0x7a] sm:$0xff]
      %v4480 = vld [vmem:[%s4276 + $0x82] sm:$0xff]
      %v4481 = vld [vmem:[%s4276 + $0x92] sm:$0xff]
      %v4482 = vld [vmem:[%s4276 + $0x9a] sm:$0xff]
      %v4483 = vld [vmem:[%s4276 + $0xaa] sm:$0xff]
      %v4484 = vld [vmem:[%s4276 + $0xb2] sm:$0xff]
      %v4485 = vld [vmem:[%s4276 + $0xc2] sm:$0xff]
      %v4486 = vld [vmem:[%s4276 + $0xca] sm:$0xff]
      %v4487 = vld [vmem:[%s4276 + $0xda] sm:$0xff]
      %v4488 = vld [vmem:[%s4276 + $0xe2] sm:$0xff]
      %v4489 = vld [vmem:[%s4276 + $0xf2] sm:$0xff]
      %v4490 = vld [vmem:[%s4276 + $0xfa] sm:$0xff]
      %v4491 = vld [vmem:[%s4276 + $0x10a] sm:$0xff]
      %v4492 = vld [vmem:[%s4276 + $0x112] sm:$0xff]
      %v4493 = vld [vmem:[%s4276 + $0x122] sm:$0xff]
      %v4494 = vld [vmem:[%s4276 + $0x12a] sm:$0xff]
      %v4495 = vld [vmem:[%s4276 + $0x13a] sm:$0xff]
      %v4496 = vld [vmem:[%s4276 + $0x142] sm:$0xff]
      %v4497 = vld [vmem:[%s4276 + $0x152] sm:$0xff]
      %v4498 = vld [vmem:[%s4276 + $0x15a] sm:$0xff]
      %v4499 = vld [vmem:[%s4276 + $0x16a] sm:$0xff]
      %v4500 = vld [vmem:[%s4276 + $0x172] sm:$0xff]
      %s4501 = scalar_lea.vmem [#allocation4], 48
      %v4502 = vld [vmem:[%s4501] sm:$0xff]
      %v4503 = vld [vmem:[%s4501 + $0x8] sm:$0xff]
      %v4504 = vld [vmem:[%s4501 + $0x18] sm:$0xff]
      %v4505 = vld [vmem:[%s4501 + $0x20] sm:$0xff]
      %v4506 = vld [vmem:[%s4501 + $0x30] sm:$0xff]
      %v4507 = vld [vmem:[%s4501 + $0x38] sm:$0xff]
      %v4508 = vld [vmem:[%s4501 + $0x48] sm:$0xff]
      %v4509 = vld [vmem:[%s4501 + $0x50] sm:$0xff]
      %v4510 = vld [vmem:[%s4501 + $0x60] sm:$0xff]
      %v4511 = vld [vmem:[%s4501 + $0x68] sm:$0xff]
      %v4512 = vld [vmem:[%s4501 + $0x78] sm:$0xff]
      %v4513 = vld [vmem:[%s4501 + $0x80] sm:$0xff]
      %v4514 = vld [vmem:[%s4501 + $0x90] sm:$0xff]
      %v4515 = vld [vmem:[%s4501 + $0x98] sm:$0xff]
      %v4516 = vld [vmem:[%s4501 + $0xa8] sm:$0xff]
      %v4517 = vld [vmem:[%s4501 + $0xb0] sm:$0xff]
      %v4518 = vld [vmem:[%s4501 + $0xc0] sm:$0xff]
      %v4519 = vld [vmem:[%s4501 + $0xc8] sm:$0xff]
      %v4520 = vld [vmem:[%s4501 + $0xd8] sm:$0xff]
      %v4521 = vld [vmem:[%s4501 + $0xe0] sm:$0xff]
      %v4522 = vld [vmem:[%s4501 + $0xf0] sm:$0xff]
      %v4523 = vld [vmem:[%s4501 + $0xf8] sm:$0xff]
      %v4524 = vld [vmem:[%s4501 + $0x108] sm:$0xff]
      %v4525 = vld [vmem:[%s4501 + $0x110] sm:$0xff]
      %v4526 = vld [vmem:[%s4501 + $0x120] sm:$0xff]
      %v4527 = vld [vmem:[%s4501 + $0x128] sm:$0xff]
      %v4528 = vld [vmem:[%s4501 + $0x138] sm:$0xff]
      %v4529 = vld [vmem:[%s4501 + $0x140] sm:$0xff]
      %v4530 = vld [vmem:[%s4501 + $0x150] sm:$0xff]
      %v4531 = vld [vmem:[%s4501 + $0x158] sm:$0xff]
      %v4532 = vld [vmem:[%s4501 + $0x168] sm:$0xff]
      %v4533 = vld [vmem:[%s4501 + $0x170] sm:$0xff]
      %v4534 = vld [vmem:[%s4501 + $0x1] sm:$0xff]
      %v4535 = vld [vmem:[%s4501 + $0x9] sm:$0xff]
      %v4536 = vld [vmem:[%s4501 + $0x19] sm:$0xff]
      %v4537 = vld [vmem:[%s4501 + $0x21] sm:$0xff]
      %v4538 = vld [vmem:[%s4501 + $0x31] sm:$0xff]
      %v4539 = vld [vmem:[%s4501 + $0x39] sm:$0xff]
      %v4540 = vld [vmem:[%s4501 + $0x49] sm:$0xff]
      %v4541 = vld [vmem:[%s4501 + $0x51] sm:$0xff]
      %v4542 = vld [vmem:[%s4501 + $0x61] sm:$0xff]
      %v4543 = vld [vmem:[%s4501 + $0x69] sm:$0xff]
      %v4544 = vld [vmem:[%s4501 + $0x79] sm:$0xff]
      %v4545 = vld [vmem:[%s4501 + $0x81] sm:$0xff]
      %v4546 = vld [vmem:[%s4501 + $0x91] sm:$0xff]
      %v4547 = vld [vmem:[%s4501 + $0x99] sm:$0xff]
      %v4548 = vld [vmem:[%s4501 + $0xa9] sm:$0xff]
      %v4549 = vld [vmem:[%s4501 + $0xb1] sm:$0xff]
      %v4550 = vld [vmem:[%s4501 + $0xc1] sm:$0xff]
      %v4551 = vld [vmem:[%s4501 + $0xc9] sm:$0xff]
      %v4552 = vld [vmem:[%s4501 + $0xd9] sm:$0xff]
      %v4553 = vld [vmem:[%s4501 + $0xe1] sm:$0xff]
      %v4554 = vld [vmem:[%s4501 + $0xf1] sm:$0xff]
      %v4555 = vld [vmem:[%s4501 + $0xf9] sm:$0xff]
      %v4556 = vld [vmem:[%s4501 + $0x109] sm:$0xff]
      %v4557 = vld [vmem:[%s4501 + $0x111] sm:$0xff]
      %v4558 = vld [vmem:[%s4501 + $0x121] sm:$0xff]
      %v4559 = vld [vmem:[%s4501 + $0x129] sm:$0xff]
      %v4560 = vld [vmem:[%s4501 + $0x139] sm:$0xff]
      %v4561 = vld [vmem:[%s4501 + $0x141] sm:$0xff]
      %v4562 = vld [vmem:[%s4501 + $0x151] sm:$0xff]
      %v4563 = vld [vmem:[%s4501 + $0x159] sm:$0xff]
      %v4564 = vld [vmem:[%s4501 + $0x169] sm:$0xff]
      %v4565 = vld [vmem:[%s4501 + $0x171] sm:$0xff]
      %v4566 = vld [vmem:[%s4501 + $0x2] sm:$0xff]
      %v4567 = vld [vmem:[%s4501 + $0xa] sm:$0xff]
      %v4568 = vld [vmem:[%s4501 + $0x1a] sm:$0xff]
      %v4569 = vld [vmem:[%s4501 + $0x22] sm:$0xff]
      %v4570 = vld [vmem:[%s4501 + $0x32] sm:$0xff]
      %v4571 = vld [vmem:[%s4501 + $0x3a] sm:$0xff]
      %v4572 = vld [vmem:[%s4501 + $0x4a] sm:$0xff]
      %v4573 = vld [vmem:[%s4501 + $0x52] sm:$0xff]
      %v4574 = vld [vmem:[%s4501 + $0x62] sm:$0xff]
      %v4575 = vld [vmem:[%s4501 + $0x6a] sm:$0xff]
      %v4576 = vld [vmem:[%s4501 + $0x7a] sm:$0xff]
      %v4577 = vld [vmem:[%s4501 + $0x82] sm:$0xff]
      %v4578 = vld [vmem:[%s4501 + $0x92] sm:$0xff]
      %v4579 = vld [vmem:[%s4501 + $0x9a] sm:$0xff]
      %v4580 = vld [vmem:[%s4501 + $0xaa] sm:$0xff]
      %v4581 = vld [vmem:[%s4501 + $0xb2] sm:$0xff]
      %v4582 = vld [vmem:[%s4501 + $0xc2] sm:$0xff]
      %v4583 = vld [vmem:[%s4501 + $0xca] sm:$0xff]
      %v4584 = vld [vmem:[%s4501 + $0xda] sm:$0xff]
      %v4585 = vld [vmem:[%s4501 + $0xe2] sm:$0xff]
      %v4586 = vld [vmem:[%s4501 + $0xf2] sm:$0xff]
      %v4587 = vld [vmem:[%s4501 + $0xfa] sm:$0xff]
      %v4588 = vld [vmem:[%s4501 + $0x10a] sm:$0xff]
      %v4589 = vld [vmem:[%s4501 + $0x112] sm:$0xff]
      %v4590 = vld [vmem:[%s4501 + $0x122] sm:$0xff]
      %v4591 = vld [vmem:[%s4501 + $0x12a] sm:$0xff]
      %v4592 = vld [vmem:[%s4501 + $0x13a] sm:$0xff]
      %v4593 = vld [vmem:[%s4501 + $0x142] sm:$0xff]
      %v4594 = vld [vmem:[%s4501 + $0x152] sm:$0xff]
      %v4595 = vld [vmem:[%s4501 + $0x15a] sm:$0xff]
      %v4596 = vld [vmem:[%s4501 + $0x16a] sm:$0xff]
      %v4597 = vld [vmem:[%s4501 + $0x172] sm:$0xff]
      %4630 = vrot.lane.b32.xlu0 %v4341, 64
      %v4631 = vpop.permute.xlu0 %4630
      %4632 = vrot.lane.b32.xlu0 %v4342, 64
      %v4633 = vpop.permute.xlu0 %4632
      %4634 = vrot.lane.b32.xlu0 %v4343, 64
      %v4635 = vpop.permute.xlu0 %4634
      %4636 = vrot.lane.b32.xlu0 %v4344, 64
      %v4637 = vpop.permute.xlu0 %4636
      %4638 = vrot.lane.b32.xlu0 %v4345, 64
      %v4639 = vpop.permute.xlu0 %4638
      %4640 = vrot.lane.b32.xlu0 %v4346, 64
      %v4641 = vpop.permute.xlu0 %4640
      %4642 = vrot.lane.b32.xlu0 %v4347, 64
      %v4643 = vpop.permute.xlu0 %4642
      %4644 = vrot.lane.b32.xlu0 %v4348, 64
      %v4645 = vpop.permute.xlu0 %4644
      %4646 = vrot.lane.b32.xlu0 %v4349, 64
      %v4647 = vpop.permute.xlu0 %4646
      %4648 = vrot.lane.b32.xlu0 %v4350, 64
      %v4649 = vpop.permute.xlu0 %4648
      %4650 = vrot.lane.b32.xlu0 %v4351, 64
      %v4651 = vpop.permute.xlu0 %4650
      %4652 = vrot.lane.b32.xlu0 %v4352, 64
      %v4653 = vpop.permute.xlu0 %4652
      %4654 = vrot.lane.b32.xlu0 %v4353, 64
      %v4655 = vpop.permute.xlu0 %4654
      %4656 = vrot.lane.b32.xlu0 %v4354, 64
      %v4657 = vpop.permute.xlu0 %4656
      %4658 = vrot.lane.b32.xlu0 %v4355, 64
      %v4659 = vpop.permute.xlu0 %4658
      %4660 = vrot.lane.b32.xlu0 %v4356, 64
      %v4661 = vpop.permute.xlu0 %4660
      %4662 = vrot.lane.b32.xlu0 %v4357, 64
      %v4663 = vpop.permute.xlu0 %4662
      %4664 = vrot.lane.b32.xlu0 %v4358, 64
      %v4665 = vpop.permute.xlu0 %4664
      %4666 = vrot.lane.b32.xlu0 %v4359, 64
      %v4667 = vpop.permute.xlu0 %4666
      %4668 = vrot.lane.b32.xlu0 %v4360, 64
      %v4669 = vpop.permute.xlu0 %4668
      %4670 = vrot.lane.b32.xlu0 %v4361, 64
      %v4671 = vpop.permute.xlu0 %4670
      %4672 = vrot.lane.b32.xlu0 %v4362, 64
      %v4673 = vpop.permute.xlu0 %4672
      %4674 = vrot.lane.b32.xlu0 %v4363, 64
      %v4675 = vpop.permute.xlu0 %4674
      %4676 = vrot.lane.b32.xlu0 %v4364, 64
      %v4677 = vpop.permute.xlu0 %4676
      %4678 = vrot.lane.b32.xlu0 %v4365, 64
      %v4679 = vpop.permute.xlu0 %4678
      %4680 = vrot.lane.b32.xlu0 %v4366, 64
      %v4681 = vpop.permute.xlu0 %4680
      %4682 = vrot.lane.b32.xlu0 %v4367, 64
      %v4683 = vpop.permute.xlu0 %4682
      %4684 = vrot.lane.b32.xlu0 %v4368, 64
      %v4685 = vpop.permute.xlu0 %4684
      %4686 = vrot.lane.b32.xlu0 %v4369, 64
      %v4687 = vpop.permute.xlu0 %4686
      %4688 = vrot.lane.b32.xlu0 %v4370, 64
      %v4689 = vpop.permute.xlu0 %4688
      %4690 = vrot.lane.b32.xlu0 %v4371, 64
      %v4691 = vpop.permute.xlu0 %4690
      %4692 = vrot.lane.b32.xlu0 %v4372, 64
      %v4693 = vpop.permute.xlu0 %4692
      %4758 = vrot.lane.b32.xlu0 %v4405, 64
      %v4759 = vpop.permute.xlu0 %4758
      %4760 = vrot.lane.b32.xlu0 %v4406, 64
      %v4761 = vpop.permute.xlu0 %4760
      %4762 = vrot.lane.b32.xlu0 %v4407, 64
      %v4763 = vpop.permute.xlu0 %4762
      %4764 = vrot.lane.b32.xlu0 %v4408, 64
      %v4765 = vpop.permute.xlu0 %4764
      %4766 = vrot.lane.b32.xlu0 %v4409, 64
      %v4767 = vpop.permute.xlu0 %4766
      %4768 = vrot.lane.b32.xlu0 %v4410, 64
      %v4769 = vpop.permute.xlu0 %4768
      %4770 = vrot.lane.b32.xlu0 %v4411, 64
      %v4771 = vpop.permute.xlu0 %4770
      %4772 = vrot.lane.b32.xlu0 %v4412, 64
      %v4773 = vpop.permute.xlu0 %4772
      %4774 = vrot.lane.b32.xlu0 %v4413, 64
      %v4775 = vpop.permute.xlu0 %4774
      %4776 = vrot.lane.b32.xlu0 %v4414, 64
      %v4777 = vpop.permute.xlu0 %4776
      %4778 = vrot.lane.b32.xlu0 %v4415, 64
      %v4779 = vpop.permute.xlu0 %4778
      %4780 = vrot.lane.b32.xlu0 %v4416, 64
      %v4781 = vpop.permute.xlu0 %4780
      %4782 = vrot.lane.b32.xlu0 %v4417, 64
      %v4783 = vpop.permute.xlu0 %4782
      %4784 = vrot.lane.b32.xlu0 %v4418, 64
      %v4785 = vpop.permute.xlu0 %4784
      %4786 = vrot.lane.b32.xlu0 %v4419, 64
      %v4787 = vpop.permute.xlu0 %4786
      %4788 = vrot.lane.b32.xlu0 %v4420, 64
      %v4789 = vpop.permute.xlu0 %4788
      %4790 = vrot.lane.b32.xlu0 %v4421, 64
      %v4791 = vpop.permute.xlu0 %4790
      %4792 = vrot.lane.b32.xlu0 %v4422, 64
      %v4793 = vpop.permute.xlu0 %4792
      %4794 = vrot.lane.b32.xlu0 %v4423, 64
      %v4795 = vpop.permute.xlu0 %4794
      %4796 = vrot.lane.b32.xlu0 %v4424, 64
      %v4797 = vpop.permute.xlu0 %4796
      %4798 = vrot.lane.b32.xlu0 %v4425, 64
      %v4799 = vpop.permute.xlu0 %4798
      %4800 = vrot.lane.b32.xlu0 %v4426, 64
      %v4801 = vpop.permute.xlu0 %4800
      %4802 = vrot.lane.b32.xlu0 %v4427, 64
      %v4803 = vpop.permute.xlu0 %4802
      %4804 = vrot.lane.b32.xlu0 %v4428, 64
      %v4805 = vpop.permute.xlu0 %4804
      %4806 = vrot.lane.b32.xlu0 %v4429, 64
      %v4807 = vpop.permute.xlu0 %4806
      %4808 = vrot.lane.b32.xlu0 %v4430, 64
      %v4809 = vpop.permute.xlu0 %4808
      %4810 = vrot.lane.b32.xlu0 %v4431, 64
      %v4811 = vpop.permute.xlu0 %4810
      %4812 = vrot.lane.b32.xlu0 %v4432, 64
      %v4813 = vpop.permute.xlu0 %4812
      %4814 = vrot.lane.b32.xlu0 %v4433, 64
      %v4815 = vpop.permute.xlu0 %4814
      %4816 = vrot.lane.b32.xlu0 %v4434, 64
      %v4817 = vpop.permute.xlu0 %4816
      %4818 = vrot.lane.b32.xlu0 %v4435, 64
      %v4819 = vpop.permute.xlu0 %4818
      %4820 = vrot.lane.b32.xlu0 %v4436, 64
      %v4821 = vpop.permute.xlu0 %4820
      %4886 = vrot.lane.b32.xlu0 %v4469, 64
      %v4887 = vpop.permute.xlu0 %4886
      %4888 = vrot.lane.b32.xlu0 %v4470, 64
      %v4889 = vpop.permute.xlu0 %4888
      %4890 = vrot.lane.b32.xlu0 %v4471, 64
      %v4891 = vpop.permute.xlu0 %4890
      %4892 = vrot.lane.b32.xlu0 %v4472, 64
      %v4893 = vpop.permute.xlu0 %4892
      %4894 = vrot.lane.b32.xlu0 %v4473, 64
      %v4895 = vpop.permute.xlu0 %4894
      %4896 = vrot.lane.b32.xlu0 %v4474, 64
      %v4897 = vpop.permute.xlu0 %4896
      %4898 = vrot.lane.b32.xlu0 %v4475, 64
      %v4899 = vpop.permute.xlu0 %4898
      %4900 = vrot.lane.b32.xlu0 %v4476, 64
      %v4901 = vpop.permute.xlu0 %4900
      %4902 = vrot.lane.b32.xlu0 %v4477, 64
      %v4903 = vpop.permute.xlu0 %4902
      %4904 = vrot.lane.b32.xlu0 %v4478, 64
      %v4905 = vpop.permute.xlu0 %4904
      %4906 = vrot.lane.b32.xlu0 %v4479, 64
      %v4907 = vpop.permute.xlu0 %4906
      %4908 = vrot.lane.b32.xlu0 %v4480, 64
      %v4909 = vpop.permute.xlu0 %4908
      %4910 = vrot.lane.b32.xlu0 %v4481, 64
      %v4911 = vpop.permute.xlu0 %4910
      %4912 = vrot.lane.b32.xlu0 %v4482, 64
      %v4913 = vpop.permute.xlu0 %4912
      %4914 = vrot.lane.b32.xlu0 %v4483, 64
      %v4915 = vpop.permute.xlu0 %4914
      %4916 = vrot.lane.b32.xlu0 %v4484, 64
      %v4917 = vpop.permute.xlu0 %4916
      %4918 = vrot.lane.b32.xlu0 %v4485, 64
      %v4919 = vpop.permute.xlu0 %4918
      %4920 = vrot.lane.b32.xlu0 %v4486, 64
      %v4921 = vpop.permute.xlu0 %4920
      %4922 = vrot.lane.b32.xlu0 %v4487, 64
      %v4923 = vpop.permute.xlu0 %4922
      %4924 = vrot.lane.b32.xlu0 %v4488, 64
      %v4925 = vpop.permute.xlu0 %4924
      %4926 = vrot.lane.b32.xlu0 %v4489, 64
      %v4927 = vpop.permute.xlu0 %4926
      %4928 = vrot.lane.b32.xlu0 %v4490, 64
      %v4929 = vpop.permute.xlu0 %4928
      %4930 = vrot.lane.b32.xlu0 %v4491, 64
      %v4931 = vpop.permute.xlu0 %4930
      %4932 = vrot.lane.b32.xlu0 %v4492, 64
      %v4933 = vpop.permute.xlu0 %4932
      %4934 = vrot.lane.b32.xlu0 %v4493, 64
      %v4935 = vpop.permute.xlu0 %4934
      %4936 = vrot.lane.b32.xlu0 %v4494, 64
      %v4937 = vpop.permute.xlu0 %4936
      %4938 = vrot.lane.b32.xlu0 %v4495, 64
      %v4939 = vpop.permute.xlu0 %4938
      %4940 = vrot.lane.b32.xlu0 %v4496, 64
      %v4941 = vpop.permute.xlu0 %4940
      %4942 = vrot.lane.b32.xlu0 %v4497, 64
      %v4943 = vpop.permute.xlu0 %4942
      %4944 = vrot.lane.b32.xlu0 %v4498, 64
      %v4945 = vpop.permute.xlu0 %4944
      %4946 = vrot.lane.b32.xlu0 %v4499, 64
      %v4947 = vpop.permute.xlu0 %4946
      %4948 = vrot.lane.b32.xlu0 %v4500, 64
      %v4949 = vpop.permute.xlu0 %4948
      %5014 = vrot.lane.b32.xlu0 %v4534, 64
      %v5015 = vpop.permute.xlu0 %5014
      %5016 = vrot.lane.b32.xlu0 %v4535, 64
      %v5017 = vpop.permute.xlu0 %5016
      %5018 = vrot.lane.b32.xlu0 %v4536, 64
      %v5019 = vpop.permute.xlu0 %5018
      %5020 = vrot.lane.b32.xlu0 %v4537, 64
      %v5021 = vpop.permute.xlu0 %5020
      %5022 = vrot.lane.b32.xlu0 %v4538, 64
      %v5023 = vpop.permute.xlu0 %5022
      %5024 = vrot.lane.b32.xlu0 %v4539, 64
      %v5025 = vpop.permute.xlu0 %5024
      %5026 = vrot.lane.b32.xlu0 %v4540, 64
      %v5027 = vpop.permute.xlu0 %5026
      %5028 = vrot.lane.b32.xlu0 %v4541, 64
      %v5029 = vpop.permute.xlu0 %5028
      %5030 = vrot.lane.b32.xlu0 %v4542, 64
      %v5031 = vpop.permute.xlu0 %5030
      %5032 = vrot.lane.b32.xlu0 %v4543, 64
      %v5033 = vpop.permute.xlu0 %5032
      %5034 = vrot.lane.b32.xlu0 %v4544, 64
      %v5035 = vpop.permute.xlu0 %5034
      %5036 = vrot.lane.b32.xlu0 %v4545, 64
      %v5037 = vpop.permute.xlu0 %5036
      %5038 = vrot.lane.b32.xlu0 %v4546, 64
      %v5039 = vpop.permute.xlu0 %5038
      %5040 = vrot.lane.b32.xlu0 %v4547, 64
      %v5041 = vpop.permute.xlu0 %5040
      %5042 = vrot.lane.b32.xlu0 %v4548, 64
      %v5043 = vpop.permute.xlu0 %5042
      %5044 = vrot.lane.b32.xlu0 %v4549, 64
      %v5045 = vpop.permute.xlu0 %5044
      %5046 = vrot.lane.b32.xlu0 %v4550, 64
      %v5047 = vpop.permute.xlu0 %5046
      %5048 = vrot.lane.b32.xlu0 %v4551, 64
      %v5049 = vpop.permute.xlu0 %5048
      %5050 = vrot.lane.b32.xlu0 %v4552, 64
      %v5051 = vpop.permute.xlu0 %5050
      %5052 = vrot.lane.b32.xlu0 %v4553, 64
      %v5053 = vpop.permute.xlu0 %5052
      %5054 = vrot.lane.b32.xlu0 %v4554, 64
      %v5055 = vpop.permute.xlu0 %5054
      %5056 = vrot.lane.b32.xlu0 %v4555, 64
      %v5057 = vpop.permute.xlu0 %5056
      %5058 = vrot.lane.b32.xlu0 %v4556, 64
      %v5059 = vpop.permute.xlu0 %5058
      %5060 = vrot.lane.b32.xlu0 %v4557, 64
      %v5061 = vpop.permute.xlu0 %5060
      %5062 = vrot.lane.b32.xlu0 %v4558, 64
      %v5063 = vpop.permute.xlu0 %5062
      %5064 = vrot.lane.b32.xlu0 %v4559, 64
      %v5065 = vpop.permute.xlu0 %5064
      %5066 = vrot.lane.b32.xlu0 %v4560, 64
      %v5067 = vpop.permute.xlu0 %5066
      %5068 = vrot.lane.b32.xlu0 %v4561, 64
      %v5069 = vpop.permute.xlu0 %5068
      %5070 = vrot.lane.b32.xlu0 %v4562, 64
      %v5071 = vpop.permute.xlu0 %5070
      %5072 = vrot.lane.b32.xlu0 %v4563, 64
      %v5073 = vpop.permute.xlu0 %5072
      %5074 = vrot.lane.b32.xlu0 %v4564, 64
      %v5075 = vpop.permute.xlu0 %5074
      %5076 = vrot.lane.b32.xlu0 %v4565, 64
      %v5077 = vpop.permute.xlu0 %5076
      %v5110 = vsel %vm336, %v4309, %v4631
      %v5111 = vsel %vm336, %v4310, %v4633
      %v5112 = vsel %vm336, %v4311, %v4635
      %v5113 = vsel %vm336, %v4312, %v4637
      %v5114 = vsel %vm336, %v4313, %v4639
      %v5115 = vsel %vm336, %v4314, %v4641
      %v5116 = vsel %vm336, %v4315, %v4643
      %v5117 = vsel %vm336, %v4316, %v4645
      %v5118 = vsel %vm336, %v4317, %v4647
      %v5119 = vsel %vm336, %v4318, %v4649
      %v5120 = vsel %vm336, %v4319, %v4651
      %v5121 = vsel %vm336, %v4320, %v4653
      %v5122 = vsel %vm336, %v4321, %v4655
      %v5123 = vsel %vm336, %v4322, %v4657
      %v5124 = vsel %vm336, %v4323, %v4659
      %v5125 = vsel %vm336, %v4324, %v4661
      %v5126 = vsel %vm336, %v4325, %v4663
      %v5127 = vsel %vm336, %v4326, %v4665
      %v5128 = vsel %vm336, %v4327, %v4667
      %v5129 = vsel %vm336, %v4328, %v4669
      %v5130 = vsel %vm336, %v4329, %v4671
      %v5131 = vsel %vm336, %v4330, %v4673
      %v5132 = vsel %vm336, %v4331, %v4675
      %v5133 = vsel %vm336, %v4332, %v4677
      %v5134 = vsel %vm336, %v4333, %v4679
      %v5135 = vsel %vm336, %v4334, %v4681
      %v5136 = vsel %vm336, %v4335, %v4683
      %v5137 = vsel %vm336, %v4336, %v4685
      %v5138 = vsel %vm336, %v4337, %v4687
      %v5139 = vsel %vm336, %v4338, %v4689
      %v5140 = vsel %vm336, %v4339, %v4691
      %v5141 = vsel %vm336, %v4340, %v4693
      %v5142 = vsel %vm336, %v4373, %v4759
      %v5143 = vsel %vm336, %v4374, %v4761
      %v5144 = vsel %vm336, %v4375, %v4763
      %v5145 = vsel %vm336, %v4376, %v4765
      %v5146 = vsel %vm336, %v4377, %v4767
      %v5147 = vsel %vm336, %v4378, %v4769
      %v5148 = vsel %vm336, %v4379, %v4771
      %v5149 = vsel %vm336, %v4380, %v4773
      %v5150 = vsel %vm336, %v4381, %v4775
      %v5151 = vsel %vm336, %v4382, %v4777
      %v5152 = vsel %vm336, %v4383, %v4779
      %v5153 = vsel %vm336, %v4384, %v4781
      %v5154 = vsel %vm336, %v4385, %v4783
      %v5155 = vsel %vm336, %v4386, %v4785
      %v5156 = vsel %vm336, %v4387, %v4787
      %v5157 = vsel %vm336, %v4388, %v4789
      %v5158 = vsel %vm336, %v4389, %v4791
      %v5159 = vsel %vm336, %v4390, %v4793
      %v5160 = vsel %vm336, %v4391, %v4795
      %v5161 = vsel %vm336, %v4392, %v4797
      %v5162 = vsel %vm336, %v4393, %v4799
      %v5163 = vsel %vm336, %v4394, %v4801
      %v5164 = vsel %vm336, %v4395, %v4803
      %v5165 = vsel %vm336, %v4396, %v4805
      %v5166 = vsel %vm336, %v4397, %v4807
      %v5167 = vsel %vm336, %v4398, %v4809
      %v5168 = vsel %vm336, %v4399, %v4811
      %v5169 = vsel %vm336, %v4400, %v4813
      %v5170 = vsel %vm336, %v4401, %v4815
      %v5171 = vsel %vm336, %v4402, %v4817
      %v5172 = vsel %vm336, %v4403, %v4819
      %v5173 = vsel %vm336, %v4404, %v4821
      %v5174 = vsel %vm336, %v4437, %v4887
      %v5175 = vsel %vm336, %v4438, %v4889
      %v5176 = vsel %vm336, %v4439, %v4891
      %v5177 = vsel %vm336, %v4440, %v4893
      %v5178 = vsel %vm336, %v4441, %v4895
      %v5179 = vsel %vm336, %v4442, %v4897
      %v5180 = vsel %vm336, %v4443, %v4899
      %v5181 = vsel %vm336, %v4444, %v4901
      %v5182 = vsel %vm336, %v4445, %v4903
      %v5183 = vsel %vm336, %v4446, %v4905
      %v5184 = vsel %vm336, %v4447, %v4907
      %v5185 = vsel %vm336, %v4448, %v4909
      %v5186 = vsel %vm336, %v4449, %v4911
      %v5187 = vsel %vm336, %v4450, %v4913
      %v5188 = vsel %vm336, %v4451, %v4915
      %v5189 = vsel %vm336, %v4452, %v4917
      %v5190 = vsel %vm336, %v4453, %v4919
      %v5191 = vsel %vm336, %v4454, %v4921
      %v5192 = vsel %vm336, %v4455, %v4923
      %v5193 = vsel %vm336, %v4456, %v4925
      %v5194 = vsel %vm336, %v4457, %v4927
      %v5195 = vsel %vm336, %v4458, %v4929
      %v5196 = vsel %vm336, %v4459, %v4931
      %v5197 = vsel %vm336, %v4460, %v4933
      %v5198 = vsel %vm336, %v4461, %v4935
      %v5199 = vsel %vm336, %v4462, %v4937
      %v5200 = vsel %vm336, %v4463, %v4939
      %v5201 = vsel %vm336, %v4464, %v4941
      %v5202 = vsel %vm336, %v4465, %v4943
      %v5203 = vsel %vm336, %v4466, %v4945
      %v5204 = vsel %vm336, %v4467, %v4947
      %v5205 = vsel %vm336, %v4468, %v4949
      %v5206 = vsel %vm336, %v4502, %v5015
      %v5207 = vsel %vm336, %v4503, %v5017
      %v5208 = vsel %vm336, %v4504, %v5019
      %v5209 = vsel %vm336, %v4505, %v5021
      %v5210 = vsel %vm336, %v4506, %v5023
      %v5211 = vsel %vm336, %v4507, %v5025
      %v5212 = vsel %vm336, %v4508, %v5027
      %v5213 = vsel %vm336, %v4509, %v5029
      %v5214 = vsel %vm336, %v4510, %v5031
      %v5215 = vsel %vm336, %v4511, %v5033
      %v5216 = vsel %vm336, %v4512, %v5035
      %v5217 = vsel %vm336, %v4513, %v5037
      %v5218 = vsel %vm336, %v4514, %v5039
      %v5219 = vsel %vm336, %v4515, %v5041
      %v5220 = vsel %vm336, %v4516, %v5043
      %v5221 = vsel %vm336, %v4517, %v5045
      %v5222 = vsel %vm336, %v4518, %v5047
      %v5223 = vsel %vm336, %v4519, %v5049
      %v5224 = vsel %vm336, %v4520, %v5051
      %v5225 = vsel %vm336, %v4521, %v5053
      %v5226 = vsel %vm336, %v4522, %v5055
      %v5227 = vsel %vm336, %v4523, %v5057
      %v5228 = vsel %vm336, %v4524, %v5059
      %v5229 = vsel %vm336, %v4525, %v5061
      %v5230 = vsel %vm336, %v4526, %v5063
      %v5231 = vsel %vm336, %v4527, %v5065
      %v5232 = vsel %vm336, %v4528, %v5067
      %v5233 = vsel %vm336, %v4529, %v5069
      %v5234 = vsel %vm336, %v4530, %v5071
      %v5235 = vsel %vm336, %v4531, %v5073
      %v5236 = vsel %vm336, %v4532, %v5075
      %v5237 = vsel %vm336, %v4533, %v5077
      %v5238 = vpack.c.bf16 %v5111, %v5110
      %v5239 = vpack.c.bf16 %v5143, %v5142
      %v5240 = vpack.c.bf16 %v5175, %v5174
      %v5241 = vpack.c.bf16 %v5207, %v5206
      %v5242 = vpack.c.bf16 %v4567, %v4566
      %v5243 = vpack.c.bf16 %v5113, %v5112
      %v5244 = vpack.c.bf16 %v5145, %v5144
      %v5245 = vpack.c.bf16 %v5177, %v5176
      %v5246 = vpack.c.bf16 %v5209, %v5208
      %v5247 = vpack.c.bf16 %v4569, %v4568
      %v5248 = vpack.c.bf16 %v5115, %v5114
      %v5249 = vpack.c.bf16 %v5147, %v5146
      %v5250 = vpack.c.bf16 %v5179, %v5178
      %v5251 = vpack.c.bf16 %v5211, %v5210
      %v5252 = vpack.c.bf16 %v4571, %v4570
      %v5253 = vpack.c.bf16 %v5117, %v5116
      %v5254 = vpack.c.bf16 %v5149, %v5148
      %v5255 = vpack.c.bf16 %v5181, %v5180
      %v5256 = vpack.c.bf16 %v5213, %v5212
      %v5257 = vpack.c.bf16 %v4573, %v4572
      %v5258 = vpack.c.bf16 %v5119, %v5118
      %v5259 = vpack.c.bf16 %v5151, %v5150
      %v5260 = vpack.c.bf16 %v5183, %v5182
      %v5261 = vpack.c.bf16 %v5215, %v5214
      %v5262 = vpack.c.bf16 %v4575, %v4574
      %v5263 = vpack.c.bf16 %v5121, %v5120
      %v5264 = vpack.c.bf16 %v5153, %v5152
      %v5265 = vpack.c.bf16 %v5185, %v5184
      %v5266 = vpack.c.bf16 %v5217, %v5216
      %v5267 = vpack.c.bf16 %v4577, %v4576
      %v5268 = vpack.c.bf16 %v5123, %v5122
      %v5269 = vpack.c.bf16 %v5155, %v5154
      %v5270 = vpack.c.bf16 %v5187, %v5186
      %v5271 = vpack.c.bf16 %v5219, %v5218
      %v5272 = vpack.c.bf16 %v4579, %v4578
      %v5273 = vpack.c.bf16 %v5125, %v5124
      %v5274 = vpack.c.bf16 %v5157, %v5156
      %v5275 = vpack.c.bf16 %v5189, %v5188
      %v5276 = vpack.c.bf16 %v5221, %v5220
      %v5277 = vpack.c.bf16 %v4581, %v4580
      %v5278 = vpack.c.bf16 %v5127, %v5126
      %v5279 = vpack.c.bf16 %v5159, %v5158
      %v5280 = vpack.c.bf16 %v5191, %v5190
      %v5281 = vpack.c.bf16 %v5223, %v5222
      %v5282 = vpack.c.bf16 %v4583, %v4582
      %v5283 = vpack.c.bf16 %v5129, %v5128
      %v5284 = vpack.c.bf16 %v5161, %v5160
      %v5285 = vpack.c.bf16 %v5193, %v5192
      %v5286 = vpack.c.bf16 %v5225, %v5224
      %v5287 = vpack.c.bf16 %v4585, %v4584
      %v5288 = vpack.c.bf16 %v5131, %v5130
      %v5289 = vpack.c.bf16 %v5163, %v5162
      %v5290 = vpack.c.bf16 %v5195, %v5194
      %v5291 = vpack.c.bf16 %v5227, %v5226
      %v5292 = vpack.c.bf16 %v4587, %v4586
      %v5293 = vpack.c.bf16 %v5133, %v5132
      %v5294 = vpack.c.bf16 %v5165, %v5164
      %v5295 = vpack.c.bf16 %v5197, %v5196
      %v5296 = vpack.c.bf16 %v5229, %v5228
      %v5297 = vpack.c.bf16 %v4589, %v4588
      %v5298 = vpack.c.bf16 %v5135, %v5134
      %v5299 = vpack.c.bf16 %v5167, %v5166
      %v5300 = vpack.c.bf16 %v5199, %v5198
      %v5301 = vpack.c.bf16 %v5231, %v5230
      %v5302 = vpack.c.bf16 %v4591, %v4590
      %v5303 = vpack.c.bf16 %v5137, %v5136
      %v5304 = vpack.c.bf16 %v5169, %v5168
      %v5305 = vpack.c.bf16 %v5201, %v5200
      %v5306 = vpack.c.bf16 %v5233, %v5232
      %v5307 = vpack.c.bf16 %v4593, %v4592
      %v5308 = vpack.c.bf16 %v5139, %v5138
      %v5309 = vpack.c.bf16 %v5171, %v5170
      %v5310 = vpack.c.bf16 %v5203, %v5202
      %v5311 = vpack.c.bf16 %v5235, %v5234
      %v5312 = vpack.c.bf16 %v4595, %v4594
      %v5313 = vpack.c.bf16 %v5141, %v5140
      %v5314 = vpack.c.bf16 %v5173, %v5172
      %v5315 = vpack.c.bf16 %v5205, %v5204
      %v5316 = vpack.c.bf16 %v5237, %v5236
      %v5317 = vpack.c.bf16 %v4597, %v4596
      %v5318 = vld [vmem:[%s5] sm:$0xf]
      %v5319 = vld [vmem:[%s5 + $0x4] sm:$0xf]
      %v5320 = vld [vmem:[%s5 + $0x8] sm:$0xf]
      %v5321 = vld [vmem:[%s5 + $0xc] sm:$0xf]
      %v5322 = vld [vmem:[%s5 + $0x10] sm:$0xf]
      %v5323 = vld [vmem:[%s5 + $0x14] sm:$0xf]
      %v5324 = vld [vmem:[%s5 + $0x18] sm:$0xf]
      %v5325 = vld [vmem:[%s5 + $0x1c] sm:$0xf]
      %v5326 = vld [vmem:[%s5 + $0x20] sm:$0xf]
      %v5327 = vld [vmem:[%s5 + $0x24] sm:$0xf]
      %v5328 = vld [vmem:[%s5 + $0x28] sm:$0xf]
      %v5329 = vld [vmem:[%s5 + $0x2c] sm:$0xf]
      %v5330 = vld [vmem:[%s5 + $0x30] sm:$0xf]
      %v5331 = vld [vmem:[%s5 + $0x34] sm:$0xf]
      %v5332 = vld [vmem:[%s5 + $0x38] sm:$0xf]
      %v5333 = vld [vmem:[%s5 + $0x3c] sm:$0xf]
      %v5334 = vld [vmem:[%s5 + $0x40] sm:$0xf]
      %v5335 = vld [vmem:[%s5 + $0x44] sm:$0xf]
      %v5336 = vld [vmem:[%s5 + $0x48] sm:$0xf]
      %v5337 = vld [vmem:[%s5 + $0x4c] sm:$0xf]
      %v5338 = vld [vmem:[%s5 + $0x50] sm:$0xf]
      %v5339 = vld [vmem:[%s5 + $0x54] sm:$0xf]
      %v5340 = vld [vmem:[%s5 + $0x58] sm:$0xf]
      %v5341 = vld [vmem:[%s5 + $0x5c] sm:$0xf]
      %v5342 = vld [vmem:[%s5 + $0x60] sm:$0xf]
      %v5343 = vld [vmem:[%s5 + $0x64] sm:$0xf]
      %v5344 = vld [vmem:[%s5 + $0x68] sm:$0xf]
      %v5345 = vld [vmem:[%s5 + $0x6c] sm:$0xf]
      %v5346 = vld [vmem:[%s5 + $0x70] sm:$0xf]
      %v5347 = vld [vmem:[%s5 + $0x74] sm:$0xf]
      %v5348 = vld [vmem:[%s5 + $0x78] sm:$0xf]
      %v5349 = vld [vmem:[%s5 + $0x7c] sm:$0xf]
      %v5350 = vld [vmem:[%s5 + $0x80] sm:$0xf]
      %v5351 = vld [vmem:[%s5 + $0x84] sm:$0xf]
      %v5352 = vld [vmem:[%s5 + $0x88] sm:$0xf]
      %v5353 = vld [vmem:[%s5 + $0x8c] sm:$0xf]
      %v5354 = vld [vmem:[%s5 + $0x90] sm:$0xf]
      %v5355 = vld [vmem:[%s5 + $0x94] sm:$0xf]
      %v5356 = vld [vmem:[%s5 + $0x98] sm:$0xf]
      %v5357 = vld [vmem:[%s5 + $0x9c] sm:$0xf]
      %v5358 = vld [vmem:[%s5 + $0xa0] sm:$0xf]
      %v5359 = vld [vmem:[%s5 + $0xa4] sm:$0xf]
      %v5360 = vld [vmem:[%s5 + $0xa8] sm:$0xf]
      %v5361 = vld [vmem:[%s5 + $0xac] sm:$0xf]
      %v5362 = vld [vmem:[%s5 + $0xb0] sm:$0xf]
      %v5363 = vld [vmem:[%s5 + $0xb4] sm:$0xf]
      %v5364 = vld [vmem:[%s5 + $0xb8] sm:$0xf]
      %v5365 = vld [vmem:[%s5 + $0xbc] sm:$0xf]
      %v5366 = vld [vmem:[%s5 + $0xc0] sm:$0xf]
      %v5367 = vld [vmem:[%s5 + $0xc4] sm:$0xf]
      %v5368 = vld [vmem:[%s5 + $0xc8] sm:$0xf]
      %v5369 = vld [vmem:[%s5 + $0xcc] sm:$0xf]
      %v5370 = vld [vmem:[%s5 + $0xd0] sm:$0xf]
      %v5371 = vld [vmem:[%s5 + $0xd4] sm:$0xf]
      %v5372 = vld [vmem:[%s5 + $0xd8] sm:$0xf]
      %v5373 = vld [vmem:[%s5 + $0xdc] sm:$0xf]
      %v5374 = vld [vmem:[%s5 + $0xe0] sm:$0xf]
      %v5375 = vld [vmem:[%s5 + $0xe4] sm:$0xf]
      %v5376 = vld [vmem:[%s5 + $0xe8] sm:$0xf]
      %v5377 = vld [vmem:[%s5 + $0xec] sm:$0xf]
      %v5378 = vld [vmem:[%s5 + $0xf0] sm:$0xf]
      %v5379 = vld [vmem:[%s5 + $0xf4] sm:$0xf]
      %v5380 = vld [vmem:[%s5 + $0xf8] sm:$0xf]
      %v5381 = vld [vmem:[%s5 + $0xfc] sm:$0xf]
      %v5382 = vld [vmem:[%s5 + $0x100] sm:$0xf]
      %v5383 = vld [vmem:[%s5 + $0x104] sm:$0xf]
      %v5384 = vld [vmem:[%s5 + $0x108] sm:$0xf]
      %v5385 = vld [vmem:[%s5 + $0x10c] sm:$0xf]
      %v5386 = vld [vmem:[%s5 + $0x110] sm:$0xf]
      %v5387 = vld [vmem:[%s5 + $0x114] sm:$0xf]
      %v5388 = vld [vmem:[%s5 + $0x118] sm:$0xf]
      %v5389 = vld [vmem:[%s5 + $0x11c] sm:$0xf]
      %v5390 = vld [vmem:[%s6] sm:$0x1]
      %v5392 = vlaneseq
      %v5393 = vshrl.u32 %v5392, 7
      %v5394 = vsub.s32 0, %v5393
      %v5395 = vrot.slane %v5390, %v5394
      %v5469 = vunpack.c.l.b16 %v5318
      %v5470 = vunpack.c.l.b16 %v5319
      %v5471 = vunpack.c.l.b16 %v5320
      %v5472 = vunpack.c.l.b16 %v5321
      %v5473 = vunpack.c.l.b16 %v5322
      %v5474 = vunpack.c.l.b16 %v5323
      %v5475 = vunpack.c.l.b16 %v5324
      %v5476 = vunpack.c.l.b16 %v5325
      %v5477 = vunpack.c.l.b16 %v5326
      %v5478 = vunpack.c.l.b16 %v5327
      %v5479 = vunpack.c.l.b16 %v5328
      %v5480 = vunpack.c.l.b16 %v5329
      %v5481 = vunpack.c.l.b16 %v5330
      %v5482 = vunpack.c.l.b16 %v5331
      %v5483 = vunpack.c.l.b16 %v5332
      %v5484 = vunpack.c.l.b16 %v5333
      %v5485 = vunpack.c.l.b16 %v5334
      %v5486 = vunpack.c.l.b16 %v5335
      %v5487 = vunpack.c.l.b16 %v5336
      %v5488 = vunpack.c.l.b16 %v5337
      %v5489 = vunpack.c.l.b16 %v5338
      %v5490 = vunpack.c.l.b16 %v5339
      %v5491 = vunpack.c.l.b16 %v5340
      %v5492 = vunpack.c.l.b16 %v5341
      %v5493 = vunpack.c.l.b16 %v5342
      %v5494 = vunpack.c.l.b16 %v5343
      %v5495 = vunpack.c.l.b16 %v5344
      %v5496 = vunpack.c.l.b16 %v5345
      %v5497 = vunpack.c.l.b16 %v5346
      %v5498 = vunpack.c.l.b16 %v5347
      %v5499 = vunpack.c.l.b16 %v5348
      %v5500 = vunpack.c.l.b16 %v5349
      %v5501 = vunpack.c.l.b16 %v5350
      %v5502 = vunpack.c.l.b16 %v5351
      %v5503 = vunpack.c.l.b16 %v5352
      %v5504 = vunpack.c.l.b16 %v5353
      %v5505 = vunpack.c.l.b16 %v5354
      %v5506 = vunpack.c.l.b16 %v5355
      %v5507 = vunpack.c.l.b16 %v5356
      %v5508 = vunpack.c.l.b16 %v5357
      %v5509 = vunpack.c.l.b16 %v5358
      %v5510 = vunpack.c.l.b16 %v5359
      %v5511 = vunpack.c.l.b16 %v5360
      %v5512 = vunpack.c.l.b16 %v5361
      %v5513 = vunpack.c.l.b16 %v5362
      %v5514 = vunpack.c.l.b16 %v5363
      %v5515 = vunpack.c.l.b16 %v5364
      %v5516 = vunpack.c.l.b16 %v5365
      %v5517 = vunpack.c.l.b16 %v5366
      %v5518 = vunpack.c.l.b16 %v5367
      %v5519 = vunpack.c.l.b16 %v5368
      %v5520 = vunpack.c.l.b16 %v5369
      %v5521 = vunpack.c.l.b16 %v5370
      %v5522 = vunpack.c.l.b16 %v5371
      %v5523 = vunpack.c.l.b16 %v5372
      %v5524 = vunpack.c.l.b16 %v5373
      %v5525 = vunpack.c.l.b16 %v5374
      %v5526 = vunpack.c.l.b16 %v5375
      %v5527 = vunpack.c.l.b16 %v5376
      %v5528 = vunpack.c.l.b16 %v5377
      %v5529 = vunpack.c.l.b16 %v5378
      %v5530 = vunpack.c.l.b16 %v5379
      %v5531 = vunpack.c.l.b16 %v5380
      %v5532 = vunpack.c.l.b16 %v5381
      %v5533 = vunpack.c.l.b16 %v5382
      %v5534 = vunpack.c.l.b16 %v5383
      %v5535 = vunpack.c.l.b16 %v5384
      %v5536 = vunpack.c.l.b16 %v5385
      %v5537 = vunpack.c.l.b16 %v5386
      %v5538 = vunpack.c.l.b16 %v5387
      %v5539 = vunpack.c.l.b16 %v5388
      %v5540 = vunpack.c.l.b16 %v5389
      %v5541 = vpack.c.b16 %v5470, %v5469
      %v5542 = vpack.c.b16 %v5472, %v5471
      %v5543 = vpack.c.b16 %v5474, %v5473
      %v5544 = vpack.c.b16 %v5476, %v5475
      %v5545 = vpack.c.b16 %v5478, %v5477
      %v5546 = vpack.c.b16 %v5480, %v5479
      %v5547 = vpack.c.b16 %v5482, %v5481
      %v5548 = vpack.c.b16 %v5484, %v5483
      %v5549 = vpack.c.b16 %v5486, %v5485
      %v5550 = vpack.c.b16 %v5488, %v5487
      %v5551 = vpack.c.b16 %v5490, %v5489
      %v5552 = vpack.c.b16 %v5492, %v5491
      %v5553 = vpack.c.b16 %v5494, %v5493
      %v5554 = vpack.c.b16 %v5496, %v5495
      %v5555 = vpack.c.b16 %v5498, %v5497
      %v5556 = vpack.c.b16 %v5500, %v5499
      %v5557 = vpack.c.b16 %v5502, %v5501
      %v5558 = vpack.c.b16 %v5504, %v5503
      %v5559 = vpack.c.b16 %v5506, %v5505
      %v5560 = vpack.c.b16 %v5508, %v5507
      %v5561 = vpack.c.b16 %v5510, %v5509
      %v5562 = vpack.c.b16 %v5512, %v5511
      %v5563 = vpack.c.b16 %v5514, %v5513
      %v5564 = vpack.c.b16 %v5516, %v5515
      %v5565 = vpack.c.b16 %v5518, %v5517
      %v5566 = vpack.c.b16 %v5520, %v5519
      %v5567 = vpack.c.b16 %v5522, %v5521
      %v5568 = vpack.c.b16 %v5524, %v5523
      %v5569 = vpack.c.b16 %v5526, %v5525
      %v5570 = vpack.c.b16 %v5528, %v5527
      %v5571 = vpack.c.b16 %v5530, %v5529
      %v5572 = vpack.c.b16 %v5532, %v5531
      %v5573 = vpack.c.b16 %v5534, %v5533
      %v5574 = vpack.c.b16 %v5536, %v5535
      %v5575 = vpack.c.b16 %v5538, %v5537
      %v5576 = vpack.c.b16 %v5540, %v5539
      %v5614 = vsel %vm336, %v5242, 0
      %v5617 = vsel %vm336, %v5247, 0
      %v5620 = vsel %vm336, %v5252, 0
      %v5623 = vsel %vm336, %v5257, 0
      %v5626 = vsel %vm336, %v5262, 0
      %v5629 = vsel %vm336, %v5267, 0
      %v5632 = vsel %vm336, %v5272, 0
      %v5635 = vsel %vm336, %v5277, 0
      %v5638 = vsel %vm336, %v5282, 0
      %v5641 = vsel %vm336, %v5287, 0
      %v5644 = vsel %vm336, %v5292, 0
      %v5647 = vsel %vm336, %v5297, 0
      %v5650 = vsel %vm336, %v5302, 0
      %v5653 = vsel %vm336, %v5307, 0
      %v5656 = vsel %vm336, %v5312, 0
      %v5659 = vsel %vm336, %v5317, 0
      %5661 = vmatprep.subr.bf16.mxu0 0
      %5662 = vmatpush1.bf16.msra.mxu0 %v5541
      %5663 = vmatprep.subr.bf16.mxu0 0
      %5664 = vmatpush1.bf16.msra.mxu0 %v5542
      %5665 = vmatprep.subr.bf16.mxu0 0
      %5666 = vmatpush1.bf16.msra.mxu0 %v5543
      %5667 = vmatprep.subr.bf16.mxu0 0
      %5668 = vmatpush1.bf16.msra.mxu0 %v5544
      %5669 = vmatprep.subr.bf16.mxu0 0
      %5670 = vmatpush1.bf16.msra.mxu0 %v5545
      %5671 = vmatprep.subr.bf16.mxu0 0
      %5672 = vmatpush1.bf16.msra.mxu0 %v5546
      %5673 = vmatprep.subr.bf16.mxu0 0
      %5674 = vmatpush1.bf16.msra.mxu0 %v5547
      %5675 = vmatprep.subr.bf16.mxu0 0
      %5676 = vmatpush1.bf16.msra.mxu0 %v5548
      %5677 = vmatprep.subr.bf16.mxu0 0
      %5678 = vmatpush1.bf16.msra.mxu0 %v5549
      %5679 = vmatprep.subr.bf16.mxu0 0
      %5680 = vmatpush1.bf16.msra.mxu0 %v5550
      %5681 = vmatprep.subr.bf16.mxu0 0
      %5682 = vmatpush1.bf16.msra.mxu0 %v5551
      %5683 = vmatprep.subr.bf16.mxu0 0
      %5684 = vmatpush1.bf16.msra.mxu0 %v5552
      %5685 = vmatprep.subr.bf16.mxu0 0
      %5686 = vmatpush1.bf16.msra.mxu0 %v5553
      %5687 = vmatprep.subr.bf16.mxu0 0
      %5688 = vmatpush1.bf16.msra.mxu0 %v5554
      %5689 = vmatprep.subr.bf16.mxu0 0
      %5690 = vmatpush1.bf16.msra.mxu0 %v5555
      %5691 = vmatprep.subr.bf16.mxu0 0
      %5692 = vmatpush1.bf16.msra.mxu0 %v5556
      %5693 = vmatprep.mubr.bf16.mxu0 %v5239
      %5694 = vmatmul.mubr.bf16.gmra.mrb[0].mxu0 %v5238
      %v5695 = vpop.f32.mrb[0].mxu0
      %v5696 = vadd.f32 %v5395, %v5695
      %v5697 = vpop.f32.mrb[0].mxu0
      %v5698 = vpop.f32.mrb[0].mxu0
      %v5699 = vadd.f32 %v5395, %v5698
      %v5700 = vpop.f32.mrb[0].mxu0
      %5701 = vmatprep.mubr.bf16.mxu0 %v5244
      %5702 = vmatmul.mubr.bf16.gmra.mrb[0].mxu0 %v5243
      %v5703 = vpop.f32.mrb[0].mxu0
      %v5704 = vadd.f32 %v5395, %v5703
      %v5705 = vpop.f32.mrb[0].mxu0
      %v5706 = vpop.f32.mrb[0].mxu0
      %v5707 = vadd.f32 %v5395, %v5706
      %v5708 = vpop.f32.mrb[0].mxu0
      %5709 = vmatprep.mubr.bf16.mxu0 %v5249
      %5710 = vmatmul.mubr.bf16.gmra.mrb[0].mxu0 %v5248
      %v5711 = vpop.f32.mrb[0].mxu0
      %v5712 = vadd.f32 %v5395, %v5711
      %v5713 = vpop.f32.mrb[0].mxu0
      %v5714 = vpop.f32.mrb[0].mxu0
      %v5715 = vadd.f32 %v5395, %v5714
      %v5716 = vpop.f32.mrb[0].mxu0
      %5717 = vmatprep.mubr.bf16.mxu0 %v5254
      %5718 = vmatmul.mubr.bf16.gmra.mrb[0].mxu0 %v5253
      %v5719 = vpop.f32.mrb[0].mxu0
      %v5720 = vadd.f32 %v5395, %v5719
      %v5721 = vpop.f32.mrb[0].mxu0
      %v5722 = vpop.f32.mrb[0].mxu0
      %v5723 = vadd.f32 %v5395, %v5722
      %v5724 = vpop.f32.mrb[0].mxu0
      %5725 = vmatprep.mubr.bf16.mxu0 %v5259
      %5726 = vmatmul.mubr.bf16.gmra.mrb[0].mxu0 %v5258
      %v5727 = vpop.f32.mrb[0].mxu0
      %v5728 = vadd.f32 %v5395, %v5727
      %v5729 = vpop.f32.mrb[0].mxu0
      %v5730 = vpop.f32.mrb[0].mxu0
      %v5731 = vadd.f32 %v5395, %v5730
      %v5732 = vpop.f32.mrb[0].mxu0
      %5733 = vmatprep.mubr.bf16.mxu0 %v5264
      %5734 = vmatmul.mubr.bf16.gmra.mrb[0].mxu0 %v5263
      %v5735 = vpop.f32.mrb[0].mxu0
      %v5736 = vadd.f32 %v5395, %v5735
      %v5737 = vpop.f32.mrb[0].mxu0
      %v5738 = vpop.f32.mrb[0].mxu0
      %v5739 = vadd.f32 %v5395, %v5738
      %v5740 = vpop.f32.mrb[0].mxu0
      %5741 = vmatprep.mubr.bf16.mxu0 %v5269
      %5742 = vmatmul.mubr.bf16.gmra.mrb[0].mxu0 %v5268
      %v5743 = vpop.f32.mrb[0].mxu0
      %v5744 = vadd.f32 %v5395, %v5743
      %v5745 = vpop.f32.mrb[0].mxu0
      %v5746 = vpop.f32.mrb[0].mxu0
      %v5747 = vadd.f32 %v5395, %v5746
      %v5748 = vpop.f32.mrb[0].mxu0
      %5749 = vmatprep.mubr.bf16.mxu0 %v5274
      %5750 = vmatmul.mubr.bf16.gmra.mrb[0].mxu0 %v5273
      %v5751 = vpop.f32.mrb[0].mxu0
      %v5752 = vadd.f32 %v5395, %v5751
      %v5753 = vpop.f32.mrb[0].mxu0
      %v5754 = vpop.f32.mrb[0].mxu0
      %v5755 = vadd.f32 %v5395, %v5754
      %v5756 = vpop.f32.mrb[0].mxu0
      %5757 = vmatprep.mubr.bf16.mxu0 %v5279
      %5758 = vmatmul.mubr.bf16.gmra.mrb[0].mxu0 %v5278
      %v5759 = vpop.f32.mrb[0].mxu0
      %v5760 = vadd.f32 %v5395, %v5759
      %v5761 = vpop.f32.mrb[0].mxu0
      %v5762 = vpop.f32.mrb[0].mxu0
      %v5763 = vadd.f32 %v5395, %v5762
      %v5764 = vpop.f32.mrb[0].mxu0
      %5765 = vmatprep.mubr.bf16.mxu0 %v5284
      %5766 = vmatmul.mubr.bf16.gmra.mrb[0].mxu0 %v5283
      %v5767 = vpop.f32.mrb[0].mxu0
      %v5768 = vadd.f32 %v5395, %v5767
      %v5769 = vpop.f32.mrb[0].mxu0
      %v5770 = vpop.f32.mrb[0].mxu0
      %v5771 = vadd.f32 %v5395, %v5770
      %v5772 = vpop.f32.mrb[0].mxu0
      %5773 = vmatprep.mubr.bf16.mxu0 %v5289
      %5774 = vmatmul.mubr.bf16.gmra.mrb[0].mxu0 %v5288
      %v5775 = vpop.f32.mrb[0].mxu0
      %v5776 = vadd.f32 %v5395, %v5775
      %v5777 = vpop.f32.mrb[0].mxu0
      %v5778 = vpop.f32.mrb[0].mxu0
      %v5779 = vadd.f32 %v5395, %v5778
      %v5780 = vpop.f32.mrb[0].mxu0
      %5781 = vmatprep.mubr.bf16.mxu0 %v5294
      %5782 = vmatmul.mubr.bf16.gmra.mrb[0].mxu0 %v5293
      %v5783 = vpop.f32.mrb[0].mxu0
      %v5784 = vadd.f32 %v5395, %v5783
      %v5785 = vpop.f32.mrb[0].mxu0
      %v5786 = vpop.f32.mrb[0].mxu0
      %v5787 = vadd.f32 %v5395, %v5786
      %v5788 = vpop.f32.mrb[0].mxu0
      %5789 = vmatprep.mubr.bf16.mxu0 %v5299
      %5790 = vmatmul.mubr.bf16.gmra.mrb[0].mxu0 %v5298
      %v5791 = vpop.f32.mrb[0].mxu0
      %v5792 = vadd.f32 %v5395, %v5791
      %v5793 = vpop.f32.mrb[0].mxu0
      %v5794 = vpop.f32.mrb[0].mxu0
      %v5795 = vadd.f32 %v5395, %v5794
      %v5796 = vpop.f32.mrb[0].mxu0
      %5797 = vmatprep.mubr.bf16.mxu0 %v5304
      %5798 = vmatmul.mubr.bf16.gmra.mrb[0].mxu0 %v5303
      %v5799 = vpop.f32.mrb[0].mxu0
      %v5800 = vadd.f32 %v5395, %v5799
      %v5801 = vpop.f32.mrb[0].mxu0
      %v5802 = vpop.f32.mrb[0].mxu0
      %v5803 = vadd.f32 %v5395, %v5802
      %v5804 = vpop.f32.mrb[0].mxu0
      %5805 = vmatprep.mubr.bf16.mxu0 %v5309
      %5806 = vmatmul.mubr.bf16.gmra.mrb[0].mxu0 %v5308
      %v5807 = vpop.f32.mrb[0].mxu0
      %v5808 = vadd.f32 %v5395, %v5807
      %v5809 = vpop.f32.mrb[0].mxu0
      %v5810 = vpop.f32.mrb[0].mxu0
      %v5811 = vadd.f32 %v5395, %v5810
      %v5812 = vpop.f32.mrb[0].mxu0
      %5813 = vmatprep.mubr.bf16.mxu0 %v5314
      %5814 = vmatmul.mubr.bf16.gmra.mrb[0].mxu0 %v5313
      %v5815 = vpop.f32.mrb[0].mxu0
      %v5816 = vadd.f32 %v5395, %v5815
      %v5817 = vpop.f32.mrb[0].mxu0
      %v5818 = vpop.f32.mrb[0].mxu0
      %v5819 = vadd.f32 %v5395, %v5818
      %v5820 = vpop.f32.mrb[0].mxu0
      %5821 = vdwg.mxu0
      %5822 = vmatprep.subr.bf16.mxu0 0
      %5823 = vmatpush1.bf16.msra.mxu0 %v5557
      %5824 = vmatprep.subr.bf16.mxu0 0
      %5825 = vmatpush1.bf16.msra.mxu0 %v5558
      %5826 = vmatprep.subr.bf16.mxu0 0
      %5827 = vmatpush1.bf16.msra.mxu0 %v5559
      %5828 = vmatprep.subr.bf16.mxu0 0
      %5829 = vmatpush1.bf16.msra.mxu0 %v5560
      %5830 = vmatprep.subr.bf16.mxu0 0
      %5831 = vmatpush1.bf16.msra.mxu0 %v5561
      %5832 = vmatprep.subr.bf16.mxu0 0
      %5833 = vmatpush1.bf16.msra.mxu0 %v5562
      %5834 = vmatprep.subr.bf16.mxu0 0
      %5835 = vmatpush1.bf16.msra.mxu0 %v5563
      %5836 = vmatprep.subr.bf16.mxu0 0
      %5837 = vmatpush1.bf16.msra.mxu0 %v5564
      %5838 = vmatprep.subr.bf16.mxu0 0
      %5839 = vmatpush1.bf16.msra.mxu0 %v5565
      %5840 = vmatprep.subr.bf16.mxu0 0
      %5841 = vmatpush1.bf16.msra.mxu0 %v5566
      %5842 = vmatprep.subr.bf16.mxu0 0
      %5843 = vmatpush1.bf16.msra.mxu0 %v5567
      %5844 = vmatprep.subr.bf16.mxu0 0
      %5845 = vmatpush1.bf16.msra.mxu0 %v5568
      %5846 = vmatprep.subr.bf16.mxu0 0
      %5847 = vmatpush1.bf16.msra.mxu0 %v5569
      %5848 = vmatprep.subr.bf16.mxu0 0
      %5849 = vmatpush1.bf16.msra.mxu0 %v5570
      %5850 = vmatprep.subr.bf16.mxu0 0
      %5851 = vmatpush1.bf16.msra.mxu0 %v5571
      %5852 = vmatprep.subr.bf16.mxu0 0
      %5853 = vmatpush1.bf16.msra.mxu0 %v5572
      %5854 = vmatprep.mubr.bf16.mxu0 %v5241
      %5855 = vmatmul.mubr.bf16.gmra.mrb[0].mxu0 %v5240
      %v5856 = vpop.f32.mrb[0].mxu0
      %v5857 = vadd.f32 %v5696, %v5856
      %v5858 = vpop.f32.mrb[0].mxu0
      %v5859 = vpop.f32.mrb[0].mxu0
      %v5860 = vadd.f32 %v5699, %v5859
      %v5861 = vpop.f32.mrb[0].mxu0
      %5862 = vmatprep.mubr.bf16.mxu0 %v5246
      %5863 = vmatmul.mubr.bf16.gmra.mrb[0].mxu0 %v5245
      %v5864 = vpop.f32.mrb[0].mxu0
      %v5865 = vadd.f32 %v5704, %v5864
      %v5866 = vpop.f32.mrb[0].mxu0
      %v5867 = vpop.f32.mrb[0].mxu0
      %v5868 = vadd.f32 %v5707, %v5867
      %v5869 = vpop.f32.mrb[0].mxu0
      %5870 = vmatprep.mubr.bf16.mxu0 %v5251
      %5871 = vmatmul.mubr.bf16.gmra.mrb[0].mxu0 %v5250
      %v5872 = vpop.f32.mrb[0].mxu0
      %v5873 = vadd.f32 %v5712, %v5872
      %v5874 = vpop.f32.mrb[0].mxu0
      %v5875 = vpop.f32.mrb[0].mxu0
      %v5876 = vadd.f32 %v5715, %v5875
      %v5877 = vpop.f32.mrb[0].mxu0
      %5878 = vmatprep.mubr.bf16.mxu0 %v5256
      %5879 = vmatmul.mubr.bf16.gmra.mrb[0].mxu0 %v5255
      %v5880 = vpop.f32.mrb[0].mxu0
      %v5881 = vadd.f32 %v5720, %v5880
      %v5882 = vpop.f32.mrb[0].mxu0
      %v5883 = vpop.f32.mrb[0].mxu0
      %v5884 = vadd.f32 %v5723, %v5883
      %v5885 = vpop.f32.mrb[0].mxu0
      %5886 = vmatprep.mubr.bf16.mxu0 %v5261
      %5887 = vmatmul.mubr.bf16.gmra.mrb[0].mxu0 %v5260
      %v5888 = vpop.f32.mrb[0].mxu0
      %v5889 = vadd.f32 %v5728, %v5888
      %v5890 = vpop.f32.mrb[0].mxu0
      %v5891 = vpop.f32.mrb[0].mxu0
      %v5892 = vadd.f32 %v5731, %v5891
      %v5893 = vpop.f32.mrb[0].mxu0
      %5894 = vmatprep.mubr.bf16.mxu0 %v5266
      %5895 = vmatmul.mubr.bf16.gmra.mrb[0].mxu0 %v5265
      %v5896 = vpop.f32.mrb[0].mxu0
      %v5897 = vadd.f32 %v5736, %v5896
      %v5898 = vpop.f32.mrb[0].mxu0
      %v5899 = vpop.f32.mrb[0].mxu0
      %v5900 = vadd.f32 %v5739, %v5899
      %v5901 = vpop.f32.mrb[0].mxu0
      %5902 = vmatprep.mubr.bf16.mxu0 %v5271
      %5903 = vmatmul.mubr.bf16.gmra.mrb[0].mxu0 %v5270
      %v5904 = vpop.f32.mrb[0].mxu0
      %v5905 = vadd.f32 %v5744, %v5904
      %v5906 = vpop.f32.mrb[0].mxu0
      %v5907 = vpop.f32.mrb[0].mxu0
      %v5908 = vadd.f32 %v5747, %v5907
      %v5909 = vpop.f32.mrb[0].mxu0
      %5910 = vmatprep.mubr.bf16.mxu0 %v5276
      %5911 = vmatmul.mubr.bf16.gmra.mrb[0].mxu0 %v5275
      %v5912 = vpop.f32.mrb[0].mxu0
      %v5913 = vadd.f32 %v5752, %v5912
      %v5914 = vpop.f32.mrb[0].mxu0
      %v5915 = vpop.f32.mrb[0].mxu0
      %v5916 = vadd.f32 %v5755, %v5915
      %v5917 = vpop.f32.mrb[0].mxu0
      %5918 = vmatprep.mubr.bf16.mxu0 %v5281
      %5919 = vmatmul.mubr.bf16.gmra.mrb[0].mxu0 %v5280
      %v5920 = vpop.f32.mrb[0].mxu0
      %v5921 = vadd.f32 %v5760, %v5920
      %v5922 = vpop.f32.mrb[0].mxu0
      %v5923 = vpop.f32.mrb[0].mxu0
      %v5924 = vadd.f32 %v5763, %v5923
      %v5925 = vpop.f32.mrb[0].mxu0
      %5926 = vmatprep.mubr.bf16.mxu0 %v5286
      %5927 = vmatmul.mubr.bf16.gmra.mrb[0].mxu0 %v5285
      %v5928 = vpop.f32.mrb[0].mxu0
      %v5929 = vadd.f32 %v5768, %v5928
      %v5930 = vpop.f32.mrb[0].mxu0
      %v5931 = vpop.f32.mrb[0].mxu0
      %v5932 = vadd.f32 %v5771, %v5931
      %v5933 = vpop.f32.mrb[0].mxu0
      %5934 = vmatprep.mubr.bf16.mxu0 %v5291
      %5935 = vmatmul.mubr.bf16.gmra.mrb[0].mxu0 %v5290
      %v5936 = vpop.f32.mrb[0].mxu0
      %v5937 = vadd.f32 %v5776, %v5936
      %v5938 = vpop.f32.mrb[0].mxu0
      %v5939 = vpop.f32.mrb[0].mxu0
      %v5940 = vadd.f32 %v5779, %v5939
      %v5941 = vpop.f32.mrb[0].mxu0
      %5942 = vmatprep.mubr.bf16.mxu0 %v5296
      %5943 = vmatmul.mubr.bf16.gmra.mrb[0].mxu0 %v5295
      %v5944 = vpop.f32.mrb[0].mxu0
      %v5945 = vadd.f32 %v5784, %v5944
      %v5946 = vpop.f32.mrb[0].mxu0
      %v5947 = vpop.f32.mrb[0].mxu0
      %v5948 = vadd.f32 %v5787, %v5947
      %v5949 = vpop.f32.mrb[0].mxu0
      %5950 = vmatprep.mubr.bf16.mxu0 %v5301
      %5951 = vmatmul.mubr.bf16.gmra.mrb[0].mxu0 %v5300
      %v5952 = vpop.f32.mrb[0].mxu0
      %v5953 = vadd.f32 %v5792, %v5952
      %v5954 = vpop.f32.mrb[0].mxu0
      %v5955 = vpop.f32.mrb[0].mxu0
      %v5956 = vadd.f32 %v5795, %v5955
      %v5957 = vpop.f32.mrb[0].mxu0
      %5958 = vmatprep.mubr.bf16.mxu0 %v5306
      %5959 = vmatmul.mubr.bf16.gmra.mrb[0].mxu0 %v5305
      %v5960 = vpop.f32.mrb[0].mxu0
      %v5961 = vadd.f32 %v5800, %v5960
      %v5962 = vpop.f32.mrb[0].mxu0
      %v5963 = vpop.f32.mrb[0].mxu0
      %v5964 = vadd.f32 %v5803, %v5963
      %v5965 = vpop.f32.mrb[0].mxu0
      %5966 = vmatprep.mubr.bf16.mxu0 %v5311
      %5967 = vmatmul.mubr.bf16.gmra.mrb[0].mxu0 %v5310
      %v5968 = vpop.f32.mrb[0].mxu0
      %v5969 = vadd.f32 %v5808, %v5968
      %v5970 = vpop.f32.mrb[0].mxu0
      %v5971 = vpop.f32.mrb[0].mxu0
      %v5972 = vadd.f32 %v5811, %v5971
      %v5973 = vpop.f32.mrb[0].mxu0
      %5974 = vmatprep.mubr.bf16.mxu0 %v5316
      %5975 = vmatmul.mubr.bf16.gmra.mrb[0].mxu0 %v5315
      %v5976 = vpop.f32.mrb[0].mxu0
      %v5977 = vadd.f32 %v5816, %v5976
      %v5978 = vpop.f32.mrb[0].mxu0
      %v5979 = vpop.f32.mrb[0].mxu0
      %v5980 = vadd.f32 %v5819, %v5979
      %v5981 = vpop.f32.mrb[0].mxu0
      %5982 = vdwg.mxu0
      %5983 = vmatprep.subr.bf16.mxu0 0
      %5984 = vmatpush1.bf16.msra.mxu0 %v5573
      %5985 = vmatprep.subr.bf16.mxu0 0
      %5986 = vmatpush1.bf16.msra.mxu0 %v5574
      %5987 = vmatprep.subr.bf16.mxu0 0
      %5988 = vmatpush1.bf16.msra.mxu0 %v5575
      %5989 = vmatprep.subr.bf16.mxu0 0
      %5990 = vmatpush1.bf16.msra.mxu0 %v5576
      %5991 = vmatprep.subr.bf16.mxu0 0
      %5992 = vmatpush1.bf16.msra.mxu0 0
      %5993 = vmatprep.subr.bf16.mxu0 0
      %5994 = vmatpush1.bf16.msra.mxu0 0
      %5995 = vmatprep.subr.bf16.mxu0 0
      %5996 = vmatpush1.bf16.msra.mxu0 0
      %5997 = vmatprep.subr.bf16.mxu0 0
      %5998 = vmatpush1.bf16.msra.mxu0 0
      %5999 = vmatprep.subr.bf16.mxu0 0
      %6000 = vmatpush1.bf16.msra.mxu0 0
      %6001 = vmatprep.subr.bf16.mxu0 0
      %6002 = vmatpush1.bf16.msra.mxu0 0
      %6003 = vmatprep.subr.bf16.mxu0 0
      %6004 = vmatpush1.bf16.msra.mxu0 0
      %6005 = vmatprep.subr.bf16.mxu0 0
      %6006 = vmatpush1.bf16.msra.mxu0 0
      %6007 = vmatprep.subr.bf16.mxu0 0
      %6008 = vmatpush1.bf16.msra.mxu0 0
      %6009 = vmatprep.subr.bf16.mxu0 0
      %6010 = vmatpush1.bf16.msra.mxu0 0
      %6011 = vmatprep.subr.bf16.mxu0 0
      %6012 = vmatpush1.bf16.msra.mxu0 0
      %6013 = vmatprep.subr.bf16.mxu0 0
      %6014 = vmatpush1.bf16.msra.mxu0 0
      %6015 = vmatprep.mubr.bf16.mxu0 0
      %6016 = vmatmul.mubr.bf16.gmra.mrb[0].mxu0 %v5614
      %v6017 = vpop.f32.mrb[0].mxu0
      %v6018 = vadd.f32 %v5857, %v6017
      %v6019 = vpop.f32.mrb[0].mxu0
      %v6020 = vpop.f32.mrb[0].mxu0
      %v6021 = vadd.f32 %v5860, %v6020
      %v6022 = vpop.f32.mrb[0].mxu0
      %6023 = vmatprep.mubr.bf16.mxu0 0
      %6024 = vmatmul.mubr.bf16.gmra.mrb[0].mxu0 %v5617
      %v6025 = vpop.f32.mrb[0].mxu0
      %v6026 = vadd.f32 %v5865, %v6025
      %v6027 = vpop.f32.mrb[0].mxu0
      %v6028 = vpop.f32.mrb[0].mxu0
      %v6029 = vadd.f32 %v5868, %v6028
      %v6030 = vpop.f32.mrb[0].mxu0
      %6031 = vmatprep.mubr.bf16.mxu0 0
      %6032 = vmatmul.mubr.bf16.gmra.mrb[0].mxu0 %v5620
      %v6033 = vpop.f32.mrb[0].mxu0
      %v6034 = vadd.f32 %v5873, %v6033
      %v6035 = vpop.f32.mrb[0].mxu0
      %v6036 = vpop.f32.mrb[0].mxu0
      %v6037 = vadd.f32 %v5876, %v6036
      %v6038 = vpop.f32.mrb[0].mxu0
      %6039 = vmatprep.mubr.bf16.mxu0 0
      %6040 = vmatmul.mubr.bf16.gmra.mrb[0].mxu0 %v5623
      %v6041 = vpop.f32.mrb[0].mxu0
      %v6042 = vadd.f32 %v5881, %v6041
      %v6043 = vpop.f32.mrb[0].mxu0
      %v6044 = vpop.f32.mrb[0].mxu0
      %v6045 = vadd.f32 %v5884, %v6044
      %v6046 = vpop.f32.mrb[0].mxu0
      %6047 = vmatprep.mubr.bf16.mxu0 0
      %6048 = vmatmul.mubr.bf16.gmra.mrb[0].mxu0 %v5626
      %v6049 = vpop.f32.mrb[0].mxu0
      %v6050 = vadd.f32 %v5889, %v6049
      %v6051 = vpop.f32.mrb[0].mxu0
      %v6052 = vpop.f32.mrb[0].mxu0
      %v6053 = vadd.f32 %v5892, %v6052
      %v6054 = vpop.f32.mrb[0].mxu0
      %6055 = vmatprep.mubr.bf16.mxu0 0
      %6056 = vmatmul.mubr.bf16.gmra.mrb[0].mxu0 %v5629
      %v6057 = vpop.f32.mrb[0].mxu0
      %v6058 = vadd.f32 %v5897, %v6057
      %v6059 = vpop.f32.mrb[0].mxu0
      %v6060 = vpop.f32.mrb[0].mxu0
      %v6061 = vadd.f32 %v5900, %v6060
      %v6062 = vpop.f32.mrb[0].mxu0
      %6063 = vmatprep.mubr.bf16.mxu0 0
      %6064 = vmatmul.mubr.bf16.gmra.mrb[0].mxu0 %v5632
      %v6065 = vpop.f32.mrb[0].mxu0
      %v6066 = vadd.f32 %v5905, %v6065
      %v6067 = vpop.f32.mrb[0].mxu0
      %v6068 = vpop.f32.mrb[0].mxu0
      %v6069 = vadd.f32 %v5908, %v6068
      %v6070 = vpop.f32.mrb[0].mxu0
      %6071 = vmatprep.mubr.bf16.mxu0 0
      %6072 = vmatmul.mubr.bf16.gmra.mrb[0].mxu0 %v5635
      %v6073 = vpop.f32.mrb[0].mxu0
      %v6074 = vadd.f32 %v5913, %v6073
      %v6075 = vpop.f32.mrb[0].mxu0
      %v6076 = vpop.f32.mrb[0].mxu0
      %v6077 = vadd.f32 %v5916, %v6076
      %v6078 = vpop.f32.mrb[0].mxu0
      %6079 = vmatprep.mubr.bf16.mxu0 0
      %6080 = vmatmul.mubr.bf16.gmra.mrb[0].mxu0 %v5638
      %v6081 = vpop.f32.mrb[0].mxu0
      %v6082 = vadd.f32 %v5921, %v6081
      %v6083 = vpop.f32.mrb[0].mxu0
      %v6084 = vpop.f32.mrb[0].mxu0
      %v6085 = vadd.f32 %v5924, %v6084
      %v6086 = vpop.f32.mrb[0].mxu0
      %6087 = vmatprep.mubr.bf16.mxu0 0
      %6088 = vmatmul.mubr.bf16.gmra.mrb[0].mxu0 %v5641
      %v6089 = vpop.f32.mrb[0].mxu0
      %v6090 = vadd.f32 %v5929, %v6089
      %v6091 = vpop.f32.mrb[0].mxu0
      %v6092 = vpop.f32.mrb[0].mxu0
      %v6093 = vadd.f32 %v5932, %v6092
      %v6094 = vpop.f32.mrb[0].mxu0
      %6095 = vmatprep.mubr.bf16.mxu0 0
      %6096 = vmatmul.mubr.bf16.gmra.mrb[0].mxu0 %v5644
      %v6097 = vpop.f32.mrb[0].mxu0
      %v6098 = vadd.f32 %v5937, %v6097
      %v6099 = vpop.f32.mrb[0].mxu0
      %v6100 = vpop.f32.mrb[0].mxu0
      %v6101 = vadd.f32 %v5940, %v6100
      %v6102 = vpop.f32.mrb[0].mxu0
      %6103 = vmatprep.mubr.bf16.mxu0 0
      %6104 = vmatmul.mubr.bf16.gmra.mrb[0].mxu0 %v5647
      %v6105 = vpop.f32.mrb[0].mxu0
      %v6106 = vadd.f32 %v5945, %v6105
      %v6107 = vpop.f32.mrb[0].mxu0
      %v6108 = vpop.f32.mrb[0].mxu0
      %v6109 = vadd.f32 %v5948, %v6108
      %v6110 = vpop.f32.mrb[0].mxu0
      %6111 = vmatprep.mubr.bf16.mxu0 0
      %6112 = vmatmul.mubr.bf16.gmra.mrb[0].mxu0 %v5650
      %v6113 = vpop.f32.mrb[0].mxu0
      %v6114 = vadd.f32 %v5953, %v6113
      %v6115 = vpop.f32.mrb[0].mxu0
      %v6116 = vpop.f32.mrb[0].mxu0
      %v6117 = vadd.f32 %v5956, %v6116
      %v6118 = vpop.f32.mrb[0].mxu0
      %6119 = vmatprep.mubr.bf16.mxu0 0
      %6120 = vmatmul.mubr.bf16.gmra.mrb[0].mxu0 %v5653
      %v6121 = vpop.f32.mrb[0].mxu0
      %v6122 = vadd.f32 %v5961, %v6121
      %v6123 = vpop.f32.mrb[0].mxu0
      %v6124 = vpop.f32.mrb[0].mxu0
      %v6125 = vadd.f32 %v5964, %v6124
      %v6126 = vpop.f32.mrb[0].mxu0
      %6127 = vmatprep.mubr.bf16.mxu0 0
      %6128 = vmatmul.mubr.bf16.gmra.mrb[0].mxu0 %v5656
      %v6129 = vpop.f32.mrb[0].mxu0
      %v6130 = vadd.f32 %v5969, %v6129
      %v6131 = vpop.f32.mrb[0].mxu0
      %v6132 = vpop.f32.mrb[0].mxu0
      %v6133 = vadd.f32 %v5972, %v6132
      %v6134 = vpop.f32.mrb[0].mxu0
      %6135 = vmatprep.mubr.bf16.mxu0 0
      %6136 = vmatmul.mubr.bf16.gmra.mrb[0].mxu0 %v5659
      %v6137 = vpop.f32.mrb[0].mxu0
      %v6138 = vadd.f32 %v5977, %v6137
      %v6139 = vpop.f32.mrb[0].mxu0
      %v6140 = vpop.f32.mrb[0].mxu0
      %v6141 = vadd.f32 %v5980, %v6140
      %v6142 = vpop.f32.mrb[0].mxu0
      %6143 = vdwg.mxu0
      %vm6144 = vcmask 23552
      %v6145 = vsel %vm6144, %v6018, -inf
      %6146 = vmax.xlane.f32.xlu0 %v6145
      %v6147 = vpop.xlane.xlu0 %6146
      %v6148 = vsel %vm6144, %v6021, -inf
      %6149 = vmax.xlane.f32.xlu0 %v6148
      %v6150 = vpop.xlane.xlu0 %6149
      %v6151 = vsel %vm6144, %v6026, -inf
      %6152 = vmax.xlane.f32.xlu0 %v6151
      %v6153 = vpop.xlane.xlu0 %6152
      %v6154 = vsel %vm6144, %v6029, -inf
      %6155 = vmax.xlane.f32.xlu0 %v6154
      %v6156 = vpop.xlane.xlu0 %6155
      %v6157 = vsel %vm6144, %v6034, -inf
      %6158 = vmax.xlane.f32.xlu0 %v6157
      %v6159 = vpop.xlane.xlu0 %6158
      %v6160 = vsel %vm6144, %v6037, -inf
      %6161 = vmax.xlane.f32.xlu0 %v6160
      %v6162 = vpop.xlane.xlu0 %6161
      %v6163 = vsel %vm6144, %v6042, -inf
      %6164 = vmax.xlane.f32.xlu0 %v6163
      %v6165 = vpop.xlane.xlu0 %6164
      %v6166 = vsel %vm6144, %v6045, -inf
      %6167 = vmax.xlane.f32.xlu0 %v6166
      %v6168 = vpop.xlane.xlu0 %6167
      %v6169 = vsel %vm6144, %v6050, -inf
      %6170 = vmax.xlane.f32.xlu0 %v6169
      %v6171 = vpop.xlane.xlu0 %6170
      %v6172 = vsel %vm6144, %v6053, -inf
      %6173 = vmax.xlane.f32.xlu0 %v6172
      %v6174 = vpop.xlane.xlu0 %6173
      %v6175 = vsel %vm6144, %v6058, -inf
      %6176 = vmax.xlane.f32.xlu0 %v6175
      %v6177 = vpop.xlane.xlu0 %6176
      %v6178 = vsel %vm6144, %v6061, -inf
      %6179 = vmax.xlane.f32.xlu0 %v6178
      %v6180 = vpop.xlane.xlu0 %6179
      %v6181 = vsel %vm6144, %v6066, -inf
      %6182 = vmax.xlane.f32.xlu0 %v6181
      %v6183 = vpop.xlane.xlu0 %6182
      %v6184 = vsel %vm6144, %v6069, -inf
      %6185 = vmax.xlane.f32.xlu0 %v6184
      %v6186 = vpop.xlane.xlu0 %6185
      %v6187 = vsel %vm6144, %v6074, -inf
      %6188 = vmax.xlane.f32.xlu0 %v6187
      %v6189 = vpop.xlane.xlu0 %6188
      %v6190 = vsel %vm6144, %v6077, -inf
      %6191 = vmax.xlane.f32.xlu0 %v6190
      %v6192 = vpop.xlane.xlu0 %6191
      %v6193 = vsel %vm6144, %v6082, -inf
      %6194 = vmax.xlane.f32.xlu0 %v6193
      %v6195 = vpop.xlane.xlu0 %6194
      %v6196 = vsel %vm6144, %v6085, -inf
      %6197 = vmax.xlane.f32.xlu0 %v6196
      %v6198 = vpop.xlane.xlu0 %6197
      %v6199 = vsel %vm6144, %v6090, -inf
      %6200 = vmax.xlane.f32.xlu0 %v6199
      %v6201 = vpop.xlane.xlu0 %6200
      %v6202 = vsel %vm6144, %v6093, -inf
      %6203 = vmax.xlane.f32.xlu0 %v6202
      %v6204 = vpop.xlane.xlu0 %6203
      %v6205 = vsel %vm6144, %v6098, -inf
      %6206 = vmax.xlane.f32.xlu0 %v6205
      %v6207 = vpop.xlane.xlu0 %6206
      %v6208 = vsel %vm6144, %v6101, -inf
      %6209 = vmax.xlane.f32.xlu0 %v6208
      %v6210 = vpop.xlane.xlu0 %6209
      %v6211 = vsel %vm6144, %v6106, -inf
      %6212 = vmax.xlane.f32.xlu0 %v6211
      %v6213 = vpop.xlane.xlu0 %6212
      %v6214 = vsel %vm6144, %v6109, -inf
      %6215 = vmax.xlane.f32.xlu0 %v6214
      %v6216 = vpop.xlane.xlu0 %6215
      %v6217 = vsel %vm6144, %v6114, -inf
      %6218 = vmax.xlane.f32.xlu0 %v6217
      %v6219 = vpop.xlane.xlu0 %6218
      %v6220 = vsel %vm6144, %v6117, -inf
      %6221 = vmax.xlane.f32.xlu0 %v6220
      %v6222 = vpop.xlane.xlu0 %6221
      %v6223 = vsel %vm6144, %v6122, -inf
      %6224 = vmax.xlane.f32.xlu0 %v6223
      %v6225 = vpop.xlane.xlu0 %6224
      %v6226 = vsel %vm6144, %v6125, -inf
      %6227 = vmax.xlane.f32.xlu0 %v6226
      %v6228 = vpop.xlane.xlu0 %6227
      %v6229 = vsel %vm6144, %v6130, -inf
      %6230 = vmax.xlane.f32.xlu0 %v6229
      %v6231 = vpop.xlane.xlu0 %6230
      %v6232 = vsel %vm6144, %v6133, -inf
      %6233 = vmax.xlane.f32.xlu0 %v6232
      %v6234 = vpop.xlane.xlu0 %6233
      %v6235 = vsel %vm6144, %v6138, -inf
      %6236 = vmax.xlane.f32.xlu0 %v6235
      %v6237 = vpop.xlane.xlu0 %6236
      %v6238 = vsel %vm6144, %v6141, -inf
      %6239 = vmax.xlane.f32.xlu0 %v6238
      %v6240 = vpop.xlane.xlu0 %6239
      %v6241 = vsub.f32 %v6018, %v6147
      %v6242 = vsub.f32 %v6021, %v6150
      %v6243 = vsub.f32 %v6026, %v6153
      %v6244 = vsub.f32 %v6029, %v6156
      %v6245 = vsub.f32 %v6034, %v6159
      %v6246 = vsub.f32 %v6037, %v6162
      %v6247 = vsub.f32 %v6042, %v6165
      %v6248 = vsub.f32 %v6045, %v6168
      %v6249 = vsub.f32 %v6050, %v6171
      %v6250 = vsub.f32 %v6053, %v6174
      %v6251 = vsub.f32 %v6058, %v6177
      %v6252 = vsub.f32 %v6061, %v6180
      %v6253 = vsub.f32 %v6066, %v6183
      %v6254 = vsub.f32 %v6069, %v6186
      %v6255 = vsub.f32 %v6074, %v6189
      %v6256 = vsub.f32 %v6077, %v6192
      %v6257 = vsub.f32 %v6082, %v6195
      %v6258 = vsub.f32 %v6085, %v6198
      %v6259 = vsub.f32 %v6090, %v6201
      %v6260 = vsub.f32 %v6093, %v6204
      %v6261 = vsub.f32 %v6098, %v6207
      %v6262 = vsub.f32 %v6101, %v6210
      %v6263 = vsub.f32 %v6106, %v6213
      %v6264 = vsub.f32 %v6109, %v6216
      %v6265 = vsub.f32 %v6114, %v6219
      %v6266 = vsub.f32 %v6117, %v6222
      %v6267 = vsub.f32 %v6122, %v6225
      %v6268 = vsub.f32 %v6125, %v6228
      %v6269 = vsub.f32 %v6130, %v6231
      %v6270 = vsub.f32 %v6133, %v6234
      %v6271 = vsub.f32 %v6138, %v6237
      %v6272 = vsub.f32 %v6141, %v6240
      %v6273 = vmul.f32 %v6241, 1.442695
      %v6274 = vpow.pop %v6273
      %v6275 = vmul.f32 %v6242, 1.442695
      %v6276 = vpow.pop %v6275
      %v6277 = vmul.f32 %v6243, 1.442695
      %v6278 = vpow.pop %v6277
      %v6279 = vmul.f32 %v6244, 1.442695
      %v6280 = vpow.pop %v6279
      %v6281 = vmul.f32 %v6245, 1.442695
      %v6282 = vpow.pop %v6281
      %v6283 = vmul.f32 %v6246, 1.442695
      %v6284 = vpow.pop %v6283
      %v6285 = vmul.f32 %v6247, 1.442695
      %v6286 = vpow.pop %v6285
      %v6287 = vmul.f32 %v6248, 1.442695
      %v6288 = vpow.pop %v6287
      %v6289 = vmul.f32 %v6249, 1.442695
      %v6290 = vpow.pop %v6289
      %v6291 = vmul.f32 %v6250, 1.442695
      %v6292 = vpow.pop %v6291
      %v6293 = vmul.f32 %v6251, 1.442695
      %v6294 = vpow.pop %v6293
      %v6295 = vmul.f32 %v6252, 1.442695
      %v6296 = vpow.pop %v6295
      %v6297 = vmul.f32 %v6253, 1.442695
      %v6298 = vpow.pop %v6297
      %v6299 = vmul.f32 %v6254, 1.442695
      %v6300 = vpow.pop %v6299
      %v6301 = vmul.f32 %v6255, 1.442695
      %v6302 = vpow.pop %v6301
      %v6303 = vmul.f32 %v6256, 1.442695
      %v6304 = vpow.pop %v6303
      %v6305 = vmul.f32 %v6257, 1.442695
      %v6306 = vpow.pop %v6305
      %v6307 = vmul.f32 %v6258, 1.442695
      %v6308 = vpow.pop %v6307
      %v6309 = vmul.f32 %v6259, 1.442695
      %v6310 = vpow.pop %v6309
      %v6311 = vmul.f32 %v6260, 1.442695
      %v6312 = vpow.pop %v6311
      %v6313 = vmul.f32 %v6261, 1.442695
      %v6314 = vpow.pop %v6313
      %v6315 = vmul.f32 %v6262, 1.442695
      %v6316 = vpow.pop %v6315
      %v6317 = vmul.f32 %v6263, 1.442695
      %v6318 = vpow.pop %v6317
      %v6319 = vmul.f32 %v6264, 1.442695
      %v6320 = vpow.pop %v6319
      %v6321 = vmul.f32 %v6265, 1.442695
      %v6322 = vpow.pop %v6321
      %v6323 = vmul.f32 %v6266, 1.442695
      %v6324 = vpow.pop %v6323
      %v6325 = vmul.f32 %v6267, 1.442695
      %v6326 = vpow.pop %v6325
      %v6327 = vmul.f32 %v6268, 1.442695
      %v6328 = vpow.pop %v6327
      %v6329 = vmul.f32 %v6269, 1.442695
      %v6330 = vpow.pop %v6329
      %v6331 = vmul.f32 %v6270, 1.442695
      %v6332 = vpow.pop %v6331
      %v6333 = vmul.f32 %v6271, 1.442695
      %v6334 = vpow.pop %v6333
      %v6335 = vmul.f32 %v6272, 1.442695
      %v6336 = vpow.pop %v6335
      %v6337 = vsel %vm6144, %v6274, 0.0
      %6338 = vadd.xlane.f32.xlu0 %v6337
      %v6339 = vpop.xlane.xlu0 %6338
      %v6340 = vsel %vm6144, %v6276, 0.0
      %6341 = vadd.xlane.f32.xlu0 %v6340
      %v6342 = vpop.xlane.xlu0 %6341
      %v6343 = vsel %vm6144, %v6278, 0.0
      %6344 = vadd.xlane.f32.xlu0 %v6343
      %v6345 = vpop.xlane.xlu0 %6344
      %v6346 = vsel %vm6144, %v6280, 0.0
      %6347 = vadd.xlane.f32.xlu0 %v6346
      %v6348 = vpop.xlane.xlu0 %6347
      %v6349 = vsel %vm6144, %v6282, 0.0
      %6350 = vadd.xlane.f32.xlu0 %v6349
      %v6351 = vpop.xlane.xlu0 %6350
      %v6352 = vsel %vm6144, %v6284, 0.0
      %6353 = vadd.xlane.f32.xlu0 %v6352
      %v6354 = vpop.xlane.xlu0 %6353
      %v6355 = vsel %vm6144, %v6286, 0.0
      %6356 = vadd.xlane.f32.xlu0 %v6355
      %v6357 = vpop.xlane.xlu0 %6356
      %v6358 = vsel %vm6144, %v6288, 0.0
      %6359 = vadd.xlane.f32.xlu0 %v6358
      %v6360 = vpop.xlane.xlu0 %6359
      %v6361 = vsel %vm6144, %v6290, 0.0
      %6362 = vadd.xlane.f32.xlu0 %v6361
      %v6363 = vpop.xlane.xlu0 %6362
      %v6364 = vsel %vm6144, %v6292, 0.0
      %6365 = vadd.xlane.f32.xlu0 %v6364
      %v6366 = vpop.xlane.xlu0 %6365
      %v6367 = vsel %vm6144, %v6294, 0.0
      %6368 = vadd.xlane.f32.xlu0 %v6367
      %v6369 = vpop.xlane.xlu0 %6368
      %v6370 = vsel %vm6144, %v6296, 0.0
      %6371 = vadd.xlane.f32.xlu0 %v6370
      %v6372 = vpop.xlane.xlu0 %6371
      %v6373 = vsel %vm6144, %v6298, 0.0
      %6374 = vadd.xlane.f32.xlu0 %v6373
      %v6375 = vpop.xlane.xlu0 %6374
      %v6376 = vsel %vm6144, %v6300, 0.0
      %6377 = vadd.xlane.f32.xlu0 %v6376
      %v6378 = vpop.xlane.xlu0 %6377
      %v6379 = vsel %vm6144, %v6302, 0.0
      %6380 = vadd.xlane.f32.xlu0 %v6379
      %v6381 = vpop.xlane.xlu0 %6380
      %v6382 = vsel %vm6144, %v6304, 0.0
      %6383 = vadd.xlane.f32.xlu0 %v6382
      %v6384 = vpop.xlane.xlu0 %6383
      %v6385 = vsel %vm6144, %v6306, 0.0
      %6386 = vadd.xlane.f32.xlu0 %v6385
      %v6387 = vpop.xlane.xlu0 %6386
      %v6388 = vsel %vm6144, %v6308, 0.0
      %6389 = vadd.xlane.f32.xlu0 %v6388
      %v6390 = vpop.xlane.xlu0 %6389
      %v6391 = vsel %vm6144, %v6310, 0.0
      %6392 = vadd.xlane.f32.xlu0 %v6391
      %v6393 = vpop.xlane.xlu0 %6392
      %v6394 = vsel %vm6144, %v6312, 0.0
      %6395 = vadd.xlane.f32.xlu0 %v6394
      %v6396 = vpop.xlane.xlu0 %6395
      %v6397 = vsel %vm6144, %v6314, 0.0
      %6398 = vadd.xlane.f32.xlu0 %v6397
      %v6399 = vpop.xlane.xlu0 %6398
      %v6400 = vsel %vm6144, %v6316, 0.0
      %6401 = vadd.xlane.f32.xlu0 %v6400
      %v6402 = vpop.xlane.xlu0 %6401
      %v6403 = vsel %vm6144, %v6318, 0.0
      %6404 = vadd.xlane.f32.xlu0 %v6403
      %v6405 = vpop.xlane.xlu0 %6404
      %v6406 = vsel %vm6144, %v6320, 0.0
      %6407 = vadd.xlane.f32.xlu0 %v6406
      %v6408 = vpop.xlane.xlu0 %6407
      %v6409 = vsel %vm6144, %v6322, 0.0
      %6410 = vadd.xlane.f32.xlu0 %v6409
      %v6411 = vpop.xlane.xlu0 %6410
      %v6412 = vsel %vm6144, %v6324, 0.0
      %6413 = vadd.xlane.f32.xlu0 %v6412
      %v6414 = vpop.xlane.xlu0 %6413
      %v6415 = vsel %vm6144, %v6326, 0.0
      %6416 = vadd.xlane.f32.xlu0 %v6415
      %v6417 = vpop.xlane.xlu0 %6416
      %v6418 = vsel %vm6144, %v6328, 0.0
      %6419 = vadd.xlane.f32.xlu0 %v6418
      %v6420 = vpop.xlane.xlu0 %6419
      %v6421 = vsel %vm6144, %v6330, 0.0
      %6422 = vadd.xlane.f32.xlu0 %v6421
      %v6423 = vpop.xlane.xlu0 %6422
      %v6424 = vsel %vm6144, %v6332, 0.0
      %6425 = vadd.xlane.f32.xlu0 %v6424
      %v6426 = vpop.xlane.xlu0 %6425
      %v6427 = vsel %vm6144, %v6334, 0.0
      %6428 = vadd.xlane.f32.xlu0 %v6427
      %v6429 = vpop.xlane.xlu0 %6428
      %v6430 = vsel %vm6144, %v6336, 0.0
      %6431 = vadd.xlane.f32.xlu0 %v6430
      %v6432 = vpop.xlane.xlu0 %6431
      %v6433 = vrcp.pop %v6339
      %v6434 = vrcp.pop %v6342
      %v6435 = vrcp.pop %v6345
      %v6436 = vrcp.pop %v6348
      %v6437 = vrcp.pop %v6351
      %v6438 = vrcp.pop %v6354
      %v6439 = vrcp.pop %v6357
      %v6440 = vrcp.pop %v6360
      %v6441 = vrcp.pop %v6363
      %v6442 = vrcp.pop %v6366
      %v6443 = vrcp.pop %v6369
      %v6444 = vrcp.pop %v6372
      %v6445 = vrcp.pop %v6375
      %v6446 = vrcp.pop %v6378
      %v6447 = vrcp.pop %v6381
      %v6448 = vrcp.pop %v6384
      %v6449 = vrcp.pop %v6387
      %v6450 = vrcp.pop %v6390
      %v6451 = vrcp.pop %v6393
      %v6452 = vrcp.pop %v6396
      %v6453 = vrcp.pop %v6399
      %v6454 = vrcp.pop %v6402
      %v6455 = vrcp.pop %v6405
      %v6456 = vrcp.pop %v6408
      %v6457 = vrcp.pop %v6411
      %v6458 = vrcp.pop %v6414
      %v6459 = vrcp.pop %v6417
      %v6460 = vrcp.pop %v6420
      %v6461 = vrcp.pop %v6423
      %v6462 = vrcp.pop %v6426
      %v6463 = vrcp.pop %v6429
      %v6464 = vrcp.pop %v6432
      %v6465 = vmul.f32 %v6274, %v6433
      %v6466 = vmul.f32 %v6276, %v6434
      %v6467 = vmul.f32 %v6278, %v6435
      %v6468 = vmul.f32 %v6280, %v6436
      %v6469 = vmul.f32 %v6282, %v6437
      %v6470 = vmul.f32 %v6284, %v6438
      %v6471 = vmul.f32 %v6286, %v6439
      %v6472 = vmul.f32 %v6288, %v6440
      %v6473 = vmul.f32 %v6290, %v6441
      %v6474 = vmul.f32 %v6292, %v6442
      %v6475 = vmul.f32 %v6294, %v6443
      %v6476 = vmul.f32 %v6296, %v6444
      %v6477 = vmul.f32 %v6298, %v6445
      %v6478 = vmul.f32 %v6300, %v6446
      %v6479 = vmul.f32 %v6302, %v6447
      %v6480 = vmul.f32 %v6304, %v6448
      %v6481 = vmul.f32 %v6306, %v6449
      %v6482 = vmul.f32 %v6308, %v6450
      %v6483 = vmul.f32 %v6310, %v6451
      %v6484 = vmul.f32 %v6312, %v6452
      %v6485 = vmul.f32 %v6314, %v6453
      %v6486 = vmul.f32 %v6316, %v6454
      %v6487 = vmul.f32 %v6318, %v6455
      %v6488 = vmul.f32 %v6320, %v6456
      %v6489 = vmul.f32 %v6322, %v6457
      %v6490 = vmul.f32 %v6324, %v6458
      %v6491 = vmul.f32 %v6326, %v6459
      %v6492 = vmul.f32 %v6328, %v6460
      %v6493 = vmul.f32 %v6330, %v6461
      %v6494 = vmul.f32 %v6332, %v6462
      %v6495 = vmul.f32 %v6334, %v6463
      %v6496 = vmul.f32 %v6336, %v6464
      %6497 = vst.msk [vmem:[%s278] sm:$0xff] %vm6144, %v6465
      %6498 = vst.msk [vmem:[%s278 + $0x8] sm:$0xff] %vm6144, %v6466
      %6499 = vst.msk [vmem:[%s278 + $0x10] sm:$0xff] %vm6144, %v6467
      %6500 = vst.msk [vmem:[%s278 + $0x18] sm:$0xff] %vm6144, %v6468
      %6501 = vst.msk [vmem:[%s278 + $0x20] sm:$0xff] %vm6144, %v6469
      %6502 = vst.msk [vmem:[%s278 + $0x28] sm:$0xff] %vm6144, %v6470
      %6503 = vst.msk [vmem:[%s278 + $0x30] sm:$0xff] %vm6144, %v6471
      %6504 = vst.msk [vmem:[%s278 + $0x38] sm:$0xff] %vm6144, %v6472
      %6505 = vst.msk [vmem:[%s278 + $0x40] sm:$0xff] %vm6144, %v6473
      %6506 = vst.msk [vmem:[%s278 + $0x48] sm:$0xff] %vm6144, %v6474
      %6507 = vst.msk [vmem:[%s278 + $0x50] sm:$0xff] %vm6144, %v6475
      %6508 = vst.msk [vmem:[%s278 + $0x58] sm:$0xff] %vm6144, %v6476
      %6509 = vst.msk [vmem:[%s278 + $0x60] sm:$0xff] %vm6144, %v6477
      %6510 = vst.msk [vmem:[%s278 + $0x68] sm:$0xff] %vm6144, %v6478
      %6511 = vst.msk [vmem:[%s278 + $0x70] sm:$0xff] %vm6144, %v6479
      %6512 = vst.msk [vmem:[%s278 + $0x78] sm:$0xff] %vm6144, %v6480
      %6513 = vst.msk [vmem:[%s278 + $0x80] sm:$0xff] %vm6144, %v6481
      %6514 = vst.msk [vmem:[%s278 + $0x88] sm:$0xff] %vm6144, %v6482
      %6515 = vst.msk [vmem:[%s278 + $0x90] sm:$0xff] %vm6144, %v6483
      %6516 = vst.msk [vmem:[%s278 + $0x98] sm:$0xff] %vm6144, %v6484
      %6517 = vst.msk [vmem:[%s278 + $0xa0] sm:$0xff] %vm6144, %v6485
      %6518 = vst.msk [vmem:[%s278 + $0xa8] sm:$0xff] %vm6144, %v6486
      %6519 = vst.msk [vmem:[%s278 + $0xb0] sm:$0xff] %vm6144, %v6487
      %6520 = vst.msk [vmem:[%s278 + $0xb8] sm:$0xff] %vm6144, %v6488
      %6521 = vst.msk [vmem:[%s278 + $0xc0] sm:$0xff] %vm6144, %v6489
      %6522 = vst.msk [vmem:[%s278 + $0xc8] sm:$0xff] %vm6144, %v6490
      %6523 = vst.msk [vmem:[%s278 + $0xd0] sm:$0xff] %vm6144, %v6491
      %6524 = vst.msk [vmem:[%s278 + $0xd8] sm:$0xff] %vm6144, %v6492
      %6525 = vst.msk [vmem:[%s278 + $0xe0] sm:$0xff] %vm6144, %v6493
      %6526 = vst.msk [vmem:[%s278 + $0xe8] sm:$0xff] %vm6144, %v6494
      %6527 = vst.msk [vmem:[%s278 + $0xf0] sm:$0xff] %vm6144, %v6495
      %6528 = vst.msk [vmem:[%s278 + $0xf8] sm:$0xff] %vm6144, %v6496
      %p6529 = scmp.lt.s32.totalorder %s18, 1
      %s6530 = scalar_select %p6529, %s18, 1
      %s6531 = smul.addr %s6530, 32
      %s6532 = smul.addr %s6531, 8
      %s6533 = scalar_lea.vmem %s7, %s6532
      // Predicated region
      $region49: #{tpu_custom_call.1} parent=47 // pred_check
        %p6534 = pneg %p188
      $region50: #{tpu_custom_call.1} parent=47 // pred_check_branch
        %6536 = sbr.rel (%p6534) target = $region52
      $region51: #{tpu_custom_call.1} parent=47 // pred_region
        _
      $region52: #{tpu_custom_call.1} parent=47 // pred_fallthru
        _
    $region48: #{tpu_custom_call.1} parent=5 // pred_fallthru
      _
    %p6537 = scmp.le.s32.totalorder 2, %s13
    // Predicated region
    $region53: #{tpu_custom_call.1} parent=5 // pred_check
      %p6538 = pneg %p6537
    $region54: #{tpu_custom_call.1} parent=5 // pred_check_branch
      %6540 = sbr.rel (%p6538) target = $region56
    $region55: #{tpu_custom_call.1} parent=5 // pred_region
      %s6541 = ssub.s32 %s13, 2
      // Predicated region
      $region57: #{tpu_custom_call.1} parent=55 // pred_check
        %p6542 = pneg %p194
      $region58: #{tpu_custom_call.1} parent=55 // pred_check_branch
        %6544 = sbr.rel (%p6542) target = $region60
      $region59: #{tpu_custom_call.1} parent=55 // pred_region
        %p6545 = scmp.lt.s32.totalorder %s19, 1
        %s6546 = scalar_select %p6545, %s19, 1
        %s6547 = smul.addr %s6546, 32
        %s6548 = smul.addr %s6547, 8
        %s6549 = scalar_lea.vmem %s7, %s6548
      $region60: #{tpu_custom_call.1} parent=55 // pred_fallthru
        _
    $region56: #{tpu_custom_call.1} parent=5 // pred_fallthru
      _
  $region6: #{tpu_custom_call.1} parent=0 // loop_footer
    %s17 = sadd.s32 1, %s13
  $region7: #{tpu_custom_call.1} parent=0 // loop_footer_branch
    %12 = sbr.rel target = $region3
  $region8: #{tpu_custom_call.1} parent=0 // loop_exit
    _

</llo_original>
